<compile_context>
chip_gen: v7x
topology: tpu7x:2x2x1
jax: 0.10.0
libtpu: 0.0.40
codegen_flags: <defaults>
</compile_context>

<pallas_src>
import functools

import jax
import jax.numpy as jnp
from jax.experimental import pallas as pl
from jax.experimental.pallas import tpu as pltpu  # noqa: F401  (kept for parity)


# ----------------------------------------------------------------------------
# Fused kernel: all LSTM layers + head in one invocation (no grid, no scratch).
# refs layout: x, (w_ih, w_hh, bias) * num_layers, w1, b1, w2, b2, out
# ----------------------------------------------------------------------------
def _lstm1_fused_kernel(num_layers, seq_len, b_pad, hidden, d_in0, *refs):
    idx = 0
    x_ref = refs[idx]; idx += 1
    layers = []
    for _ in range(num_layers):
        layers.append((refs[idx], refs[idx + 1], refs[idx + 2]))
        idx += 3
    w1_ref, b1_ref, w2_ref, b2_ref = refs[idx:idx + 4]; idx += 4
    out_ref = refs[idx]

    H = hidden
    x_all = x_ref[...]                       # (Bp, T*Din) — one vreg-row load

    h_seq = None                             # register-resident inter-layer seq
    h_last = None

    for layer, (wih_ref, whh_ref, b_ref) in enumerate(layers):
        wih = wih_ref[...]                   # (d_in, 4H)
        whh = whh_ref[...]                   # (H, 4H), stays resident
        bias = b_ref[...]                    # (1, 4H)

        # Hoisted input projections: independent of the recurrence, so the
        # scheduler can overlap them with the serial h @ W_hh chain.
        if layer == 0:
            projs = [
                jnp.dot(x_all[:, t * d_in0:(t + 1) * d_in0], wih,
                        preferred_element_type=jnp.float32) + bias
                for t in range(seq_len)
            ]
        else:
            projs = [
                jnp.dot(h_seq[t], wih, preferred_element_type=jnp.float32)
                + bias
                for t in range(seq_len)
            ]

        h = jnp.zeros((b_pad, H), jnp.float32)
        c = jnp.zeros((b_pad, H), jnp.float32)
        keep_seq = layer < num_layers - 1
        new_seq = []

        # Statically unrolled recurrence: only h @ W_hh + two full-vreg EUP
        # pushes + a handful of VPU ops on the critical path per step.
        # TODO(synk): pltpu.matmul_push_rhs/matmul_acc_lhs could pin W_hh in the
        #             MXU staging registers across the T steps; kept as jnp.dot
        #             for portability across v5e/v6e/v7x lowering.
        for t in range(seq_len):
            gates = projs[t] + jnp.dot(h, whh,
                                       preferred_element_type=jnp.float32)
            sg = jax.nn.sigmoid(gates)       # one full-width (Bp, 4H) EUP push
            tg = jnp.tanh(gates)             # one full-width (Bp, 4H) EUP push
            i = sg[:, 0 * H:1 * H]
            f = sg[:, 1 * H:2 * H]
            g = tg[:, 2 * H:3 * H]
            o = sg[:, 3 * H:4 * H]
            c = f * c + i * g
            h = o * jnp.tanh(c)
            if keep_seq:
                new_seq.append(h)            # stays in vregs, no VMEM store

        h_seq = new_seq
        h_last = h

    # ---- FC head: relu -> fc1 -> relu -> fc2 -> sigmoid ---------------------
    hr = jnp.maximum(h_last, 0.0)
    z1 = jnp.maximum(
        jnp.dot(hr, w1_ref[...], preferred_element_type=jnp.float32)
        + b1_ref[...], 0.0)
    # fc2 has a single output neuron: VPU mul + lane reduce, not an MXU pass.
    z2 = jnp.sum(z1 * w2_ref[...], axis=-1, keepdims=True) + b2_ref[...]
    out_ref[...] = jax.nn.sigmoid(z2)


# ----------------------------------------------------------------------------
# Wrapper
# ----------------------------------------------------------------------------
def lstm1_forward(params, x):
    x = jnp.asarray(x, jnp.float32)
    B, T, D_in = x.shape
    H = params["lstm"][0][1].shape[1]
    F = params["fc1_w"].shape[0]
    num_layers = len(params["lstm"])
    Bp = ((B + 7) // 8) * 8  # pad batch to a sublane multiple

    # (B, T, D) -> (B, T*D) is a free contiguous reshape; single batch pad.
    x_flat = jnp.pad(x.reshape(B, T * D_in), ((0, Bp - B), (0, 0)))

    inputs = [x_flat]
    in_specs = [pl.BlockSpec((Bp, T * D_in), lambda: (0, 0))]
    for (w_ih, w_hh, b_ih, b_hh) in params["lstm"]:
        d_in = w_ih.shape[1]
        inputs += [
            jnp.asarray(w_ih.T, jnp.float32),                    # (d_in, 4H)
            jnp.asarray(w_hh.T, jnp.float32),                    # (H, 4H)
            jnp.asarray((b_ih + b_hh)[None, :], jnp.float32),    # (1, 4H)
        ]
        in_specs += [
            pl.BlockSpec((d_in, 4 * H), lambda: (0, 0)),
            pl.BlockSpec((H, 4 * H), lambda: (0, 0)),
            pl.BlockSpec((1, 4 * H), lambda: (0, 0)),
        ]
    inputs += [
        jnp.asarray(params["fc1_w"].T, jnp.float32),             # (H, F)
        jnp.asarray(params["fc1_b"][None, :], jnp.float32),      # (1, F)
        jnp.asarray(params["fc2_w"], jnp.float32),               # (1, F) row
        jnp.asarray(params["fc2_b"][None, :], jnp.float32),      # (1, 1)
    ]
    in_specs += [
        pl.BlockSpec((H, F), lambda: (0, 0)),
        pl.BlockSpec((1, F), lambda: (0, 0)),
        pl.BlockSpec((1, F), lambda: (0, 0)),
        pl.BlockSpec((1, 1), lambda: (0, 0)),
    ]

    kernel = functools.partial(_lstm1_fused_kernel, num_layers, T, Bp, H, D_in)
    out = pl.pallas_call(
        kernel,
        out_shape=jax.ShapeDtypeStruct((Bp, 1), jnp.float32),
        in_specs=in_specs,
        out_specs=pl.BlockSpec((Bp, 1), lambda: (0, 0)),
    )(*inputs)
    return out[:B]


# ----------------------------------------------------------------------------
# Parameter init (matches PyTorch nn.LSTM / nn.Linear shapes)
# ----------------------------------------------------------------------------
def init_params(key, input_size, hidden_size, num_layers, fc_neurons):
    params = {"lstm": []}
    k = 1.0 / jnp.sqrt(hidden_size)
    keys = jax.random.split(key, 4 * num_layers + 4)
    ki = 0
    for layer in range(num_layers):
        d_in = input_size if layer == 0 else hidden_size
        w_ih = jax.random.uniform(keys[ki], (4 * hidden_size, d_in), jnp.float32, -k, k); ki += 1
        w_hh = jax.random.uniform(keys[ki], (4 * hidden_size, hidden_size), jnp.float32, -k, k); ki += 1
        b_ih = jax.random.uniform(keys[ki], (4 * hidden_size,), jnp.float32, -k, k); ki += 1
        b_hh = jax.random.uniform(keys[ki], (4 * hidden_size,), jnp.float32, -k, k); ki += 1
        params["lstm"].append((w_ih, w_hh, b_ih, b_hh))
    k1 = 1.0 / jnp.sqrt(hidden_size)
    params["fc1_w"] = jax.random.uniform(keys[ki], (fc_neurons, hidden_size), jnp.float32, -k1, k1); ki += 1
    params["fc1_b"] = jax.random.uniform(keys[ki], (fc_neurons,), jnp.float32, -k1, k1); ki += 1
    k2 = 1.0 / jnp.sqrt(fc_neurons)
    params["fc2_w"] = jax.random.uniform(keys[ki], (1, fc_neurons), jnp.float32, -k2, k2); ki += 1
    params["fc2_b"] = jax.random.uniform(keys[ki], (1,), jnp.float32, -k2, k2); ki += 1
    return params


# ----------------------------------------------------------------------------
# Pure-JAX reference (for correctness check)
# ----------------------------------------------------------------------------
def _ref_forward(params, x):
    seq = x
    for (w_ih, w_hh, b_ih, b_hh) in params["lstm"]:
        B, T, _ = seq.shape
        H = w_hh.shape[1]
        h = jnp.zeros((B, H), jnp.float32)
        c = jnp.zeros((B, H), jnp.float32)
        outs = []
        for t in range(T):
            gates = seq[:, t, :] @ w_ih.T + h @ w_hh.T + b_ih + b_hh
            i = jax.nn.sigmoid(gates[:, 0 * H:1 * H])
            f = jax.nn.sigmoid(gates[:, 1 * H:2 * H])
            g = jnp.tanh(gates[:, 2 * H:3 * H])
            o = jax.nn.sigmoid(gates[:, 3 * H:4 * H])
            c = f * c + i * g
            h = o * jnp.tanh(c)
            outs.append(h)
        seq = jnp.stack(outs, axis=1)
    hn = seq[:, -1, :]
    z1 = jnp.maximum(jnp.maximum(hn, 0.0) @ params["fc1_w"].T + params["fc1_b"], 0.0)
    z2 = z1 @ params["fc2_w"].T + params["fc2_b"]
    return jax.nn.sigmoid(z2)


if __name__ == "__main__":
    B, T = 2, 8
    input_size, hidden_size, num_layers, fc_neurons = 16, 32, 2, 64

    key = jax.random.PRNGKey(0)
    pkey, xkey = jax.random.split(key)
    params = init_params(pkey, input_size, hidden_size, num_layers, fc_neurons)
    x = jax.random.normal(xkey, (B, T, input_size), jnp.float32)

    out = lstm1_forward(params, x)
    out = jax.block_until_ready(out)

    ref = _ref_forward(params, x)
    assert out.shape == (B, 1)
    assert jnp.allclose(out, ref, atol=1e-5, rtol=1e-5), (out, ref)
    print("KERNEL_OK")
</pallas_src>

<mosaic_0001>
module attributes {stable_mosaic.version = 11 : i64} {
  func.func @_lstm1_fused_kernel(%arg0: memref<8x128xf32, #tpu.memory_space<vmem>>, %arg1: memref<16x128xf32, #tpu.memory_space<vmem>>, %arg2: memref<32x128xf32, #tpu.memory_space<vmem>>, %arg3: memref<1x128xf32, #tpu.memory_space<vmem>>, %arg4: memref<32x128xf32, #tpu.memory_space<vmem>>, %arg5: memref<32x128xf32, #tpu.memory_space<vmem>>, %arg6: memref<1x128xf32, #tpu.memory_space<vmem>>, %arg7: memref<32x64xf32, #tpu.memory_space<vmem>>, %arg8: memref<1x64xf32, #tpu.memory_space<vmem>>, %arg9: memref<1x64xf32, #tpu.memory_space<vmem>>, %arg10: memref<1x1xf32, #tpu.memory_space<vmem>>, %arg11: memref<8x1xf32, #tpu.memory_space<vmem>>) attributes {dimension_semantics = [], scalar_prefetch = 0 : i64, scratch_operands = 0 : i64, tpu.core_type = #tpu.core_type<tc>} {
    %c0 = arith.constant 0 : index
    %c0_0 = arith.constant 0 : index
    %0 = vector.load %arg0[%c0, %c0_0] : memref<8x128xf32, #tpu.memory_space<vmem>>, vector<8x128xf32>
    %c0_1 = arith.constant 0 : index
    %c0_2 = arith.constant 0 : index
    %1 = vector.load %arg1[%c0_1, %c0_2] : memref<16x128xf32, #tpu.memory_space<vmem>>, vector<16x128xf32>
    %c0_3 = arith.constant 0 : index
    %c0_4 = arith.constant 0 : index
    %2 = vector.load %arg2[%c0_3, %c0_4] : memref<32x128xf32, #tpu.memory_space<vmem>>, vector<32x128xf32>
    %c0_5 = arith.constant 0 : index
    %c0_6 = arith.constant 0 : index
    %3 = vector.load %arg3[%c0_5, %c0_6] : memref<1x128xf32, #tpu.memory_space<vmem>>, vector<1x128xf32>
    %4 = vector.extract_strided_slice %0 {offsets = [0, 0], sizes = [8, 16], strides = [1, 1]} : vector<8x128xf32> to vector<8x16xf32>
    %cst = arith.constant dense<0.000000e+00> : vector<8x128xf32>
    %5 = tpu.matmul %4, %1, %cst {dimension_numbers = #tpu.dot_dimension_numbers<[1], [0], [0], [1], [0, 0, 1, 1], [], []>} : vector<8x16xf32>, vector<16x128xf32>, vector<8x128xf32> -> vector<8x128xf32>
    %6 = vector.broadcast %3 : vector<1x128xf32> to vector<8x128xf32>
    %7 = arith.addf %5, %6 : vector<8x128xf32>
    %8 = vector.extract_strided_slice %0 {offsets = [0, 16], sizes = [8, 16], strides = [1, 1]} : vector<8x128xf32> to vector<8x16xf32>
    %cst_7 = arith.constant dense<0.000000e+00> : vector<8x128xf32>
    %9 = tpu.matmul %8, %1, %cst_7 {dimension_numbers = #tpu.dot_dimension_numbers<[1], [0], [0], [1], [0, 0, 1, 1], [], []>} : vector<8x16xf32>, vector<16x128xf32>, vector<8x128xf32> -> vector<8x128xf32>
    %10 = vector.broadcast %3 : vector<1x128xf32> to vector<8x128xf32>
    %11 = arith.addf %9, %10 : vector<8x128xf32>
    %12 = vector.extract_strided_slice %0 {offsets = [0, 32], sizes = [8, 16], strides = [1, 1]} : vector<8x128xf32> to vector<8x16xf32>
    %cst_8 = arith.constant dense<0.000000e+00> : vector<8x128xf32>
    %13 = tpu.matmul %12, %1, %cst_8 {dimension_numbers = #tpu.dot_dimension_numbers<[1], [0], [0], [1], [0, 0, 1, 1], [], []>} : vector<8x16xf32>, vector<16x128xf32>, vector<8x128xf32> -> vector<8x128xf32>
    %14 = vector.broadcast %3 : vector<1x128xf32> to vector<8x128xf32>
    %15 = arith.addf %13, %14 : vector<8x128xf32>
    %16 = vector.extract_strided_slice %0 {offsets = [0, 48], sizes = [8, 16], strides = [1, 1]} : vector<8x128xf32> to vector<8x16xf32>
    %cst_9 = arith.constant dense<0.000000e+00> : vector<8x128xf32>
    %17 = tpu.matmul %16, %1, %cst_9 {dimension_numbers = #tpu.dot_dimension_numbers<[1], [0], [0], [1], [0, 0, 1, 1], [], []>} : vector<8x16xf32>, vector<16x128xf32>, vector<8x128xf32> -> vector<8x128xf32>
    %18 = vector.broadcast %3 : vector<1x128xf32> to vector<8x128xf32>
    %19 = arith.addf %17, %18 : vector<8x128xf32>
    %20 = vector.extract_strided_slice %0 {offsets = [0, 64], sizes = [8, 16], strides = [1, 1]} : vector<8x128xf32> to vector<8x16xf32>
    %cst_10 = arith.constant dense<0.000000e+00> : vector<8x128xf32>
    %21 = tpu.matmul %20, %1, %cst_10 {dimension_numbers = #tpu.dot_dimension_numbers<[1], [0], [0], [1], [0, 0, 1, 1], [], []>} : vector<8x16xf32>, vector<16x128xf32>, vector<8x128xf32> -> vector<8x128xf32>
    %22 = vector.broadcast %3 : vector<1x128xf32> to vector<8x128xf32>
    %23 = arith.addf %21, %22 : vector<8x128xf32>
    %24 = vector.extract_strided_slice %0 {offsets = [0, 80], sizes = [8, 16], strides = [1, 1]} : vector<8x128xf32> to vector<8x16xf32>
    %cst_11 = arith.constant dense<0.000000e+00> : vector<8x128xf32>
    %25 = tpu.matmul %24, %1, %cst_11 {dimension_numbers = #tpu.dot_dimension_numbers<[1], [0], [0], [1], [0, 0, 1, 1], [], []>} : vector<8x16xf32>, vector<16x128xf32>, vector<8x128xf32> -> vector<8x128xf32>
    %26 = vector.broadcast %3 : vector<1x128xf32> to vector<8x128xf32>
    %27 = arith.addf %25, %26 : vector<8x128xf32>
    %28 = vector.extract_strided_slice %0 {offsets = [0, 96], sizes = [8, 16], strides = [1, 1]} : vector<8x128xf32> to vector<8x16xf32>
    %cst_12 = arith.constant dense<0.000000e+00> : vector<8x128xf32>
    %29 = tpu.matmul %28, %1, %cst_12 {dimension_numbers = #tpu.dot_dimension_numbers<[1], [0], [0], [1], [0, 0, 1, 1], [], []>} : vector<8x16xf32>, vector<16x128xf32>, vector<8x128xf32> -> vector<8x128xf32>
    %30 = vector.broadcast %3 : vector<1x128xf32> to vector<8x128xf32>
    %31 = arith.addf %29, %30 : vector<8x128xf32>
    %32 = vector.extract_strided_slice %0 {offsets = [0, 112], sizes = [8, 16], strides = [1, 1]} : vector<8x128xf32> to vector<8x16xf32>
    %cst_13 = arith.constant dense<0.000000e+00> : vector<8x128xf32>
    %33 = tpu.matmul %32, %1, %cst_13 {dimension_numbers = #tpu.dot_dimension_numbers<[1], [0], [0], [1], [0, 0, 1, 1], [], []>} : vector<8x16xf32>, vector<16x128xf32>, vector<8x128xf32> -> vector<8x128xf32>
    %34 = vector.broadcast %3 : vector<1x128xf32> to vector<8x128xf32>
    %35 = arith.addf %33, %34 : vector<8x128xf32>
    %cst_14 = arith.constant 0.000000e+00 : f32
    %36 = vector.broadcast %cst_14 : f32 to vector<8x32xf32>
    %cst_15 = arith.constant 0.000000e+00 : f32
    %37 = vector.broadcast %cst_15 : f32 to vector<8x32xf32>
    %cst_16 = arith.constant dense<0.000000e+00> : vector<8x128xf32>
    %38 = tpu.matmul %36, %2, %cst_16 {dimension_numbers = #tpu.dot_dimension_numbers<[1], [0], [0], [1], [0, 0, 1, 1], [], []>} : vector<8x32xf32>, vector<32x128xf32>, vector<8x128xf32> -> vector<8x128xf32>
    %39 = arith.addf %7, %38 : vector<8x128xf32>
    %40 = arith.negf %39 : vector<8x128xf32>
    %41 = math.exp %40 : vector<8x128xf32>
    %cst_17 = arith.constant 1.000000e+00 : f32
    %42 = vector.broadcast %cst_17 : f32 to vector<8x128xf32>
    %43 = arith.addf %42, %41 : vector<8x128xf32>
    %44 = arith.divf %42, %43 : vector<8x128xf32>
    %45 = math.tanh %39 : vector<8x128xf32>
    %46 = vector.extract_strided_slice %44 {offsets = [0, 0], sizes = [8, 32], strides = [1, 1]} : vector<8x128xf32> to vector<8x32xf32>
    %47 = vector.extract_strided_slice %44 {offsets = [0, 32], sizes = [8, 32], strides = [1, 1]} : vector<8x128xf32> to vector<8x32xf32>
    %48 = vector.extract_strided_slice %45 {offsets = [0, 64], sizes = [8, 32], strides = [1, 1]} : vector<8x128xf32> to vector<8x32xf32>
    %49 = vector.extract_strided_slice %44 {offsets = [0, 96], sizes = [8, 32], strides = [1, 1]} : vector<8x128xf32> to vector<8x32xf32>
    %50 = arith.mulf %47, %37 : vector<8x32xf32>
    %51 = arith.mulf %46, %48 : vector<8x32xf32>
    %52 = arith.addf %50, %51 : vector<8x32xf32>
    %53 = math.tanh %52 : vector<8x32xf32>
    %54 = arith.mulf %49, %53 : vector<8x32xf32>
    %cst_18 = arith.constant dense<0.000000e+00> : vector<8x128xf32>
    %55 = tpu.matmul %54, %2, %cst_18 {dimension_numbers = #tpu.dot_dimension_numbers<[1], [0], [0], [1], [0, 0, 1, 1], [], []>} : vector<8x32xf32>, vector<32x128xf32>, vector<8x128xf32> -> vector<8x128xf32>
    %56 = arith.addf %11, %55 : vector<8x128xf32>
    %57 = arith.negf %56 : vector<8x128xf32>
    %58 = math.exp %57 : vector<8x128xf32>
    %cst_19 = arith.constant 1.000000e+00 : f32
    %59 = vector.broadcast %cst_19 : f32 to vector<8x128xf32>
    %60 = arith.addf %59, %58 : vector<8x128xf32>
    %61 = arith.divf %59, %60 : vector<8x128xf32>
    %62 = math.tanh %56 : vector<8x128xf32>
    %63 = vector.extract_strided_slice %61 {offsets = [0, 0], sizes = [8, 32], strides = [1, 1]} : vector<8x128xf32> to vector<8x32xf32>
    %64 = vector.extract_strided_slice %61 {offsets = [0, 32], sizes = [8, 32], strides = [1, 1]} : vector<8x128xf32> to vector<8x32xf32>
    %65 = vector.extract_strided_slice %62 {offsets = [0, 64], sizes = [8, 32], strides = [1, 1]} : vector<8x128xf32> to vector<8x32xf32>
    %66 = vector.extract_strided_slice %61 {offsets = [0, 96], sizes = [8, 32], strides = [1, 1]} : vector<8x128xf32> to vector<8x32xf32>
    %67 = arith.mulf %64, %52 : vector<8x32xf32>
    %68 = arith.mulf %63, %65 : vector<8x32xf32>
    %69 = arith.addf %67, %68 : vector<8x32xf32>
    %70 = math.tanh %69 : vector<8x32xf32>
    %71 = arith.mulf %66, %70 : vector<8x32xf32>
    %cst_20 = arith.constant dense<0.000000e+00> : vector<8x128xf32>
    %72 = tpu.matmul %71, %2, %cst_20 {dimension_numbers = #tpu.dot_dimension_numbers<[1], [0], [0], [1], [0, 0, 1, 1], [], []>} : vector<8x32xf32>, vector<32x128xf32>, vector<8x128xf32> -> vector<8x128xf32>
    %73 = arith.addf %15, %72 : vector<8x128xf32>
    %74 = arith.negf %73 : vector<8x128xf32>
    %75 = math.exp %74 : vector<8x128xf32>
    %cst_21 = arith.constant 1.000000e+00 : f32
    %76 = vector.broadcast %cst_21 : f32 to vector<8x128xf32>
    %77 = arith.addf %76, %75 : vector<8x128xf32>
    %78 = arith.divf %76, %77 : vector<8x128xf32>
    %79 = math.tanh %73 : vector<8x128xf32>
    %80 = vector.extract_strided_slice %78 {offsets = [0, 0], sizes = [8, 32], strides = [1, 1]} : vector<8x128xf32> to vector<8x32xf32>
    %81 = vector.extract_strided_slice %78 {offsets = [0, 32], sizes = [8, 32], strides = [1, 1]} : vector<8x128xf32> to vector<8x32xf32>
    %82 = vector.extract_strided_slice %79 {offsets = [0, 64], sizes = [8, 32], strides = [1, 1]} : vector<8x128xf32> to vector<8x32xf32>
    %83 = vector.extract_strided_slice %78 {offsets = [0, 96], sizes = [8, 32], strides = [1, 1]} : vector<8x128xf32> to vector<8x32xf32>
    %84 = arith.mulf %81, %69 : vector<8x32xf32>
    %85 = arith.mulf %80, %82 : vector<8x32xf32>
    %86 = arith.addf %84, %85 : vector<8x32xf32>
    %87 = math.tanh %86 : vector<8x32xf32>
    %88 = arith.mulf %83, %87 : vector<8x32xf32>
    %cst_22 = arith.constant dense<0.000000e+00> : vector<8x128xf32>
    %89 = tpu.matmul %88, %2, %cst_22 {dimension_numbers = #tpu.dot_dimension_numbers<[1], [0], [0], [1], [0, 0, 1, 1], [], []>} : vector<8x32xf32>, vector<32x128xf32>, vector<8x128xf32> -> vector<8x128xf32>
    %90 = arith.addf %19, %89 : vector<8x128xf32>
    %91 = arith.negf %90 : vector<8x128xf32>
    %92 = math.exp %91 : vector<8x128xf32>
    %cst_23 = arith.constant 1.000000e+00 : f32
    %93 = vector.broadcast %cst_23 : f32 to vector<8x128xf32>
    %94 = arith.addf %93, %92 : vector<8x128xf32>
    %95 = arith.divf %93, %94 : vector<8x128xf32>
    %96 = math.tanh %90 : vector<8x128xf32>
    %97 = vector.extract_strided_slice %95 {offsets = [0, 0], sizes = [8, 32], strides = [1, 1]} : vector<8x128xf32> to vector<8x32xf32>
    %98 = vector.extract_strided_slice %95 {offsets = [0, 32], sizes = [8, 32], strides = [1, 1]} : vector<8x128xf32> to vector<8x32xf32>
    %99 = vector.extract_strided_slice %96 {offsets = [0, 64], sizes = [8, 32], strides = [1, 1]} : vector<8x128xf32> to vector<8x32xf32>
    %100 = vector.extract_strided_slice %95 {offsets = [0, 96], sizes = [8, 32], strides = [1, 1]} : vector<8x128xf32> to vector<8x32xf32>
    %101 = arith.mulf %98, %86 : vector<8x32xf32>
    %102 = arith.mulf %97, %99 : vector<8x32xf32>
    %103 = arith.addf %101, %102 : vector<8x32xf32>
    %104 = math.tanh %103 : vector<8x32xf32>
    %105 = arith.mulf %100, %104 : vector<8x32xf32>
    %cst_24 = arith.constant dense<0.000000e+00> : vector<8x128xf32>
    %106 = tpu.matmul %105, %2, %cst_24 {dimension_numbers = #tpu.dot_dimension_numbers<[1], [0], [0], [1], [0, 0, 1, 1], [], []>} : vector<8x32xf32>, vector<32x128xf32>, vector<8x128xf32> -> vector<8x128xf32>
    %107 = arith.addf %23, %106 : vector<8x128xf32>
    %108 = arith.negf %107 : vector<8x128xf32>
    %109 = math.exp %108 : vector<8x128xf32>
    %cst_25 = arith.constant 1.000000e+00 : f32
    %110 = vector.broadcast %cst_25 : f32 to vector<8x128xf32>
    %111 = arith.addf %110, %109 : vector<8x128xf32>
    %112 = arith.divf %110, %111 : vector<8x128xf32>
    %113 = math.tanh %107 : vector<8x128xf32>
    %114 = vector.extract_strided_slice %112 {offsets = [0, 0], sizes = [8, 32], strides = [1, 1]} : vector<8x128xf32> to vector<8x32xf32>
    %115 = vector.extract_strided_slice %112 {offsets = [0, 32], sizes = [8, 32], strides = [1, 1]} : vector<8x128xf32> to vector<8x32xf32>
    %116 = vector.extract_strided_slice %113 {offsets = [0, 64], sizes = [8, 32], strides = [1, 1]} : vector<8x128xf32> to vector<8x32xf32>
    %117 = vector.extract_strided_slice %112 {offsets = [0, 96], sizes = [8, 32], strides = [1, 1]} : vector<8x128xf32> to vector<8x32xf32>
    %118 = arith.mulf %115, %103 : vector<8x32xf32>
    %119 = arith.mulf %114, %116 : vector<8x32xf32>
    %120 = arith.addf %118, %119 : vector<8x32xf32>
    %121 = math.tanh %120 : vector<8x32xf32>
    %122 = arith.mulf %117, %121 : vector<8x32xf32>
    %cst_26 = arith.constant dense<0.000000e+00> : vector<8x128xf32>
    %123 = tpu.matmul %122, %2, %cst_26 {dimension_numbers = #tpu.dot_dimension_numbers<[1], [0], [0], [1], [0, 0, 1, 1], [], []>} : vector<8x32xf32>, vector<32x128xf32>, vector<8x128xf32> -> vector<8x128xf32>
    %124 = arith.addf %27, %123 : vector<8x128xf32>
    %125 = arith.negf %124 : vector<8x128xf32>
    %126 = math.exp %125 : vector<8x128xf32>
    %cst_27 = arith.constant 1.000000e+00 : f32
    %127 = vector.broadcast %cst_27 : f32 to vector<8x128xf32>
    %128 = arith.addf %127, %126 : vector<8x128xf32>
    %129 = arith.divf %127, %128 : vector<8x128xf32>
    %130 = math.tanh %124 : vector<8x128xf32>
    %131 = vector.extract_strided_slice %129 {offsets = [0, 0], sizes = [8, 32], strides = [1, 1]} : vector<8x128xf32> to vector<8x32xf32>
    %132 = vector.extract_strided_slice %129 {offsets = [0, 32], sizes = [8, 32], strides = [1, 1]} : vector<8x128xf32> to vector<8x32xf32>
    %133 = vector.extract_strided_slice %130 {offsets = [0, 64], sizes = [8, 32], strides = [1, 1]} : vector<8x128xf32> to vector<8x32xf32>
    %134 = vector.extract_strided_slice %129 {offsets = [0, 96], sizes = [8, 32], strides = [1, 1]} : vector<8x128xf32> to vector<8x32xf32>
    %135 = arith.mulf %132, %120 : vector<8x32xf32>
    %136 = arith.mulf %131, %133 : vector<8x32xf32>
    %137 = arith.addf %135, %136 : vector<8x32xf32>
    %138 = math.tanh %137 : vector<8x32xf32>
    %139 = arith.mulf %134, %138 : vector<8x32xf32>
    %cst_28 = arith.constant dense<0.000000e+00> : vector<8x128xf32>
    %140 = tpu.matmul %139, %2, %cst_28 {dimension_numbers = #tpu.dot_dimension_numbers<[1], [0], [0], [1], [0, 0, 1, 1], [], []>} : vector<8x32xf32>, vector<32x128xf32>, vector<8x128xf32> -> vector<8x128xf32>
    %141 = arith.addf %31, %140 : vector<8x128xf32>
    %142 = arith.negf %141 : vector<8x128xf32>
    %143 = math.exp %142 : vector<8x128xf32>
    %cst_29 = arith.constant 1.000000e+00 : f32
    %144 = vector.broadcast %cst_29 : f32 to vector<8x128xf32>
    %145 = arith.addf %144, %143 : vector<8x128xf32>
    %146 = arith.divf %144, %145 : vector<8x128xf32>
    %147 = math.tanh %141 : vector<8x128xf32>
    %148 = vector.extract_strided_slice %146 {offsets = [0, 0], sizes = [8, 32], strides = [1, 1]} : vector<8x128xf32> to vector<8x32xf32>
    %149 = vector.extract_strided_slice %146 {offsets = [0, 32], sizes = [8, 32], strides = [1, 1]} : vector<8x128xf32> to vector<8x32xf32>
    %150 = vector.extract_strided_slice %147 {offsets = [0, 64], sizes = [8, 32], strides = [1, 1]} : vector<8x128xf32> to vector<8x32xf32>
    %151 = vector.extract_strided_slice %146 {offsets = [0, 96], sizes = [8, 32], strides = [1, 1]} : vector<8x128xf32> to vector<8x32xf32>
    %152 = arith.mulf %149, %137 : vector<8x32xf32>
    %153 = arith.mulf %148, %150 : vector<8x32xf32>
    %154 = arith.addf %152, %153 : vector<8x32xf32>
    %155 = math.tanh %154 : vector<8x32xf32>
    %156 = arith.mulf %151, %155 : vector<8x32xf32>
    %cst_30 = arith.constant dense<0.000000e+00> : vector<8x128xf32>
    %157 = tpu.matmul %156, %2, %cst_30 {dimension_numbers = #tpu.dot_dimension_numbers<[1], [0], [0], [1], [0, 0, 1, 1], [], []>} : vector<8x32xf32>, vector<32x128xf32>, vector<8x128xf32> -> vector<8x128xf32>
    %158 = arith.addf %35, %157 : vector<8x128xf32>
    %159 = arith.negf %158 : vector<8x128xf32>
    %160 = math.exp %159 : vector<8x128xf32>
    %cst_31 = arith.constant 1.000000e+00 : f32
    %161 = vector.broadcast %cst_31 : f32 to vector<8x128xf32>
    %162 = arith.addf %161, %160 : vector<8x128xf32>
    %163 = arith.divf %161, %162 : vector<8x128xf32>
    %164 = math.tanh %158 : vector<8x128xf32>
    %165 = vector.extract_strided_slice %163 {offsets = [0, 0], sizes = [8, 32], strides = [1, 1]} : vector<8x128xf32> to vector<8x32xf32>
    %166 = vector.extract_strided_slice %163 {offsets = [0, 32], sizes = [8, 32], strides = [1, 1]} : vector<8x128xf32> to vector<8x32xf32>
    %167 = vector.extract_strided_slice %164 {offsets = [0, 64], sizes = [8, 32], strides = [1, 1]} : vector<8x128xf32> to vector<8x32xf32>
    %168 = vector.extract_strided_slice %163 {offsets = [0, 96], sizes = [8, 32], strides = [1, 1]} : vector<8x128xf32> to vector<8x32xf32>
    %169 = arith.mulf %166, %154 : vector<8x32xf32>
    %170 = arith.mulf %165, %167 : vector<8x32xf32>
    %171 = arith.addf %169, %170 : vector<8x32xf32>
    %172 = math.tanh %171 : vector<8x32xf32>
    %173 = arith.mulf %168, %172 : vector<8x32xf32>
    %c0_32 = arith.constant 0 : index
    %c0_33 = arith.constant 0 : index
    %174 = vector.load %arg4[%c0_32, %c0_33] : memref<32x128xf32, #tpu.memory_space<vmem>>, vector<32x128xf32>
    %c0_34 = arith.constant 0 : index
    %c0_35 = arith.constant 0 : index
    %175 = vector.load %arg5[%c0_34, %c0_35] : memref<32x128xf32, #tpu.memory_space<vmem>>, vector<32x128xf32>
    %c0_36 = arith.constant 0 : index
    %c0_37 = arith.constant 0 : index
    %176 = vector.load %arg6[%c0_36, %c0_37] : memref<1x128xf32, #tpu.memory_space<vmem>>, vector<1x128xf32>
    %cst_38 = arith.constant dense<0.000000e+00> : vector<8x128xf32>
    %177 = tpu.matmul %54, %174, %cst_38 {dimension_numbers = #tpu.dot_dimension_numbers<[1], [0], [0], [1], [0, 0, 1, 1], [], []>} : vector<8x32xf32>, vector<32x128xf32>, vector<8x128xf32> -> vector<8x128xf32>
    %178 = vector.broadcast %176 : vector<1x128xf32> to vector<8x128xf32>
    %179 = arith.addf %177, %178 : vector<8x128xf32>
    %cst_39 = arith.constant dense<0.000000e+00> : vector<8x128xf32>
    %180 = tpu.matmul %71, %174, %cst_39 {dimension_numbers = #tpu.dot_dimension_numbers<[1], [0], [0], [1], [0, 0, 1, 1], [], []>} : vector<8x32xf32>, vector<32x128xf32>, vector<8x128xf32> -> vector<8x128xf32>
    %181 = vector.broadcast %176 : vector<1x128xf32> to vector<8x128xf32>
    %182 = arith.addf %180, %181 : vector<8x128xf32>
    %cst_40 = arith.constant dense<0.000000e+00> : vector<8x128xf32>
    %183 = tpu.matmul %88, %174, %cst_40 {dimension_numbers = #tpu.dot_dimension_numbers<[1], [0], [0], [1], [0, 0, 1, 1], [], []>} : vector<8x32xf32>, vector<32x128xf32>, vector<8x128xf32> -> vector<8x128xf32>
    %184 = vector.broadcast %176 : vector<1x128xf32> to vector<8x128xf32>
    %185 = arith.addf %183, %184 : vector<8x128xf32>
    %cst_41 = arith.constant dense<0.000000e+00> : vector<8x128xf32>
    %186 = tpu.matmul %105, %174, %cst_41 {dimension_numbers = #tpu.dot_dimension_numbers<[1], [0], [0], [1], [0, 0, 1, 1], [], []>} : vector<8x32xf32>, vector<32x128xf32>, vector<8x128xf32> -> vector<8x128xf32>
    %187 = vector.broadcast %176 : vector<1x128xf32> to vector<8x128xf32>
    %188 = arith.addf %186, %187 : vector<8x128xf32>
    %cst_42 = arith.constant dense<0.000000e+00> : vector<8x128xf32>
    %189 = tpu.matmul %122, %174, %cst_42 {dimension_numbers = #tpu.dot_dimension_numbers<[1], [0], [0], [1], [0, 0, 1, 1], [], []>} : vector<8x32xf32>, vector<32x128xf32>, vector<8x128xf32> -> vector<8x128xf32>
    %190 = vector.broadcast %176 : vector<1x128xf32> to vector<8x128xf32>
    %191 = arith.addf %189, %190 : vector<8x128xf32>
    %cst_43 = arith.constant dense<0.000000e+00> : vector<8x128xf32>
    %192 = tpu.matmul %139, %174, %cst_43 {dimension_numbers = #tpu.dot_dimension_numbers<[1], [0], [0], [1], [0, 0, 1, 1], [], []>} : vector<8x32xf32>, vector<32x128xf32>, vector<8x128xf32> -> vector<8x128xf32>
    %193 = vector.broadcast %176 : vector<1x128xf32> to vector<8x128xf32>
    %194 = arith.addf %192, %193 : vector<8x128xf32>
    %cst_44 = arith.constant dense<0.000000e+00> : vector<8x128xf32>
    %195 = tpu.matmul %156, %174, %cst_44 {dimension_numbers = #tpu.dot_dimension_numbers<[1], [0], [0], [1], [0, 0, 1, 1], [], []>} : vector<8x32xf32>, vector<32x128xf32>, vector<8x128xf32> -> vector<8x128xf32>
    %196 = vector.broadcast %176 : vector<1x128xf32> to vector<8x128xf32>
    %197 = arith.addf %195, %196 : vector<8x128xf32>
    %cst_45 = arith.constant dense<0.000000e+00> : vector<8x128xf32>
    %198 = tpu.matmul %173, %174, %cst_45 {dimension_numbers = #tpu.dot_dimension_numbers<[1], [0], [0], [1], [0, 0, 1, 1], [], []>} : vector<8x32xf32>, vector<32x128xf32>, vector<8x128xf32> -> vector<8x128xf32>
    %199 = vector.broadcast %176 : vector<1x128xf32> to vector<8x128xf32>
    %200 = arith.addf %198, %199 : vector<8x128xf32>
    %cst_46 = arith.constant 0.000000e+00 : f32
    %201 = vector.broadcast %cst_46 : f32 to vector<8x32xf32>
    %cst_47 = arith.constant 0.000000e+00 : f32
    %202 = vector.broadcast %cst_47 : f32 to vector<8x32xf32>
    %cst_48 = arith.constant dense<0.000000e+00> : vector<8x128xf32>
    %203 = tpu.matmul %201, %175, %cst_48 {dimension_numbers = #tpu.dot_dimension_numbers<[1], [0], [0], [1], [0, 0, 1, 1], [], []>} : vector<8x32xf32>, vector<32x128xf32>, vector<8x128xf32> -> vector<8x128xf32>
    %204 = arith.addf %179, %203 : vector<8x128xf32>
    %205 = arith.negf %204 : vector<8x128xf32>
    %206 = math.exp %205 : vector<8x128xf32>
    %cst_49 = arith.constant 1.000000e+00 : f32
    %207 = vector.broadcast %cst_49 : f32 to vector<8x128xf32>
    %208 = arith.addf %207, %206 : vector<8x128xf32>
    %209 = arith.divf %207, %208 : vector<8x128xf32>
    %210 = math.tanh %204 : vector<8x128xf32>
    %211 = vector.extract_strided_slice %209 {offsets = [0, 0], sizes = [8, 32], strides = [1, 1]} : vector<8x128xf32> to vector<8x32xf32>
    %212 = vector.extract_strided_slice %209 {offsets = [0, 32], sizes = [8, 32], strides = [1, 1]} : vector<8x128xf32> to vector<8x32xf32>
    %213 = vector.extract_strided_slice %210 {offsets = [0, 64], sizes = [8, 32], strides = [1, 1]} : vector<8x128xf32> to vector<8x32xf32>
    %214 = vector.extract_strided_slice %209 {offsets = [0, 96], sizes = [8, 32], strides = [1, 1]} : vector<8x128xf32> to vector<8x32xf32>
    %215 = arith.mulf %212, %202 : vector<8x32xf32>
    %216 = arith.mulf %211, %213 : vector<8x32xf32>
    %217 = arith.addf %215, %216 : vector<8x32xf32>
    %218 = math.tanh %217 : vector<8x32xf32>
    %219 = arith.mulf %214, %218 : vector<8x32xf32>
    %cst_50 = arith.constant dense<0.000000e+00> : vector<8x128xf32>
    %220 = tpu.matmul %219, %175, %cst_50 {dimension_numbers = #tpu.dot_dimension_numbers<[1], [0], [0], [1], [0, 0, 1, 1], [], []>} : vector<8x32xf32>, vector<32x128xf32>, vector<8x128xf32> -> vector<8x128xf32>
    %221 = arith.addf %182, %220 : vector<8x128xf32>
    %222 = arith.negf %221 : vector<8x128xf32>
    %223 = math.exp %222 : vector<8x128xf32>
    %cst_51 = arith.constant 1.000000e+00 : f32
    %224 = vector.broadcast %cst_51 : f32 to vector<8x128xf32>
    %225 = arith.addf %224, %223 : vector<8x128xf32>
    %226 = arith.divf %224, %225 : vector<8x128xf32>
    %227 = math.tanh %221 : vector<8x128xf32>
    %228 = vector.extract_strided_slice %226 {offsets = [0, 0], sizes = [8, 32], strides = [1, 1]} : vector<8x128xf32> to vector<8x32xf32>
    %229 = vector.extract_strided_slice %226 {offsets = [0, 32], sizes = [8, 32], strides = [1, 1]} : vector<8x128xf32> to vector<8x32xf32>
    %230 = vector.extract_strided_slice %227 {offsets = [0, 64], sizes = [8, 32], strides = [1, 1]} : vector<8x128xf32> to vector<8x32xf32>
    %231 = vector.extract_strided_slice %226 {offsets = [0, 96], sizes = [8, 32], strides = [1, 1]} : vector<8x128xf32> to vector<8x32xf32>
    %232 = arith.mulf %229, %217 : vector<8x32xf32>
    %233 = arith.mulf %228, %230 : vector<8x32xf32>
    %234 = arith.addf %232, %233 : vector<8x32xf32>
    %235 = math.tanh %234 : vector<8x32xf32>
    %236 = arith.mulf %231, %235 : vector<8x32xf32>
    %cst_52 = arith.constant dense<0.000000e+00> : vector<8x128xf32>
    %237 = tpu.matmul %236, %175, %cst_52 {dimension_numbers = #tpu.dot_dimension_numbers<[1], [0], [0], [1], [0, 0, 1, 1], [], []>} : vector<8x32xf32>, vector<32x128xf32>, vector<8x128xf32> -> vector<8x128xf32>
    %238 = arith.addf %185, %237 : vector<8x128xf32>
    %239 = arith.negf %238 : vector<8x128xf32>
    %240 = math.exp %239 : vector<8x128xf32>
    %cst_53 = arith.constant 1.000000e+00 : f32
    %241 = vector.broadcast %cst_53 : f32 to vector<8x128xf32>
    %242 = arith.addf %241, %240 : vector<8x128xf32>
    %243 = arith.divf %241, %242 : vector<8x128xf32>
    %244 = math.tanh %238 : vector<8x128xf32>
    %245 = vector.extract_strided_slice %243 {offsets = [0, 0], sizes = [8, 32], strides = [1, 1]} : vector<8x128xf32> to vector<8x32xf32>
    %246 = vector.extract_strided_slice %243 {offsets = [0, 32], sizes = [8, 32], strides = [1, 1]} : vector<8x128xf32> to vector<8x32xf32>
    %247 = vector.extract_strided_slice %244 {offsets = [0, 64], sizes = [8, 32], strides = [1, 1]} : vector<8x128xf32> to vector<8x32xf32>
    %248 = vector.extract_strided_slice %243 {offsets = [0, 96], sizes = [8, 32], strides = [1, 1]} : vector<8x128xf32> to vector<8x32xf32>
    %249 = arith.mulf %246, %234 : vector<8x32xf32>
    %250 = arith.mulf %245, %247 : vector<8x32xf32>
    %251 = arith.addf %249, %250 : vector<8x32xf32>
    %252 = math.tanh %251 : vector<8x32xf32>
    %253 = arith.mulf %248, %252 : vector<8x32xf32>
    %cst_54 = arith.constant dense<0.000000e+00> : vector<8x128xf32>
    %254 = tpu.matmul %253, %175, %cst_54 {dimension_numbers = #tpu.dot_dimension_numbers<[1], [0], [0], [1], [0, 0, 1, 1], [], []>} : vector<8x32xf32>, vector<32x128xf32>, vector<8x128xf32> -> vector<8x128xf32>
    %255 = arith.addf %188, %254 : vector<8x128xf32>
    %256 = arith.negf %255 : vector<8x128xf32>
    %257 = math.exp %256 : vector<8x128xf32>
    %cst_55 = arith.constant 1.000000e+00 : f32
    %258 = vector.broadcast %cst_55 : f32 to vector<8x128xf32>
    %259 = arith.addf %258, %257 : vector<8x128xf32>
    %260 = arith.divf %258, %259 : vector<8x128xf32>
    %261 = math.tanh %255 : vector<8x128xf32>
    %262 = vector.extract_strided_slice %260 {offsets = [0, 0], sizes = [8, 32], strides = [1, 1]} : vector<8x128xf32> to vector<8x32xf32>
    %263 = vector.extract_strided_slice %260 {offsets = [0, 32], sizes = [8, 32], strides = [1, 1]} : vector<8x128xf32> to vector<8x32xf32>
    %264 = vector.extract_strided_slice %261 {offsets = [0, 64], sizes = [8, 32], strides = [1, 1]} : vector<8x128xf32> to vector<8x32xf32>
    %265 = vector.extract_strided_slice %260 {offsets = [0, 96], sizes = [8, 32], strides = [1, 1]} : vector<8x128xf32> to vector<8x32xf32>
    %266 = arith.mulf %263, %251 : vector<8x32xf32>
    %267 = arith.mulf %262, %264 : vector<8x32xf32>
    %268 = arith.addf %266, %267 : vector<8x32xf32>
    %269 = math.tanh %268 : vector<8x32xf32>
    %270 = arith.mulf %265, %269 : vector<8x32xf32>
    %cst_56 = arith.constant dense<0.000000e+00> : vector<8x128xf32>
    %271 = tpu.matmul %270, %175, %cst_56 {dimension_numbers = #tpu.dot_dimension_numbers<[1], [0], [0], [1], [0, 0, 1, 1], [], []>} : vector<8x32xf32>, vector<32x128xf32>, vector<8x128xf32> -> vector<8x128xf32>
    %272 = arith.addf %191, %271 : vector<8x128xf32>
    %273 = arith.negf %272 : vector<8x128xf32>
    %274 = math.exp %273 : vector<8x128xf32>
    %cst_57 = arith.constant 1.000000e+00 : f32
    %275 = vector.broadcast %cst_57 : f32 to vector<8x128xf32>
    %276 = arith.addf %275, %274 : vector<8x128xf32>
    %277 = arith.divf %275, %276 : vector<8x128xf32>
    %278 = math.tanh %272 : vector<8x128xf32>
    %279 = vector.extract_strided_slice %277 {offsets = [0, 0], sizes = [8, 32], strides = [1, 1]} : vector<8x128xf32> to vector<8x32xf32>
    %280 = vector.extract_strided_slice %277 {offsets = [0, 32], sizes = [8, 32], strides = [1, 1]} : vector<8x128xf32> to vector<8x32xf32>
    %281 = vector.extract_strided_slice %278 {offsets = [0, 64], sizes = [8, 32], strides = [1, 1]} : vector<8x128xf32> to vector<8x32xf32>
    %282 = vector.extract_strided_slice %277 {offsets = [0, 96], sizes = [8, 32], strides = [1, 1]} : vector<8x128xf32> to vector<8x32xf32>
    %283 = arith.mulf %280, %268 : vector<8x32xf32>
    %284 = arith.mulf %279, %281 : vector<8x32xf32>
    %285 = arith.addf %283, %284 : vector<8x32xf32>
    %286 = math.tanh %285 : vector<8x32xf32>
    %287 = arith.mulf %282, %286 : vector<8x32xf32>
    %cst_58 = arith.constant dense<0.000000e+00> : vector<8x128xf32>
    %288 = tpu.matmul %287, %175, %cst_58 {dimension_numbers = #tpu.dot_dimension_numbers<[1], [0], [0], [1], [0, 0, 1, 1], [], []>} : vector<8x32xf32>, vector<32x128xf32>, vector<8x128xf32> -> vector<8x128xf32>
    %289 = arith.addf %194, %288 : vector<8x128xf32>
    %290 = arith.negf %289 : vector<8x128xf32>
    %291 = math.exp %290 : vector<8x128xf32>
    %cst_59 = arith.constant 1.000000e+00 : f32
    %292 = vector.broadcast %cst_59 : f32 to vector<8x128xf32>
    %293 = arith.addf %292, %291 : vector<8x128xf32>
    %294 = arith.divf %292, %293 : vector<8x128xf32>
    %295 = math.tanh %289 : vector<8x128xf32>
    %296 = vector.extract_strided_slice %294 {offsets = [0, 0], sizes = [8, 32], strides = [1, 1]} : vector<8x128xf32> to vector<8x32xf32>
    %297 = vector.extract_strided_slice %294 {offsets = [0, 32], sizes = [8, 32], strides = [1, 1]} : vector<8x128xf32> to vector<8x32xf32>
    %298 = vector.extract_strided_slice %295 {offsets = [0, 64], sizes = [8, 32], strides = [1, 1]} : vector<8x128xf32> to vector<8x32xf32>
    %299 = vector.extract_strided_slice %294 {offsets = [0, 96], sizes = [8, 32], strides = [1, 1]} : vector<8x128xf32> to vector<8x32xf32>
    %300 = arith.mulf %297, %285 : vector<8x32xf32>
    %301 = arith.mulf %296, %298 : vector<8x32xf32>
    %302 = arith.addf %300, %301 : vector<8x32xf32>
    %303 = math.tanh %302 : vector<8x32xf32>
    %304 = arith.mulf %299, %303 : vector<8x32xf32>
    %cst_60 = arith.constant dense<0.000000e+00> : vector<8x128xf32>
    %305 = tpu.matmul %304, %175, %cst_60 {dimension_numbers = #tpu.dot_dimension_numbers<[1], [0], [0], [1], [0, 0, 1, 1], [], []>} : vector<8x32xf32>, vector<32x128xf32>, vector<8x128xf32> -> vector<8x128xf32>
    %306 = arith.addf %197, %305 : vector<8x128xf32>
    %307 = arith.negf %306 : vector<8x128xf32>
    %308 = math.exp %307 : vector<8x128xf32>
    %cst_61 = arith.constant 1.000000e+00 : f32
    %309 = vector.broadcast %cst_61 : f32 to vector<8x128xf32>
    %310 = arith.addf %309, %308 : vector<8x128xf32>
    %311 = arith.divf %309, %310 : vector<8x128xf32>
    %312 = math.tanh %306 : vector<8x128xf32>
    %313 = vector.extract_strided_slice %311 {offsets = [0, 0], sizes = [8, 32], strides = [1, 1]} : vector<8x128xf32> to vector<8x32xf32>
    %314 = vector.extract_strided_slice %311 {offsets = [0, 32], sizes = [8, 32], strides = [1, 1]} : vector<8x128xf32> to vector<8x32xf32>
    %315 = vector.extract_strided_slice %312 {offsets = [0, 64], sizes = [8, 32], strides = [1, 1]} : vector<8x128xf32> to vector<8x32xf32>
    %316 = vector.extract_strided_slice %311 {offsets = [0, 96], sizes = [8, 32], strides = [1, 1]} : vector<8x128xf32> to vector<8x32xf32>
    %317 = arith.mulf %314, %302 : vector<8x32xf32>
    %318 = arith.mulf %313, %315 : vector<8x32xf32>
    %319 = arith.addf %317, %318 : vector<8x32xf32>
    %320 = math.tanh %319 : vector<8x32xf32>
    %321 = arith.mulf %316, %320 : vector<8x32xf32>
    %cst_62 = arith.constant dense<0.000000e+00> : vector<8x128xf32>
    %322 = tpu.matmul %321, %175, %cst_62 {dimension_numbers = #tpu.dot_dimension_numbers<[1], [0], [0], [1], [0, 0, 1, 1], [], []>} : vector<8x32xf32>, vector<32x128xf32>, vector<8x128xf32> -> vector<8x128xf32>
    %323 = arith.addf %200, %322 : vector<8x128xf32>
    %324 = arith.negf %323 : vector<8x128xf32>
    %325 = math.exp %324 : vector<8x128xf32>
    %cst_63 = arith.constant 1.000000e+00 : f32
    %326 = vector.broadcast %cst_63 : f32 to vector<8x128xf32>
    %327 = arith.addf %326, %325 : vector<8x128xf32>
    %328 = arith.divf %326, %327 : vector<8x128xf32>
    %329 = math.tanh %323 : vector<8x128xf32>
    %330 = vector.extract_strided_slice %328 {offsets = [0, 0], sizes = [8, 32], strides = [1, 1]} : vector<8x128xf32> to vector<8x32xf32>
    %331 = vector.extract_strided_slice %328 {offsets = [0, 32], sizes = [8, 32], strides = [1, 1]} : vector<8x128xf32> to vector<8x32xf32>
    %332 = vector.extract_strided_slice %329 {offsets = [0, 64], sizes = [8, 32], strides = [1, 1]} : vector<8x128xf32> to vector<8x32xf32>
    %333 = vector.extract_strided_slice %328 {offsets = [0, 96], sizes = [8, 32], strides = [1, 1]} : vector<8x128xf32> to vector<8x32xf32>
    %334 = arith.mulf %331, %319 : vector<8x32xf32>
    %335 = arith.mulf %330, %332 : vector<8x32xf32>
    %336 = arith.addf %334, %335 : vector<8x32xf32>
    %337 = math.tanh %336 : vector<8x32xf32>
    %338 = arith.mulf %333, %337 : vector<8x32xf32>
    %cst_64 = arith.constant 0.000000e+00 : f32
    %339 = vector.broadcast %cst_64 : f32 to vector<8x32xf32>
    %340 = arith.maximumf %338, %339 : vector<8x32xf32>
    %c0_65 = arith.constant 0 : index
    %c0_66 = arith.constant 0 : index
    %341 = vector.load %arg7[%c0_65, %c0_66] : memref<32x64xf32, #tpu.memory_space<vmem>>, vector<32x64xf32>
    %cst_67 = arith.constant dense<0.000000e+00> : vector<8x64xf32>
    %342 = tpu.matmul %340, %341, %cst_67 {dimension_numbers = #tpu.dot_dimension_numbers<[1], [0], [0], [1], [0, 0, 1, 1], [], []>} : vector<8x32xf32>, vector<32x64xf32>, vector<8x64xf32> -> vector<8x64xf32>
    %c0_68 = arith.constant 0 : index
    %c0_69 = arith.constant 0 : index
    %343 = vector.load %arg8[%c0_68, %c0_69] : memref<1x64xf32, #tpu.memory_space<vmem>>, vector<1x64xf32>
    %344 = vector.broadcast %343 : vector<1x64xf32> to vector<8x64xf32>
    %345 = arith.addf %342, %344 : vector<8x64xf32>
    %cst_70 = arith.constant 0.000000e+00 : f32
    %346 = vector.broadcast %cst_70 : f32 to vector<8x64xf32>
    %347 = arith.maximumf %345, %346 : vector<8x64xf32>
    %c0_71 = arith.constant 0 : index
    %c0_72 = arith.constant 0 : index
    %348 = vector.load %arg9[%c0_71, %c0_72] : memref<1x64xf32, #tpu.memory_space<vmem>>, vector<1x64xf32>
    %349 = vector.broadcast %348 : vector<1x64xf32> to vector<8x64xf32>
    %350 = arith.mulf %347, %349 : vector<8x64xf32>
    %cst_73 = arith.constant dense<0.000000e+00> : vector<8xf32>
    %351 = vector.multi_reduction <add>, %350, %cst_73 [1] : vector<8x64xf32> to vector<8xf32>
    %352 = vector.shape_cast %351 : vector<8xf32> to vector<8x1xf32>
    %c0_74 = arith.constant 0 : index
    %c0_75 = arith.constant 0 : index
    %353 = vector.load %arg10[%c0_74, %c0_75] : memref<1x1xf32, #tpu.memory_space<vmem>>, vector<1x1xf32>
    %354 = vector.broadcast %353 : vector<1x1xf32> to vector<8x1xf32>
    %355 = arith.addf %352, %354 : vector<8x1xf32>
    %356 = arith.negf %355 : vector<8x1xf32>
    %357 = math.exp %356 : vector<8x1xf32>
    %cst_76 = arith.constant 1.000000e+00 : f32
    %358 = vector.broadcast %cst_76 : f32 to vector<8x1xf32>
    %359 = arith.addf %358, %357 : vector<8x1xf32>
    %360 = arith.divf %358, %359 : vector<8x1xf32>
    %c0_77 = arith.constant 0 : index
    %c0_78 = arith.constant 0 : index
    %361 = vector.load %arg11[%c0_77, %c0_78] : memref<8x1xf32, #tpu.memory_space<vmem>>, vector<8x1xf32>
    tpu.vector_store %arg11[%c0_77, %c0_78], %360 {strides = array<i32>} : memref<8x1xf32, #tpu.memory_space<vmem>>, vector<8x1xf32>,
    return
  }
}

</mosaic_0001>

<llo_original>
// kernel: tpu_custom_call.1
$region0: #{tpu_custom_call.1}
  #allocation0 [shape = 'u32[]', space=smem, size = 0x4, offset = 0x4, fixed_abs, tag = 'smem constant byte address 0x4 - core index']
  #allocation1 [shape = 'u32[144,128]{1,0:T(1,128)}', space=vmem, size = 0x12000, scoped, tag = 'internal scratch']
  #allocation2 [shape = 'f32[1,1]{1,0:T(1,128)S(1)}', space=vmem, size = 0x200, scoped, tag = 'scoped memory for tpu_custom_call.1']
  %s0 = inlined_call_operand.hbm [shape: f32[8,128], index: 0, kind: input, shape index: {}]
  %s1 = inlined_call_operand.hbm [shape: f32[16,128], index: 1, kind: input, shape index: {}]
  %s2 = inlined_call_operand.hbm [shape: f32[32,128], index: 2, kind: input, shape index: {}]
  %s3 = inlined_call_operand.vmem [shape: f32[1,128], index: 3, kind: input, shape index: {}]
  %s4 = inlined_call_operand.hbm [shape: f32[32,128], index: 4, kind: input, shape index: {}]
  %s5 = inlined_call_operand.hbm [shape: f32[32,128], index: 5, kind: input, shape index: {}]
  %s6 = inlined_call_operand.vmem [shape: f32[1,128], index: 6, kind: input, shape index: {}]
  %s7 = inlined_call_operand.hbm [shape: f32[32,64], index: 7, kind: input, shape index: {}]
  %s8 = inlined_call_operand.vmem [shape: f32[1,64], index: 8, kind: input, shape index: {}]
  %s9 = inlined_call_operand.vmem [shape: f32[1,64], index: 9, kind: input, shape index: {}]
  %s10 = inlined_call_operand.<no memory space> [shape: f32[1,1], index: 10, kind: input, shape index: {}]
  %s11 = inlined_call_operand.vmem [shape: f32[8,1], index: 11, kind: output, shape index: {}]
  %s12 = sld [smem:[#allocation0]]
  $region78: #{tpu_custom_call.1} parent=0
    _
  %s14 = ssub.s32 1, %s12
  %s15 = scalar_select 0, %s14, %s12
  %v16 = vstv %s10
  %17 = vst [vmem:[#allocation2] sm:$0x1] %v16
  $region1: #{tpu_custom_call.1} parent=0
    #allocation3 [shape = 'u8[4096]{0}', space=vmem, size = 0x1000, scoped, tag = 'input window, operand 0, single buffered']
    #allocation4 [shape = 's32[1]{0}', space=sflag, size = 0x4, scoped, tag = 'scoped memory for tpu_custom_call.1']
    #allocation5 [shape = 'u8[8192]{0}', space=vmem, size = 0x2000, scoped, tag = 'input window, operand 1, single buffered']
    #allocation6 [shape = 's32[1]{0}', space=sflag, size = 0x4, scoped, tag = 'scoped memory for tpu_custom_call.1']
    #allocation7 [shape = 'u8[16384]{0}', space=vmem, size = 0x4000, scoped, tag = 'input window, operand 2, single buffered']
    #allocation8 [shape = 'u8[16384]{0}', space=vmem, size = 0x4000, scoped, tag = 'input window, operand 4, single buffered']
    #allocation9 [shape = 's32[1]{0}', space=sflag, size = 0x4, scoped, tag = 'scoped memory for tpu_custom_call.1']
    #allocation10 [shape = 'u8[16384]{0}', space=vmem, size = 0x4000, scoped, tag = 'input window, operand 5, single buffered']
    #allocation11 [shape = 'u8[16384]{0}', space=vmem, size = 0x4000, scoped, tag = 'input window, operand 7, single buffered']
    #allocation12 [shape = 's32[1]{0}', space=sflag, size = 0x4, scoped, tag = 'scoped memory for tpu_custom_call.1']
    %18 = vsyncpa [#allocation4], 0
    %19 = vsyncpa [#allocation6], 0
    %20 = vsyncpa [#allocation9], 0
    %21 = vsyncpa [#allocation12], 0
    // Predicated region
    $region2: #{tpu_custom_call.1} parent=1 // pred_check
      _
    $region3: #{tpu_custom_call.1} parent=1 // pred_check_branch
      %23 = sbr.rel (0) target = $region5
    $region4: #{tpu_custom_call.1} parent=1 // pred_region
      %s25 = ssub.s32 128, 128
      %26 = vsyncadd [#allocation4], %s25
      %s28 = sshll.u32 [#allocation3], 4
      %s29 = int_to_ptr.vmem [resolvable:$true] %s28
      %31 = dma.hbm_to_vmem [thread:$0]  %s0, 128, %s29, [#allocation4]
    $region5: #{tpu_custom_call.1} parent=1 // pred_fallthru
      _
    // Predicated region
    $region6: #{tpu_custom_call.1} parent=1 // pred_check
      _
    $region7: #{tpu_custom_call.1} parent=1 // pred_check_branch
      %33 = sbr.rel (0) target = $region9
    $region8: #{tpu_custom_call.1} parent=1 // pred_region
      %s35 = ssub.s32 256, 256
      %36 = vsyncadd [#allocation6], %s35
      %s37 = sshll.u32 [#allocation5], 4
      %s38 = int_to_ptr.vmem [resolvable:$true] %s37
      %43 = dma.hbm_to_vmem [thread:$0]  %s1, 256, %s38, [#allocation6], 128, 128, 8
    $region9: #{tpu_custom_call.1} parent=1 // pred_fallthru
      _
    // Predicated region
    $region10: #{tpu_custom_call.1} parent=1 // pred_check
      _
    $region11: #{tpu_custom_call.1} parent=1 // pred_check_branch
      %45 = sbr.rel (0) target = $region13
    $region12: #{tpu_custom_call.1} parent=1 // pred_region
      %s47 = ssub.s32 512, 512
      %48 = vsyncadd [#allocation6], %s47
      %s49 = sshll.u32 [#allocation7], 4
      %s50 = int_to_ptr.vmem [resolvable:$true] %s49
      %55 = dma.hbm_to_vmem [thread:$0]  %s2, 512, %s50, [#allocation6], 128, 128, 8
    $region13: #{tpu_custom_call.1} parent=1 // pred_fallthru
      _
    // Predicated region
    $region14: #{tpu_custom_call.1} parent=1 // pred_check
      _
    $region15: #{tpu_custom_call.1} parent=1 // pred_check_branch
      %57 = sbr.rel (0) target = $region17
    $region16: #{tpu_custom_call.1} parent=1 // pred_region
      _
    $region17: #{tpu_custom_call.1} parent=1 // pred_fallthru
      _
    // Predicated region
    $region18: #{tpu_custom_call.1} parent=1 // pred_check
      _
    $region19: #{tpu_custom_call.1} parent=1 // pred_check_branch
      %59 = sbr.rel (0) target = $region21
    $region20: #{tpu_custom_call.1} parent=1 // pred_region
      %s61 = ssub.s32 512, 512
      %62 = vsyncadd [#allocation9], %s61
      %s63 = sshll.u32 [#allocation8], 4
      %s64 = int_to_ptr.vmem [resolvable:$true] %s63
      %69 = dma.hbm_to_vmem [thread:$0]  %s4, 512, %s64, [#allocation9], 128, 128, 8
    $region21: #{tpu_custom_call.1} parent=1 // pred_fallthru
      _
    // Predicated region
    $region22: #{tpu_custom_call.1} parent=1 // pred_check
      _
    $region23: #{tpu_custom_call.1} parent=1 // pred_check_branch
      %71 = sbr.rel (0) target = $region25
    $region24: #{tpu_custom_call.1} parent=1 // pred_region
      %s73 = ssub.s32 512, 512
      %74 = vsyncadd [#allocation9], %s73
      %s75 = sshll.u32 [#allocation10], 4
      %s76 = int_to_ptr.vmem [resolvable:$true] %s75
      %81 = dma.hbm_to_vmem [thread:$0]  %s5, 512, %s76, [#allocation9], 128, 128, 8
    $region25: #{tpu_custom_call.1} parent=1 // pred_fallthru
      _
    // Predicated region
    $region26: #{tpu_custom_call.1} parent=1 // pred_check
      _
    $region27: #{tpu_custom_call.1} parent=1 // pred_check_branch
      %83 = sbr.rel (0) target = $region29
    $region28: #{tpu_custom_call.1} parent=1 // pred_region
      _
    $region29: #{tpu_custom_call.1} parent=1 // pred_fallthru
      _
    // Predicated region
    $region30: #{tpu_custom_call.1} parent=1 // pred_check
      _
    $region31: #{tpu_custom_call.1} parent=1 // pred_check_branch
      %85 = sbr.rel (0) target = $region33
    $region32: #{tpu_custom_call.1} parent=1 // pred_region
      %s87 = ssub.s32 512, 512
      %88 = vsyncadd [#allocation12], %s87
      %s89 = sshll.u32 [#allocation11], 4
      %s90 = int_to_ptr.vmem [resolvable:$true] %s89
      %95 = dma.hbm_to_vmem [thread:$0]  %s7, 512, %s90, [#allocation12], 128, 128, 8
    $region33: #{tpu_custom_call.1} parent=1 // pred_fallthru
      _
    // Predicated region
    $region34: #{tpu_custom_call.1} parent=1 // pred_check
      _
    $region35: #{tpu_custom_call.1} parent=1 // pred_check_branch
      %97 = sbr.rel (0) target = $region37
    $region36: #{tpu_custom_call.1} parent=1 // pred_region
      _
    $region37: #{tpu_custom_call.1} parent=1 // pred_fallthru
      _
    // Predicated region
    $region38: #{tpu_custom_call.1} parent=1 // pred_check
      _
    $region39: #{tpu_custom_call.1} parent=1 // pred_check_branch
      %99 = sbr.rel (0) target = $region41
    $region40: #{tpu_custom_call.1} parent=1 // pred_region
      _
    $region41: #{tpu_custom_call.1} parent=1 // pred_fallthru
      _
    // Predicated region
    $region42: #{tpu_custom_call.1} parent=1 // pred_check
      _
    $region43: #{tpu_custom_call.1} parent=1 // pred_check_branch
      %101 = sbr.rel (0) target = $region45
    $region44: #{tpu_custom_call.1} parent=1 // pred_region
      _
    $region45: #{tpu_custom_call.1} parent=1 // pred_fallthru
      _
    // Predicated region
    $region46: #{tpu_custom_call.1} parent=1 // pred_check
      _
    $region47: #{tpu_custom_call.1} parent=1 // pred_check_branch
      %103 = sbr.rel (0) target = $region49
    $region48: #{tpu_custom_call.1} parent=1 // pred_region
      %104 = dma.done [#allocation4], 128
    $region49: #{tpu_custom_call.1} parent=1 // pred_fallthru
      _
    // Predicated region
    $region50: #{tpu_custom_call.1} parent=1 // pred_check
      _
    $region51: #{tpu_custom_call.1} parent=1 // pred_check_branch
      %106 = sbr.rel (0) target = $region53
    $region52: #{tpu_custom_call.1} parent=1 // pred_region
      %107 = dma.done [#allocation6], 256
    $region53: #{tpu_custom_call.1} parent=1 // pred_fallthru
      _
    // Predicated region
    $region54: #{tpu_custom_call.1} parent=1 // pred_check
      _
    $region55: #{tpu_custom_call.1} parent=1 // pred_check_branch
      %109 = sbr.rel (0) target = $region57
    $region56: #{tpu_custom_call.1} parent=1 // pred_region
      %110 = dma.done [#allocation6], 512
    $region57: #{tpu_custom_call.1} parent=1 // pred_fallthru
      _
    // Predicated region
    $region58: #{tpu_custom_call.1} parent=1 // pred_check
      _
    $region59: #{tpu_custom_call.1} parent=1 // pred_check_branch
      %112 = sbr.rel (0) target = $region61
    $region60: #{tpu_custom_call.1} parent=1 // pred_region
      %113 = dma.done [#allocation9], 512
    $region61: #{tpu_custom_call.1} parent=1 // pred_fallthru
      _
    // Predicated region
    $region62: #{tpu_custom_call.1} parent=1 // pred_check
      _
    $region63: #{tpu_custom_call.1} parent=1 // pred_check_branch
      %115 = sbr.rel (0) target = $region65
    $region64: #{tpu_custom_call.1} parent=1 // pred_region
      %116 = dma.done [#allocation9], 512
    $region65: #{tpu_custom_call.1} parent=1 // pred_fallthru
      _
    // Predicated region
    $region66: #{tpu_custom_call.1} parent=1 // pred_check
      _
    $region67: #{tpu_custom_call.1} parent=1 // pred_check_branch
      %118 = sbr.rel (0) target = $region69
    $region68: #{tpu_custom_call.1} parent=1 // pred_region
      %119 = dma.done [#allocation12], 512
    $region69: #{tpu_custom_call.1} parent=1 // pred_fallthru
      _
    %v120 = vld [vmem:[#allocation3] sm:$0xff]
    %v121 = vld [vmem:[#allocation5] sm:$0xff]
    %v122 = vld [vmem:[#allocation5 + $0x8] sm:$0xff]
    %v123 = vld [vmem:[#allocation7] sm:$0xff]
    %v124 = vld [vmem:[#allocation7 + $0x8] sm:$0xff]
    %v125 = vld [vmem:[#allocation7 + $0x10] sm:$0xff]
    %v126 = vld [vmem:[#allocation7 + $0x18] sm:$0xff]
    %v127 = vld [vmem:[%s3] sm:$0x1]
    %v129 = vlaneseq
    %v130 = vshrl.u32 %v129, 7
    %v131 = vsub.s32 0, %v130
    %v132 = vrot.slane %v127, %v131
    %vm134 = vcmask 130048
    %v136 = vsel %vm134, %v120, 0
    %138 = vmatprep.subr.mxu0 0.0
    %139 = vmatpush1.msra.mxu0 %v121
    %140 = vmatprep.subr.mxu0 0.0
    %141 = vmatpush1.msra.mxu0 %v122
    %142 = vmatprep.subr.mxu0 0.0
    %143 = vmatpush1.msra.mxu0 0.0
    %144 = vmatprep.subr.mxu0 0.0
    %145 = vmatpush1.msra.mxu0 0.0
    %146 = vmatprep.subr.mxu0 0.0
    %147 = vmatpush1.msra.mxu0 0.0
    %148 = vmatprep.subr.mxu0 0.0
    %149 = vmatpush1.msra.mxu0 0.0
    %150 = vmatprep.subr.mxu0 0.0
    %151 = vmatpush1.msra.mxu0 0.0
    %152 = vmatprep.subr.mxu0 0.0
    %153 = vmatpush1.msra.mxu0 0.0
    %154 = vmatprep.subr.mxu0 0.0
    %155 = vmatpush1.msra.mxu0 0.0
    %156 = vmatprep.subr.mxu0 0.0
    %157 = vmatpush1.msra.mxu0 0.0
    %158 = vmatprep.subr.mxu0 0.0
    %159 = vmatpush1.msra.mxu0 0.0
    %160 = vmatprep.subr.mxu0 0.0
    %161 = vmatpush1.msra.mxu0 0.0
    %162 = vmatprep.subr.mxu0 0.0
    %163 = vmatpush1.msra.mxu0 0.0
    %164 = vmatprep.subr.mxu0 0.0
    %165 = vmatpush1.msra.mxu0 0.0
    %166 = vmatprep.subr.mxu0 0.0
    %167 = vmatpush1.msra.mxu0 0.0
    %168 = vmatprep.subr.mxu0 0.0
    %169 = vmatpush1.msra.mxu0 0.0
    %170 = vmatprep.subr.mxu0 0.0
    %171 = vmatpush1.msra.mxu0 0.0
    %172 = vmatprep.subr.mxu0 0.0
    %173 = vmatpush1.msra.mxu0 0.0
    %174 = vmatprep.subr.mxu0 0.0
    %175 = vmatpush1.msra.mxu0 0.0
    %176 = vmatprep.subr.mxu0 0.0
    %177 = vmatpush1.msra.mxu0 0.0
    %178 = vmatprep.subr.mxu0 0.0
    %179 = vmatpush1.msra.mxu0 0.0
    %180 = vmatprep.subr.mxu0 0.0
    %181 = vmatpush1.msra.mxu0 0.0
    %182 = vmatprep.subr.mxu0 0.0
    %183 = vmatpush1.msra.mxu0 0.0
    %184 = vmatprep.subr.mxu0 0.0
    %185 = vmatpush1.msra.mxu0 0.0
    %186 = vmatprep.subr.mxu0 0.0
    %187 = vmatpush1.msra.mxu0 0.0
    %188 = vmatprep.subr.mxu0 0.0
    %189 = vmatpush1.msra.mxu0 0.0
    %190 = vmatprep.subr.mxu0 0.0
    %191 = vmatpush1.msra.mxu0 0.0
    %192 = vmatprep.subr.mxu0 0.0
    %193 = vmatpush1.msra.mxu0 0.0
    %194 = vmatprep.subr.mxu0 0.0
    %195 = vmatpush1.msra.mxu0 0.0
    %196 = vmatprep.subr.mxu0 0.0
    %197 = vmatpush1.msra.mxu0 0.0
    %198 = vmatprep.subr.mxu0 0.0
    %199 = vmatpush1.msra.mxu0 0.0
    %200 = vmatprep.subr.mxu0 0.0
    %201 = vmatpush1.msra.mxu0 0.0
    %202 = vmatprep.mubr.f32.mxu0 0.0
    %203 = vmatmul.mubr.f32.gmra.mrb[0].mxu0 %v136
    %v204 = vpop.f32.mrb[0].mxu0
    %v205 = vadd.f32 %v132, %v204
    %v206 = vpop.f32.mrb[0].mxu0
    %207 = vdwg.mxu0
    %208 = vrot.lane.b32.xlu0 %v120, 112
    %v209 = vpop.permute.xlu0 %208
    %v210 = vsel %vm134, %v209, 0
    %212 = vmatprep.subr.mxu0 0.0
    %213 = vmatpush1.msra.mxu0 %v121
    %214 = vmatprep.subr.mxu0 0.0
    %215 = vmatpush1.msra.mxu0 %v122
    %216 = vmatprep.subr.mxu0 0.0
    %217 = vmatpush1.msra.mxu0 0.0
    %218 = vmatprep.subr.mxu0 0.0
    %219 = vmatpush1.msra.mxu0 0.0
    %220 = vmatprep.subr.mxu0 0.0
    %221 = vmatpush1.msra.mxu0 0.0
    %222 = vmatprep.subr.mxu0 0.0
    %223 = vmatpush1.msra.mxu0 0.0
    %224 = vmatprep.subr.mxu0 0.0
    %225 = vmatpush1.msra.mxu0 0.0
    %226 = vmatprep.subr.mxu0 0.0
    %227 = vmatpush1.msra.mxu0 0.0
    %228 = vmatprep.subr.mxu0 0.0
    %229 = vmatpush1.msra.mxu0 0.0
    %230 = vmatprep.subr.mxu0 0.0
    %231 = vmatpush1.msra.mxu0 0.0
    %232 = vmatprep.subr.mxu0 0.0
    %233 = vmatpush1.msra.mxu0 0.0
    %234 = vmatprep.subr.mxu0 0.0
    %235 = vmatpush1.msra.mxu0 0.0
    %236 = vmatprep.subr.mxu0 0.0
    %237 = vmatpush1.msra.mxu0 0.0
    %238 = vmatprep.subr.mxu0 0.0
    %239 = vmatpush1.msra.mxu0 0.0
    %240 = vmatprep.subr.mxu0 0.0
    %241 = vmatpush1.msra.mxu0 0.0
    %242 = vmatprep.subr.mxu0 0.0
    %243 = vmatpush1.msra.mxu0 0.0
    %244 = vmatprep.subr.mxu0 0.0
    %245 = vmatpush1.msra.mxu0 0.0
    %246 = vmatprep.subr.mxu0 0.0
    %247 = vmatpush1.msra.mxu0 0.0
    %248 = vmatprep.subr.mxu0 0.0
    %249 = vmatpush1.msra.mxu0 0.0
    %250 = vmatprep.subr.mxu0 0.0
    %251 = vmatpush1.msra.mxu0 0.0
    %252 = vmatprep.subr.mxu0 0.0
    %253 = vmatpush1.msra.mxu0 0.0
    %254 = vmatprep.subr.mxu0 0.0
    %255 = vmatpush1.msra.mxu0 0.0
    %256 = vmatprep.subr.mxu0 0.0
    %257 = vmatpush1.msra.mxu0 0.0
    %258 = vmatprep.subr.mxu0 0.0
    %259 = vmatpush1.msra.mxu0 0.0
    %260 = vmatprep.subr.mxu0 0.0
    %261 = vmatpush1.msra.mxu0 0.0
    %262 = vmatprep.subr.mxu0 0.0
    %263 = vmatpush1.msra.mxu0 0.0
    %264 = vmatprep.subr.mxu0 0.0
    %265 = vmatpush1.msra.mxu0 0.0
    %266 = vmatprep.subr.mxu0 0.0
    %267 = vmatpush1.msra.mxu0 0.0
    %268 = vmatprep.subr.mxu0 0.0
    %269 = vmatpush1.msra.mxu0 0.0
    %270 = vmatprep.subr.mxu0 0.0
    %271 = vmatpush1.msra.mxu0 0.0
    %272 = vmatprep.subr.mxu0 0.0
    %273 = vmatpush1.msra.mxu0 0.0
    %274 = vmatprep.subr.mxu0 0.0
    %275 = vmatpush1.msra.mxu0 0.0
    %276 = vmatprep.mubr.f32.mxu0 0.0
    %277 = vmatmul.mubr.f32.gmra.mrb[0].mxu0 %v210
    %v278 = vpop.f32.mrb[0].mxu0
    %v279 = vadd.f32 %v132, %v278
    %v280 = vpop.f32.mrb[0].mxu0
    %281 = vdwg.mxu0
    %282 = vrot.lane.b32.xlu0 %v120, 96
    %v283 = vpop.permute.xlu0 %282
    %v284 = vsel %vm134, %v283, 0
    %286 = vmatprep.subr.mxu0 0.0
    %287 = vmatpush1.msra.mxu0 %v121
    %288 = vmatprep.subr.mxu0 0.0
    %289 = vmatpush1.msra.mxu0 %v122
    %290 = vmatprep.subr.mxu0 0.0
    %291 = vmatpush1.msra.mxu0 0.0
    %292 = vmatprep.subr.mxu0 0.0
    %293 = vmatpush1.msra.mxu0 0.0
    %294 = vmatprep.subr.mxu0 0.0
    %295 = vmatpush1.msra.mxu0 0.0
    %296 = vmatprep.subr.mxu0 0.0
    %297 = vmatpush1.msra.mxu0 0.0
    %298 = vmatprep.subr.mxu0 0.0
    %299 = vmatpush1.msra.mxu0 0.0
    %300 = vmatprep.subr.mxu0 0.0
    %301 = vmatpush1.msra.mxu0 0.0
    %302 = vmatprep.subr.mxu0 0.0
    %303 = vmatpush1.msra.mxu0 0.0
    %304 = vmatprep.subr.mxu0 0.0
    %305 = vmatpush1.msra.mxu0 0.0
    %306 = vmatprep.subr.mxu0 0.0
    %307 = vmatpush1.msra.mxu0 0.0
    %308 = vmatprep.subr.mxu0 0.0
    %309 = vmatpush1.msra.mxu0 0.0
    %310 = vmatprep.subr.mxu0 0.0
    %311 = vmatpush1.msra.mxu0 0.0
    %312 = vmatprep.subr.mxu0 0.0
    %313 = vmatpush1.msra.mxu0 0.0
    %314 = vmatprep.subr.mxu0 0.0
    %315 = vmatpush1.msra.mxu0 0.0
    %316 = vmatprep.subr.mxu0 0.0
    %317 = vmatpush1.msra.mxu0 0.0
    %318 = vmatprep.subr.mxu0 0.0
    %319 = vmatpush1.msra.mxu0 0.0
    %320 = vmatprep.subr.mxu0 0.0
    %321 = vmatpush1.msra.mxu0 0.0
    %322 = vmatprep.subr.mxu0 0.0
    %323 = vmatpush1.msra.mxu0 0.0
    %324 = vmatprep.subr.mxu0 0.0
    %325 = vmatpush1.msra.mxu0 0.0
    %326 = vmatprep.subr.mxu0 0.0
    %327 = vmatpush1.msra.mxu0 0.0
    %328 = vmatprep.subr.mxu0 0.0
    %329 = vmatpush1.msra.mxu0 0.0
    %330 = vmatprep.subr.mxu0 0.0
    %331 = vmatpush1.msra.mxu0 0.0
    %332 = vmatprep.subr.mxu0 0.0
    %333 = vmatpush1.msra.mxu0 0.0
    %334 = vmatprep.subr.mxu0 0.0
    %335 = vmatpush1.msra.mxu0 0.0
    %336 = vmatprep.subr.mxu0 0.0
    %337 = vmatpush1.msra.mxu0 0.0
    %338 = vmatprep.subr.mxu0 0.0
    %339 = vmatpush1.msra.mxu0 0.0
    %340 = vmatprep.subr.mxu0 0.0
    %341 = vmatpush1.msra.mxu0 0.0
    %342 = vmatprep.subr.mxu0 0.0
    %343 = vmatpush1.msra.mxu0 0.0
    %344 = vmatprep.subr.mxu0 0.0
    %345 = vmatpush1.msra.mxu0 0.0
    %346 = vmatprep.subr.mxu0 0.0
    %347 = vmatpush1.msra.mxu0 0.0
    %348 = vmatprep.subr.mxu0 0.0
    %349 = vmatpush1.msra.mxu0 0.0
    %350 = vmatprep.mubr.f32.mxu0 0.0
    %351 = vmatmul.mubr.f32.gmra.mrb[0].mxu0 %v284
    %v352 = vpop.f32.mrb[0].mxu0
    %v353 = vadd.f32 %v132, %v352
    %v354 = vpop.f32.mrb[0].mxu0
    %355 = vdwg.mxu0
    %356 = vrot.lane.b32.xlu0 %v120, 80
    %v357 = vpop.permute.xlu0 %356
    %v358 = vsel %vm134, %v357, 0
    %360 = vmatprep.subr.mxu0 0.0
    %361 = vmatpush1.msra.mxu0 %v121
    %362 = vmatprep.subr.mxu0 0.0
    %363 = vmatpush1.msra.mxu0 %v122
    %364 = vmatprep.subr.mxu0 0.0
    %365 = vmatpush1.msra.mxu0 0.0
    %366 = vmatprep.subr.mxu0 0.0
    %367 = vmatpush1.msra.mxu0 0.0
    %368 = vmatprep.subr.mxu0 0.0
    %369 = vmatpush1.msra.mxu0 0.0
    %370 = vmatprep.subr.mxu0 0.0
    %371 = vmatpush1.msra.mxu0 0.0
    %372 = vmatprep.subr.mxu0 0.0
    %373 = vmatpush1.msra.mxu0 0.0
    %374 = vmatprep.subr.mxu0 0.0
    %375 = vmatpush1.msra.mxu0 0.0
    %376 = vmatprep.subr.mxu0 0.0
    %377 = vmatpush1.msra.mxu0 0.0
    %378 = vmatprep.subr.mxu0 0.0
    %379 = vmatpush1.msra.mxu0 0.0
    %380 = vmatprep.subr.mxu0 0.0
    %381 = vmatpush1.msra.mxu0 0.0
    %382 = vmatprep.subr.mxu0 0.0
    %383 = vmatpush1.msra.mxu0 0.0
    %384 = vmatprep.subr.mxu0 0.0
    %385 = vmatpush1.msra.mxu0 0.0
    %386 = vmatprep.subr.mxu0 0.0
    %387 = vmatpush1.msra.mxu0 0.0
    %388 = vmatprep.subr.mxu0 0.0
    %389 = vmatpush1.msra.mxu0 0.0
    %390 = vmatprep.subr.mxu0 0.0
    %391 = vmatpush1.msra.mxu0 0.0
    %392 = vmatprep.subr.mxu0 0.0
    %393 = vmatpush1.msra.mxu0 0.0
    %394 = vmatprep.subr.mxu0 0.0
    %395 = vmatpush1.msra.mxu0 0.0
    %396 = vmatprep.subr.mxu0 0.0
    %397 = vmatpush1.msra.mxu0 0.0
    %398 = vmatprep.subr.mxu0 0.0
    %399 = vmatpush1.msra.mxu0 0.0
    %400 = vmatprep.subr.mxu0 0.0
    %401 = vmatpush1.msra.mxu0 0.0
    %402 = vmatprep.subr.mxu0 0.0
    %403 = vmatpush1.msra.mxu0 0.0
    %404 = vmatprep.subr.mxu0 0.0
    %405 = vmatpush1.msra.mxu0 0.0
    %406 = vmatprep.subr.mxu0 0.0
    %407 = vmatpush1.msra.mxu0 0.0
    %408 = vmatprep.subr.mxu0 0.0
    %409 = vmatpush1.msra.mxu0 0.0
    %410 = vmatprep.subr.mxu0 0.0
    %411 = vmatpush1.msra.mxu0 0.0
    %412 = vmatprep.subr.mxu0 0.0
    %413 = vmatpush1.msra.mxu0 0.0
    %414 = vmatprep.subr.mxu0 0.0
    %415 = vmatpush1.msra.mxu0 0.0
    %416 = vmatprep.subr.mxu0 0.0
    %417 = vmatpush1.msra.mxu0 0.0
    %418 = vmatprep.subr.mxu0 0.0
    %419 = vmatpush1.msra.mxu0 0.0
    %420 = vmatprep.subr.mxu0 0.0
    %421 = vmatpush1.msra.mxu0 0.0
    %422 = vmatprep.subr.mxu0 0.0
    %423 = vmatpush1.msra.mxu0 0.0
    %424 = vmatprep.mubr.f32.mxu0 0.0
    %425 = vmatmul.mubr.f32.gmra.mrb[0].mxu0 %v358
    %v426 = vpop.f32.mrb[0].mxu0
    %v427 = vadd.f32 %v132, %v426
    %v428 = vpop.f32.mrb[0].mxu0
    %429 = vdwg.mxu0
    %430 = vrot.lane.b32.xlu0 %v120, 64
    %v431 = vpop.permute.xlu0 %430
    %v432 = vsel %vm134, %v431, 0
    %434 = vmatprep.subr.mxu0 0.0
    %435 = vmatpush1.msra.mxu0 %v121
    %436 = vmatprep.subr.mxu0 0.0
    %437 = vmatpush1.msra.mxu0 %v122
    %438 = vmatprep.subr.mxu0 0.0
    %439 = vmatpush1.msra.mxu0 0.0
    %440 = vmatprep.subr.mxu0 0.0
    %441 = vmatpush1.msra.mxu0 0.0
    %442 = vmatprep.subr.mxu0 0.0
    %443 = vmatpush1.msra.mxu0 0.0
    %444 = vmatprep.subr.mxu0 0.0
    %445 = vmatpush1.msra.mxu0 0.0
    %446 = vmatprep.subr.mxu0 0.0
    %447 = vmatpush1.msra.mxu0 0.0
    %448 = vmatprep.subr.mxu0 0.0
    %449 = vmatpush1.msra.mxu0 0.0
    %450 = vmatprep.subr.mxu0 0.0
    %451 = vmatpush1.msra.mxu0 0.0
    %452 = vmatprep.subr.mxu0 0.0
    %453 = vmatpush1.msra.mxu0 0.0
    %454 = vmatprep.subr.mxu0 0.0
    %455 = vmatpush1.msra.mxu0 0.0
    %456 = vmatprep.subr.mxu0 0.0
    %457 = vmatpush1.msra.mxu0 0.0
    %458 = vmatprep.subr.mxu0 0.0
    %459 = vmatpush1.msra.mxu0 0.0
    %460 = vmatprep.subr.mxu0 0.0
    %461 = vmatpush1.msra.mxu0 0.0
    %462 = vmatprep.subr.mxu0 0.0
    %463 = vmatpush1.msra.mxu0 0.0
    %464 = vmatprep.subr.mxu0 0.0
    %465 = vmatpush1.msra.mxu0 0.0
    %466 = vmatprep.subr.mxu0 0.0
    %467 = vmatpush1.msra.mxu0 0.0
    %468 = vmatprep.subr.mxu0 0.0
    %469 = vmatpush1.msra.mxu0 0.0
    %470 = vmatprep.subr.mxu0 0.0
    %471 = vmatpush1.msra.mxu0 0.0
    %472 = vmatprep.subr.mxu0 0.0
    %473 = vmatpush1.msra.mxu0 0.0
    %474 = vmatprep.subr.mxu0 0.0
    %475 = vmatpush1.msra.mxu0 0.0
    %476 = vmatprep.subr.mxu0 0.0
    %477 = vmatpush1.msra.mxu0 0.0
    %478 = vmatprep.subr.mxu0 0.0
    %479 = vmatpush1.msra.mxu0 0.0
    %480 = vmatprep.subr.mxu0 0.0
    %481 = vmatpush1.msra.mxu0 0.0
    %482 = vmatprep.subr.mxu0 0.0
    %483 = vmatpush1.msra.mxu0 0.0
    %484 = vmatprep.subr.mxu0 0.0
    %485 = vmatpush1.msra.mxu0 0.0
    %486 = vmatprep.subr.mxu0 0.0
    %487 = vmatpush1.msra.mxu0 0.0
    %488 = vmatprep.subr.mxu0 0.0
    %489 = vmatpush1.msra.mxu0 0.0
    %490 = vmatprep.subr.mxu0 0.0
    %491 = vmatpush1.msra.mxu0 0.0
    %492 = vmatprep.subr.mxu0 0.0
    %493 = vmatpush1.msra.mxu0 0.0
    %494 = vmatprep.subr.mxu0 0.0
    %495 = vmatpush1.msra.mxu0 0.0
    %496 = vmatprep.subr.mxu0 0.0
    %497 = vmatpush1.msra.mxu0 0.0
    %498 = vmatprep.mubr.f32.mxu0 0.0
    %499 = vmatmul.mubr.f32.gmra.mrb[0].mxu0 %v432
    %v500 = vpop.f32.mrb[0].mxu0
    %v501 = vadd.f32 %v132, %v500
    %v502 = vpop.f32.mrb[0].mxu0
    %503 = vdwg.mxu0
    %504 = vrot.lane.b32.xlu0 %v120, 48
    %v505 = vpop.permute.xlu0 %504
    %v506 = vsel %vm134, %v505, 0
    %508 = vmatprep.subr.mxu0 0.0
    %509 = vmatpush1.msra.mxu0 %v121
    %510 = vmatprep.subr.mxu0 0.0
    %511 = vmatpush1.msra.mxu0 %v122
    %512 = vmatprep.subr.mxu0 0.0
    %513 = vmatpush1.msra.mxu0 0.0
    %514 = vmatprep.subr.mxu0 0.0
    %515 = vmatpush1.msra.mxu0 0.0
    %516 = vmatprep.subr.mxu0 0.0
    %517 = vmatpush1.msra.mxu0 0.0
    %518 = vmatprep.subr.mxu0 0.0
    %519 = vmatpush1.msra.mxu0 0.0
    %520 = vmatprep.subr.mxu0 0.0
    %521 = vmatpush1.msra.mxu0 0.0
    %522 = vmatprep.subr.mxu0 0.0
    %523 = vmatpush1.msra.mxu0 0.0
    %524 = vmatprep.subr.mxu0 0.0
    %525 = vmatpush1.msra.mxu0 0.0
    %526 = vmatprep.subr.mxu0 0.0
    %527 = vmatpush1.msra.mxu0 0.0
    %528 = vmatprep.subr.mxu0 0.0
    %529 = vmatpush1.msra.mxu0 0.0
    %530 = vmatprep.subr.mxu0 0.0
    %531 = vmatpush1.msra.mxu0 0.0
    %532 = vmatprep.subr.mxu0 0.0
    %533 = vmatpush1.msra.mxu0 0.0
    %534 = vmatprep.subr.mxu0 0.0
    %535 = vmatpush1.msra.mxu0 0.0
    %536 = vmatprep.subr.mxu0 0.0
    %537 = vmatpush1.msra.mxu0 0.0
    %538 = vmatprep.subr.mxu0 0.0
    %539 = vmatpush1.msra.mxu0 0.0
    %540 = vmatprep.subr.mxu0 0.0
    %541 = vmatpush1.msra.mxu0 0.0
    %542 = vmatprep.subr.mxu0 0.0
    %543 = vmatpush1.msra.mxu0 0.0
    %544 = vmatprep.subr.mxu0 0.0
    %545 = vmatpush1.msra.mxu0 0.0
    %546 = vmatprep.subr.mxu0 0.0
    %547 = vmatpush1.msra.mxu0 0.0
    %548 = vmatprep.subr.mxu0 0.0
    %549 = vmatpush1.msra.mxu0 0.0
    %550 = vmatprep.subr.mxu0 0.0
    %551 = vmatpush1.msra.mxu0 0.0
    %552 = vmatprep.subr.mxu0 0.0
    %553 = vmatpush1.msra.mxu0 0.0
    %554 = vmatprep.subr.mxu0 0.0
    %555 = vmatpush1.msra.mxu0 0.0
    %556 = vmatprep.subr.mxu0 0.0
    %557 = vmatpush1.msra.mxu0 0.0
    %558 = vmatprep.subr.mxu0 0.0
    %559 = vmatpush1.msra.mxu0 0.0
    %560 = vmatprep.subr.mxu0 0.0
    %561 = vmatpush1.msra.mxu0 0.0
    %562 = vmatprep.subr.mxu0 0.0
    %563 = vmatpush1.msra.mxu0 0.0
    %564 = vmatprep.subr.mxu0 0.0
    %565 = vmatpush1.msra.mxu0 0.0
    %566 = vmatprep.subr.mxu0 0.0
    %567 = vmatpush1.msra.mxu0 0.0
    %568 = vmatprep.subr.mxu0 0.0
    %569 = vmatpush1.msra.mxu0 0.0
    %570 = vmatprep.subr.mxu0 0.0
    %571 = vmatpush1.msra.mxu0 0.0
    %572 = vmatprep.mubr.f32.mxu0 0.0
    %573 = vmatmul.mubr.f32.gmra.mrb[0].mxu0 %v506
    %v574 = vpop.f32.mrb[0].mxu0
    %v575 = vadd.f32 %v132, %v574
    %v576 = vpop.f32.mrb[0].mxu0
    %577 = vdwg.mxu0
    %578 = vrot.lane.b32.xlu0 %v120, 32
    %v579 = vpop.permute.xlu0 %578
    %v580 = vsel %vm134, %v579, 0
    %582 = vmatprep.subr.mxu0 0.0
    %583 = vmatpush1.msra.mxu0 %v121
    %584 = vmatprep.subr.mxu0 0.0
    %585 = vmatpush1.msra.mxu0 %v122
    %586 = vmatprep.subr.mxu0 0.0
    %587 = vmatpush1.msra.mxu0 0.0
    %588 = vmatprep.subr.mxu0 0.0
    %589 = vmatpush1.msra.mxu0 0.0
    %590 = vmatprep.subr.mxu0 0.0
    %591 = vmatpush1.msra.mxu0 0.0
    %592 = vmatprep.subr.mxu0 0.0
    %593 = vmatpush1.msra.mxu0 0.0
    %594 = vmatprep.subr.mxu0 0.0
    %595 = vmatpush1.msra.mxu0 0.0
    %596 = vmatprep.subr.mxu0 0.0
    %597 = vmatpush1.msra.mxu0 0.0
    %598 = vmatprep.subr.mxu0 0.0
    %599 = vmatpush1.msra.mxu0 0.0
    %600 = vmatprep.subr.mxu0 0.0
    %601 = vmatpush1.msra.mxu0 0.0
    %602 = vmatprep.subr.mxu0 0.0
    %603 = vmatpush1.msra.mxu0 0.0
    %604 = vmatprep.subr.mxu0 0.0
    %605 = vmatpush1.msra.mxu0 0.0
    %606 = vmatprep.subr.mxu0 0.0
    %607 = vmatpush1.msra.mxu0 0.0
    %608 = vmatprep.subr.mxu0 0.0
    %609 = vmatpush1.msra.mxu0 0.0
    %610 = vmatprep.subr.mxu0 0.0
    %611 = vmatpush1.msra.mxu0 0.0
    %612 = vmatprep.subr.mxu0 0.0
    %613 = vmatpush1.msra.mxu0 0.0
    %614 = vmatprep.subr.mxu0 0.0
    %615 = vmatpush1.msra.mxu0 0.0
    %616 = vmatprep.subr.mxu0 0.0
    %617 = vmatpush1.msra.mxu0 0.0
    %618 = vmatprep.subr.mxu0 0.0
    %619 = vmatpush1.msra.mxu0 0.0
    %620 = vmatprep.subr.mxu0 0.0
    %621 = vmatpush1.msra.mxu0 0.0
    %622 = vmatprep.subr.mxu0 0.0
    %623 = vmatpush1.msra.mxu0 0.0
    %624 = vmatprep.subr.mxu0 0.0
    %625 = vmatpush1.msra.mxu0 0.0
    %626 = vmatprep.subr.mxu0 0.0
    %627 = vmatpush1.msra.mxu0 0.0
    %628 = vmatprep.subr.mxu0 0.0
    %629 = vmatpush1.msra.mxu0 0.0
    %630 = vmatprep.subr.mxu0 0.0
    %631 = vmatpush1.msra.mxu0 0.0
    %632 = vmatprep.subr.mxu0 0.0
    %633 = vmatpush1.msra.mxu0 0.0
    %634 = vmatprep.subr.mxu0 0.0
    %635 = vmatpush1.msra.mxu0 0.0
    %636 = vmatprep.subr.mxu0 0.0
    %637 = vmatpush1.msra.mxu0 0.0
    %638 = vmatprep.subr.mxu0 0.0
    %639 = vmatpush1.msra.mxu0 0.0
    %640 = vmatprep.subr.mxu0 0.0
    %641 = vmatpush1.msra.mxu0 0.0
    %642 = vmatprep.subr.mxu0 0.0
    %643 = vmatpush1.msra.mxu0 0.0
    %644 = vmatprep.subr.mxu0 0.0
    %645 = vmatpush1.msra.mxu0 0.0
    %646 = vmatprep.mubr.f32.mxu0 0.0
    %647 = vmatmul.mubr.f32.gmra.mrb[0].mxu0 %v580
    %v648 = vpop.f32.mrb[0].mxu0
    %v649 = vadd.f32 %v132, %v648
    %v650 = vpop.f32.mrb[0].mxu0
    %651 = vdwg.mxu0
    %652 = vrot.lane.b32.xlu0 %v120, 16
    %v653 = vpop.permute.xlu0 %652
    %v654 = vsel %vm134, %v653, 0
    %656 = vmatprep.subr.mxu0 0.0
    %657 = vmatpush1.msra.mxu0 %v121
    %658 = vmatprep.subr.mxu0 0.0
    %659 = vmatpush1.msra.mxu0 %v122
    %660 = vmatprep.subr.mxu0 0.0
    %661 = vmatpush1.msra.mxu0 0.0
    %662 = vmatprep.subr.mxu0 0.0
    %663 = vmatpush1.msra.mxu0 0.0
    %664 = vmatprep.subr.mxu0 0.0
    %665 = vmatpush1.msra.mxu0 0.0
    %666 = vmatprep.subr.mxu0 0.0
    %667 = vmatpush1.msra.mxu0 0.0
    %668 = vmatprep.subr.mxu0 0.0
    %669 = vmatpush1.msra.mxu0 0.0
    %670 = vmatprep.subr.mxu0 0.0
    %671 = vmatpush1.msra.mxu0 0.0
    %672 = vmatprep.subr.mxu0 0.0
    %673 = vmatpush1.msra.mxu0 0.0
    %674 = vmatprep.subr.mxu0 0.0
    %675 = vmatpush1.msra.mxu0 0.0
    %676 = vmatprep.subr.mxu0 0.0
    %677 = vmatpush1.msra.mxu0 0.0
    %678 = vmatprep.subr.mxu0 0.0
    %679 = vmatpush1.msra.mxu0 0.0
    %680 = vmatprep.subr.mxu0 0.0
    %681 = vmatpush1.msra.mxu0 0.0
    %682 = vmatprep.subr.mxu0 0.0
    %683 = vmatpush1.msra.mxu0 0.0
    %684 = vmatprep.subr.mxu0 0.0
    %685 = vmatpush1.msra.mxu0 0.0
    %686 = vmatprep.subr.mxu0 0.0
    %687 = vmatpush1.msra.mxu0 0.0
    %688 = vmatprep.subr.mxu0 0.0
    %689 = vmatpush1.msra.mxu0 0.0
    %690 = vmatprep.subr.mxu0 0.0
    %691 = vmatpush1.msra.mxu0 0.0
    %692 = vmatprep.subr.mxu0 0.0
    %693 = vmatpush1.msra.mxu0 0.0
    %694 = vmatprep.subr.mxu0 0.0
    %695 = vmatpush1.msra.mxu0 0.0
    %696 = vmatprep.subr.mxu0 0.0
    %697 = vmatpush1.msra.mxu0 0.0
    %698 = vmatprep.subr.mxu0 0.0
    %699 = vmatpush1.msra.mxu0 0.0
    %700 = vmatprep.subr.mxu0 0.0
    %701 = vmatpush1.msra.mxu0 0.0
    %702 = vmatprep.subr.mxu0 0.0
    %703 = vmatpush1.msra.mxu0 0.0
    %704 = vmatprep.subr.mxu0 0.0
    %705 = vmatpush1.msra.mxu0 0.0
    %706 = vmatprep.subr.mxu0 0.0
    %707 = vmatpush1.msra.mxu0 0.0
    %708 = vmatprep.subr.mxu0 0.0
    %709 = vmatpush1.msra.mxu0 0.0
    %710 = vmatprep.subr.mxu0 0.0
    %711 = vmatpush1.msra.mxu0 0.0
    %712 = vmatprep.subr.mxu0 0.0
    %713 = vmatpush1.msra.mxu0 0.0
    %714 = vmatprep.subr.mxu0 0.0
    %715 = vmatpush1.msra.mxu0 0.0
    %716 = vmatprep.subr.mxu0 0.0
    %717 = vmatpush1.msra.mxu0 0.0
    %718 = vmatprep.subr.mxu0 0.0
    %719 = vmatpush1.msra.mxu0 0.0
    %720 = vmatprep.mubr.f32.mxu0 0.0
    %721 = vmatmul.mubr.f32.gmra.mrb[0].mxu0 %v654
    %v722 = vpop.f32.mrb[0].mxu0
    %v723 = vadd.f32 %v132, %v722
    %v724 = vpop.f32.mrb[0].mxu0
    %725 = vdwg.mxu0
    %vm726 = vcmask 261120
    %v728 = vsel %vm726, 0.0, 0
    %730 = vmatprep.subr.mxu0 0.0
    %731 = vmatpush1.msra.mxu0 %v123
    %732 = vmatprep.subr.mxu0 0.0
    %733 = vmatpush1.msra.mxu0 %v124
    %734 = vmatprep.subr.mxu0 0.0
    %735 = vmatpush1.msra.mxu0 %v125
    %736 = vmatprep.subr.mxu0 0.0
    %737 = vmatpush1.msra.mxu0 %v126
    %738 = vmatprep.subr.mxu0 0.0
    %739 = vmatpush1.msra.mxu0 0.0
    %740 = vmatprep.subr.mxu0 0.0
    %741 = vmatpush1.msra.mxu0 0.0
    %742 = vmatprep.subr.mxu0 0.0
    %743 = vmatpush1.msra.mxu0 0.0
    %744 = vmatprep.subr.mxu0 0.0
    %745 = vmatpush1.msra.mxu0 0.0
    %746 = vmatprep.subr.mxu0 0.0
    %747 = vmatpush1.msra.mxu0 0.0
    %748 = vmatprep.subr.mxu0 0.0
    %749 = vmatpush1.msra.mxu0 0.0
    %750 = vmatprep.subr.mxu0 0.0
    %751 = vmatpush1.msra.mxu0 0.0
    %752 = vmatprep.subr.mxu0 0.0
    %753 = vmatpush1.msra.mxu0 0.0
    %754 = vmatprep.subr.mxu0 0.0
    %755 = vmatpush1.msra.mxu0 0.0
    %756 = vmatprep.subr.mxu0 0.0
    %757 = vmatpush1.msra.mxu0 0.0
    %758 = vmatprep.subr.mxu0 0.0
    %759 = vmatpush1.msra.mxu0 0.0
    %760 = vmatprep.subr.mxu0 0.0
    %761 = vmatpush1.msra.mxu0 0.0
    %762 = vmatprep.subr.mxu0 0.0
    %763 = vmatpush1.msra.mxu0 0.0
    %764 = vmatprep.subr.mxu0 0.0
    %765 = vmatpush1.msra.mxu0 0.0
    %766 = vmatprep.subr.mxu0 0.0
    %767 = vmatpush1.msra.mxu0 0.0
    %768 = vmatprep.subr.mxu0 0.0
    %769 = vmatpush1.msra.mxu0 0.0
    %770 = vmatprep.subr.mxu0 0.0
    %771 = vmatpush1.msra.mxu0 0.0
    %772 = vmatprep.subr.mxu0 0.0
    %773 = vmatpush1.msra.mxu0 0.0
    %774 = vmatprep.subr.mxu0 0.0
    %775 = vmatpush1.msra.mxu0 0.0
    %776 = vmatprep.subr.mxu0 0.0
    %777 = vmatpush1.msra.mxu0 0.0
    %778 = vmatprep.subr.mxu0 0.0
    %779 = vmatpush1.msra.mxu0 0.0
    %780 = vmatprep.subr.mxu0 0.0
    %781 = vmatpush1.msra.mxu0 0.0
    %782 = vmatprep.subr.mxu0 0.0
    %783 = vmatpush1.msra.mxu0 0.0
    %784 = vmatprep.subr.mxu0 0.0
    %785 = vmatpush1.msra.mxu0 0.0
    %786 = vmatprep.subr.mxu0 0.0
    %787 = vmatpush1.msra.mxu0 0.0
    %788 = vmatprep.subr.mxu0 0.0
    %789 = vmatpush1.msra.mxu0 0.0
    %790 = vmatprep.subr.mxu0 0.0
    %791 = vmatpush1.msra.mxu0 0.0
    %792 = vmatprep.subr.mxu0 0.0
    %793 = vmatpush1.msra.mxu0 0.0
    %794 = vmatprep.mubr.f32.mxu0 0.0
    %795 = vmatmul.mubr.f32.gmra.mrb[0].mxu0 %v728
    %v796 = vpop.f32.mrb[0].mxu0
    %v797 = vadd.f32 0.0, %v796
    %v798 = vpop.f32.mrb[0].mxu0
    %799 = vdwg.mxu0
    %v800 = vadd.f32 %v205, %v797
    %v801 = vxor.u32 %v800, 2147483648
    %v802 = vmul.f32 %v801, 1.442695
    %v803 = vpow.pop %v802
    %v804 = vadd.f32 %v803, 1.0
    %v805 = vrcp.pop %v804
    %v806 = vmul.f32 1.0, %v805
    %v807 = vtanh.pop %v800
    %v808 = vmul.f32 %v806, 0.0
    %810 = vrot.lane.b32.xlu0 %v807, 64
    %v811 = vpop.permute.xlu0 %810
    %v813 = vmul.f32 %v806, %v811
    %815 = vrot.lane.b32.xlu0 %v813, 32
    %v816 = vpop.permute.xlu0 %815
    %v818 = vadd.f32 %v808, %v816
    %v819 = vtanh.pop %v818
    %821 = vrot.lane.b32.xlu0 %v819, 64
    %v822 = vpop.permute.xlu0 %821
    %v824 = vmul.f32 %v806, %v822
    %826 = vrot.lane.b32.xlu0 %v824, 32
    %v827 = vpop.permute.xlu0 %826
    %v828 = vsel %vm726, %v827, 0
    %830 = vmatprep.subr.mxu0 0.0
    %831 = vmatpush1.msra.mxu0 %v123
    %832 = vmatprep.subr.mxu0 0.0
    %833 = vmatpush1.msra.mxu0 %v124
    %834 = vmatprep.subr.mxu0 0.0
    %835 = vmatpush1.msra.mxu0 %v125
    %836 = vmatprep.subr.mxu0 0.0
    %837 = vmatpush1.msra.mxu0 %v126
    %838 = vmatprep.subr.mxu0 0.0
    %839 = vmatpush1.msra.mxu0 0.0
    %840 = vmatprep.subr.mxu0 0.0
    %841 = vmatpush1.msra.mxu0 0.0
    %842 = vmatprep.subr.mxu0 0.0
    %843 = vmatpush1.msra.mxu0 0.0
    %844 = vmatprep.subr.mxu0 0.0
    %845 = vmatpush1.msra.mxu0 0.0
    %846 = vmatprep.subr.mxu0 0.0
    %847 = vmatpush1.msra.mxu0 0.0
    %848 = vmatprep.subr.mxu0 0.0
    %849 = vmatpush1.msra.mxu0 0.0
    %850 = vmatprep.subr.mxu0 0.0
    %851 = vmatpush1.msra.mxu0 0.0
    %852 = vmatprep.subr.mxu0 0.0
    %853 = vmatpush1.msra.mxu0 0.0
    %854 = vmatprep.subr.mxu0 0.0
    %855 = vmatpush1.msra.mxu0 0.0
    %856 = vmatprep.subr.mxu0 0.0
    %857 = vmatpush1.msra.mxu0 0.0
    %858 = vmatprep.subr.mxu0 0.0
    %859 = vmatpush1.msra.mxu0 0.0
    %860 = vmatprep.subr.mxu0 0.0
    %861 = vmatpush1.msra.mxu0 0.0
    %862 = vmatprep.subr.mxu0 0.0
    %863 = vmatpush1.msra.mxu0 0.0
    %864 = vmatprep.subr.mxu0 0.0
    %865 = vmatpush1.msra.mxu0 0.0
    %866 = vmatprep.subr.mxu0 0.0
    %867 = vmatpush1.msra.mxu0 0.0
    %868 = vmatprep.subr.mxu0 0.0
    %869 = vmatpush1.msra.mxu0 0.0
    %870 = vmatprep.subr.mxu0 0.0
    %871 = vmatpush1.msra.mxu0 0.0
    %872 = vmatprep.subr.mxu0 0.0
    %873 = vmatpush1.msra.mxu0 0.0
    %874 = vmatprep.subr.mxu0 0.0
    %875 = vmatpush1.msra.mxu0 0.0
    %876 = vmatprep.subr.mxu0 0.0
    %877 = vmatpush1.msra.mxu0 0.0
    %878 = vmatprep.subr.mxu0 0.0
    %879 = vmatpush1.msra.mxu0 0.0
    %880 = vmatprep.subr.mxu0 0.0
    %881 = vmatpush1.msra.mxu0 0.0
    %882 = vmatprep.subr.mxu0 0.0
    %883 = vmatpush1.msra.mxu0 0.0
    %884 = vmatprep.subr.mxu0 0.0
    %885 = vmatpush1.msra.mxu0 0.0
    %886 = vmatprep.subr.mxu0 0.0
    %887 = vmatpush1.msra.mxu0 0.0
    %888 = vmatprep.subr.mxu0 0.0
    %889 = vmatpush1.msra.mxu0 0.0
    %890 = vmatprep.subr.mxu0 0.0
    %891 = vmatpush1.msra.mxu0 0.0
    %892 = vmatprep.subr.mxu0 0.0
    %893 = vmatpush1.msra.mxu0 0.0
    %894 = vmatprep.mubr.f32.mxu0 0.0
    %895 = vmatmul.mubr.f32.gmra.mrb[0].mxu0 %v828
    %v896 = vpop.f32.mrb[0].mxu0
    %v897 = vadd.f32 0.0, %v896
    %v898 = vpop.f32.mrb[0].mxu0
    %899 = vdwg.mxu0
    %v900 = vadd.f32 %v279, %v897
    %v901 = vxor.u32 %v900, 2147483648
    %v902 = vmul.f32 %v901, 1.442695
    %v903 = vpow.pop %v902
    %v904 = vadd.f32 %v903, 1.0
    %v905 = vrcp.pop %v904
    %v906 = vmul.f32 1.0, %v905
    %v907 = vtanh.pop %v900
    %v908 = vmul.f32 %v906, %v818
    %910 = vrot.lane.b32.xlu0 %v907, 64
    %v911 = vpop.permute.xlu0 %910
    %v913 = vmul.f32 %v906, %v911
    %915 = vrot.lane.b32.xlu0 %v913, 32
    %v916 = vpop.permute.xlu0 %915
    %v918 = vadd.f32 %v908, %v916
    %v919 = vtanh.pop %v918
    %921 = vrot.lane.b32.xlu0 %v919, 64
    %v922 = vpop.permute.xlu0 %921
    %v924 = vmul.f32 %v906, %v922
    %926 = vrot.lane.b32.xlu0 %v924, 32
    %v927 = vpop.permute.xlu0 %926
    %v928 = vsel %vm726, %v927, 0
    %930 = vmatprep.subr.mxu0 0.0
    %931 = vmatpush1.msra.mxu0 %v123
    %932 = vmatprep.subr.mxu0 0.0
    %933 = vmatpush1.msra.mxu0 %v124
    %934 = vmatprep.subr.mxu0 0.0
    %935 = vmatpush1.msra.mxu0 %v125
    %936 = vmatprep.subr.mxu0 0.0
    %937 = vmatpush1.msra.mxu0 %v126
    %938 = vmatprep.subr.mxu0 0.0
    %939 = vmatpush1.msra.mxu0 0.0
    %940 = vmatprep.subr.mxu0 0.0
    %941 = vmatpush1.msra.mxu0 0.0
    %942 = vmatprep.subr.mxu0 0.0
    %943 = vmatpush1.msra.mxu0 0.0
    %944 = vmatprep.subr.mxu0 0.0
    %945 = vmatpush1.msra.mxu0 0.0
    %946 = vmatprep.subr.mxu0 0.0
    %947 = vmatpush1.msra.mxu0 0.0
    %948 = vmatprep.subr.mxu0 0.0
    %949 = vmatpush1.msra.mxu0 0.0
    %950 = vmatprep.subr.mxu0 0.0
    %951 = vmatpush1.msra.mxu0 0.0
    %952 = vmatprep.subr.mxu0 0.0
    %953 = vmatpush1.msra.mxu0 0.0
    %954 = vmatprep.subr.mxu0 0.0
    %955 = vmatpush1.msra.mxu0 0.0
    %956 = vmatprep.subr.mxu0 0.0
    %957 = vmatpush1.msra.mxu0 0.0
    %958 = vmatprep.subr.mxu0 0.0
    %959 = vmatpush1.msra.mxu0 0.0
    %960 = vmatprep.subr.mxu0 0.0
    %961 = vmatpush1.msra.mxu0 0.0
    %962 = vmatprep.subr.mxu0 0.0
    %963 = vmatpush1.msra.mxu0 0.0
    %964 = vmatprep.subr.mxu0 0.0
    %965 = vmatpush1.msra.mxu0 0.0
    %966 = vmatprep.subr.mxu0 0.0
    %967 = vmatpush1.msra.mxu0 0.0
    %968 = vmatprep.subr.mxu0 0.0
    %969 = vmatpush1.msra.mxu0 0.0
    %970 = vmatprep.subr.mxu0 0.0
    %971 = vmatpush1.msra.mxu0 0.0
    %972 = vmatprep.subr.mxu0 0.0
    %973 = vmatpush1.msra.mxu0 0.0
    %974 = vmatprep.subr.mxu0 0.0
    %975 = vmatpush1.msra.mxu0 0.0
    %976 = vmatprep.subr.mxu0 0.0
    %977 = vmatpush1.msra.mxu0 0.0
    %978 = vmatprep.subr.mxu0 0.0
    %979 = vmatpush1.msra.mxu0 0.0
    %980 = vmatprep.subr.mxu0 0.0
    %981 = vmatpush1.msra.mxu0 0.0
    %982 = vmatprep.subr.mxu0 0.0
    %983 = vmatpush1.msra.mxu0 0.0
    %984 = vmatprep.subr.mxu0 0.0
    %985 = vmatpush1.msra.mxu0 0.0
    %986 = vmatprep.subr.mxu0 0.0
    %987 = vmatpush1.msra.mxu0 0.0
    %988 = vmatprep.subr.mxu0 0.0
    %989 = vmatpush1.msra.mxu0 0.0
    %990 = vmatprep.subr.mxu0 0.0
    %991 = vmatpush1.msra.mxu0 0.0
    %992 = vmatprep.subr.mxu0 0.0
    %993 = vmatpush1.msra.mxu0 0.0
    %994 = vmatprep.mubr.f32.mxu0 0.0
    %995 = vmatmul.mubr.f32.gmra.mrb[0].mxu0 %v928
    %v996 = vpop.f32.mrb[0].mxu0
    %v997 = vadd.f32 0.0, %v996
    %v998 = vpop.f32.mrb[0].mxu0
    %999 = vdwg.mxu0
    %v1000 = vadd.f32 %v353, %v997
    %v1001 = vxor.u32 %v1000, 2147483648
    %v1002 = vmul.f32 %v1001, 1.442695
    %v1003 = vpow.pop %v1002
    %v1004 = vadd.f32 %v1003, 1.0
    %v1005 = vrcp.pop %v1004
    %v1006 = vmul.f32 1.0, %v1005
    %v1007 = vtanh.pop %v1000
    %v1008 = vmul.f32 %v1006, %v918
    %1010 = vrot.lane.b32.xlu0 %v1007, 64
    %v1011 = vpop.permute.xlu0 %1010
    %v1013 = vmul.f32 %v1006, %v1011
    %1015 = vrot.lane.b32.xlu0 %v1013, 32
    %v1016 = vpop.permute.xlu0 %1015
    %v1018 = vadd.f32 %v1008, %v1016
    %v1019 = vtanh.pop %v1018
    %1021 = vrot.lane.b32.xlu0 %v1019, 64
    %v1022 = vpop.permute.xlu0 %1021
    %v1024 = vmul.f32 %v1006, %v1022
    %1026 = vrot.lane.b32.xlu0 %v1024, 32
    %v1027 = vpop.permute.xlu0 %1026
    %v1028 = vsel %vm726, %v1027, 0
    %1030 = vmatprep.subr.mxu0 0.0
    %1031 = vmatpush1.msra.mxu0 %v123
    %1032 = vmatprep.subr.mxu0 0.0
    %1033 = vmatpush1.msra.mxu0 %v124
    %1034 = vmatprep.subr.mxu0 0.0
    %1035 = vmatpush1.msra.mxu0 %v125
    %1036 = vmatprep.subr.mxu0 0.0
    %1037 = vmatpush1.msra.mxu0 %v126
    %1038 = vmatprep.subr.mxu0 0.0
    %1039 = vmatpush1.msra.mxu0 0.0
    %1040 = vmatprep.subr.mxu0 0.0
    %1041 = vmatpush1.msra.mxu0 0.0
    %1042 = vmatprep.subr.mxu0 0.0
    %1043 = vmatpush1.msra.mxu0 0.0
    %1044 = vmatprep.subr.mxu0 0.0
    %1045 = vmatpush1.msra.mxu0 0.0
    %1046 = vmatprep.subr.mxu0 0.0
    %1047 = vmatpush1.msra.mxu0 0.0
    %1048 = vmatprep.subr.mxu0 0.0
    %1049 = vmatpush1.msra.mxu0 0.0
    %1050 = vmatprep.subr.mxu0 0.0
    %1051 = vmatpush1.msra.mxu0 0.0
    %1052 = vmatprep.subr.mxu0 0.0
    %1053 = vmatpush1.msra.mxu0 0.0
    %1054 = vmatprep.subr.mxu0 0.0
    %1055 = vmatpush1.msra.mxu0 0.0
    %1056 = vmatprep.subr.mxu0 0.0
    %1057 = vmatpush1.msra.mxu0 0.0
    %1058 = vmatprep.subr.mxu0 0.0
    %1059 = vmatpush1.msra.mxu0 0.0
    %1060 = vmatprep.subr.mxu0 0.0
    %1061 = vmatpush1.msra.mxu0 0.0
    %1062 = vmatprep.subr.mxu0 0.0
    %1063 = vmatpush1.msra.mxu0 0.0
    %1064 = vmatprep.subr.mxu0 0.0
    %1065 = vmatpush1.msra.mxu0 0.0
    %1066 = vmatprep.subr.mxu0 0.0
    %1067 = vmatpush1.msra.mxu0 0.0
    %1068 = vmatprep.subr.mxu0 0.0
    %1069 = vmatpush1.msra.mxu0 0.0
    %1070 = vmatprep.subr.mxu0 0.0
    %1071 = vmatpush1.msra.mxu0 0.0
    %1072 = vmatprep.subr.mxu0 0.0
    %1073 = vmatpush1.msra.mxu0 0.0
    %1074 = vmatprep.subr.mxu0 0.0
    %1075 = vmatpush1.msra.mxu0 0.0
    %1076 = vmatprep.subr.mxu0 0.0
    %1077 = vmatpush1.msra.mxu0 0.0
    %1078 = vmatprep.subr.mxu0 0.0
    %1079 = vmatpush1.msra.mxu0 0.0
    %1080 = vmatprep.subr.mxu0 0.0
    %1081 = vmatpush1.msra.mxu0 0.0
    %1082 = vmatprep.subr.mxu0 0.0
    %1083 = vmatpush1.msra.mxu0 0.0
    %1084 = vmatprep.subr.mxu0 0.0
    %1085 = vmatpush1.msra.mxu0 0.0
    %1086 = vmatprep.subr.mxu0 0.0
    %1087 = vmatpush1.msra.mxu0 0.0
    %1088 = vmatprep.subr.mxu0 0.0
    %1089 = vmatpush1.msra.mxu0 0.0
    %1090 = vmatprep.subr.mxu0 0.0
    %1091 = vmatpush1.msra.mxu0 0.0
    %1092 = vmatprep.subr.mxu0 0.0
    %1093 = vmatpush1.msra.mxu0 0.0
    %1094 = vmatprep.mubr.f32.mxu0 0.0
    %1095 = vmatmul.mubr.f32.gmra.mrb[0].mxu0 %v1028
    %v1096 = vpop.f32.mrb[0].mxu0
    %v1097 = vadd.f32 0.0, %v1096
    %v1098 = vpop.f32.mrb[0].mxu0
    %1099 = vdwg.mxu0
    %v1100 = vadd.f32 %v427, %v1097
    %v1101 = vxor.u32 %v1100, 2147483648
    %v1102 = vmul.f32 %v1101, 1.442695
    %v1103 = vpow.pop %v1102
    %v1104 = vadd.f32 %v1103, 1.0
    %v1105 = vrcp.pop %v1104
    %v1106 = vmul.f32 1.0, %v1105
    %v1107 = vtanh.pop %v1100
    %v1108 = vmul.f32 %v1106, %v1018
    %1110 = vrot.lane.b32.xlu0 %v1107, 64
    %v1111 = vpop.permute.xlu0 %1110
    %v1113 = vmul.f32 %v1106, %v1111
    %1115 = vrot.lane.b32.xlu0 %v1113, 32
    %v1116 = vpop.permute.xlu0 %1115
    %v1118 = vadd.f32 %v1108, %v1116
    %v1119 = vtanh.pop %v1118
    %1121 = vrot.lane.b32.xlu0 %v1119, 64
    %v1122 = vpop.permute.xlu0 %1121
    %v1124 = vmul.f32 %v1106, %v1122
    %1126 = vrot.lane.b32.xlu0 %v1124, 32
    %v1127 = vpop.permute.xlu0 %1126
    %v1128 = vsel %vm726, %v1127, 0
    %1130 = vmatprep.subr.mxu0 0.0
    %1131 = vmatpush1.msra.mxu0 %v123
    %1132 = vmatprep.subr.mxu0 0.0
    %1133 = vmatpush1.msra.mxu0 %v124
    %1134 = vmatprep.subr.mxu0 0.0
    %1135 = vmatpush1.msra.mxu0 %v125
    %1136 = vmatprep.subr.mxu0 0.0
    %1137 = vmatpush1.msra.mxu0 %v126
    %1138 = vmatprep.subr.mxu0 0.0
    %1139 = vmatpush1.msra.mxu0 0.0
    %1140 = vmatprep.subr.mxu0 0.0
    %1141 = vmatpush1.msra.mxu0 0.0
    %1142 = vmatprep.subr.mxu0 0.0
    %1143 = vmatpush1.msra.mxu0 0.0
    %1144 = vmatprep.subr.mxu0 0.0
    %1145 = vmatpush1.msra.mxu0 0.0
    %1146 = vmatprep.subr.mxu0 0.0
    %1147 = vmatpush1.msra.mxu0 0.0
    %1148 = vmatprep.subr.mxu0 0.0
    %1149 = vmatpush1.msra.mxu0 0.0
    %1150 = vmatprep.subr.mxu0 0.0
    %1151 = vmatpush1.msra.mxu0 0.0
    %1152 = vmatprep.subr.mxu0 0.0
    %1153 = vmatpush1.msra.mxu0 0.0
    %1154 = vmatprep.subr.mxu0 0.0
    %1155 = vmatpush1.msra.mxu0 0.0
    %1156 = vmatprep.subr.mxu0 0.0
    %1157 = vmatpush1.msra.mxu0 0.0
    %1158 = vmatprep.subr.mxu0 0.0
    %1159 = vmatpush1.msra.mxu0 0.0
    %1160 = vmatprep.subr.mxu0 0.0
    %1161 = vmatpush1.msra.mxu0 0.0
    %1162 = vmatprep.subr.mxu0 0.0
    %1163 = vmatpush1.msra.mxu0 0.0
    %1164 = vmatprep.subr.mxu0 0.0
    %1165 = vmatpush1.msra.mxu0 0.0
    %1166 = vmatprep.subr.mxu0 0.0
    %1167 = vmatpush1.msra.mxu0 0.0
    %1168 = vmatprep.subr.mxu0 0.0
    %1169 = vmatpush1.msra.mxu0 0.0
    %1170 = vmatprep.subr.mxu0 0.0
    %1171 = vmatpush1.msra.mxu0 0.0
    %1172 = vmatprep.subr.mxu0 0.0
    %1173 = vmatpush1.msra.mxu0 0.0
    %1174 = vmatprep.subr.mxu0 0.0
    %1175 = vmatpush1.msra.mxu0 0.0
    %1176 = vmatprep.subr.mxu0 0.0
    %1177 = vmatpush1.msra.mxu0 0.0
    %1178 = vmatprep.subr.mxu0 0.0
    %1179 = vmatpush1.msra.mxu0 0.0
    %1180 = vmatprep.subr.mxu0 0.0
    %1181 = vmatpush1.msra.mxu0 0.0
    %1182 = vmatprep.subr.mxu0 0.0
    %1183 = vmatpush1.msra.mxu0 0.0
    %1184 = vmatprep.subr.mxu0 0.0
    %1185 = vmatpush1.msra.mxu0 0.0
    %1186 = vmatprep.subr.mxu0 0.0
    %1187 = vmatpush1.msra.mxu0 0.0
    %1188 = vmatprep.subr.mxu0 0.0
    %1189 = vmatpush1.msra.mxu0 0.0
    %1190 = vmatprep.subr.mxu0 0.0
    %1191 = vmatpush1.msra.mxu0 0.0
    %1192 = vmatprep.subr.mxu0 0.0
    %1193 = vmatpush1.msra.mxu0 0.0
    %1194 = vmatprep.mubr.f32.mxu0 0.0
    %1195 = vmatmul.mubr.f32.gmra.mrb[0].mxu0 %v1128
    %v1196 = vpop.f32.mrb[0].mxu0
    %v1197 = vadd.f32 0.0, %v1196
    %v1198 = vpop.f32.mrb[0].mxu0
    %1199 = vdwg.mxu0
    %v1200 = vadd.f32 %v501, %v1197
    %v1201 = vxor.u32 %v1200, 2147483648
    %v1202 = vmul.f32 %v1201, 1.442695
    %v1203 = vpow.pop %v1202
    %v1204 = vadd.f32 %v1203, 1.0
    %v1205 = vrcp.pop %v1204
    %v1206 = vmul.f32 1.0, %v1205
    %v1207 = vtanh.pop %v1200
    %v1208 = vmul.f32 %v1206, %v1118
    %1210 = vrot.lane.b32.xlu0 %v1207, 64
    %v1211 = vpop.permute.xlu0 %1210
    %v1213 = vmul.f32 %v1206, %v1211
    %1215 = vrot.lane.b32.xlu0 %v1213, 32
    %v1216 = vpop.permute.xlu0 %1215
    %v1218 = vadd.f32 %v1208, %v1216
    %v1219 = vtanh.pop %v1218
    %1221 = vrot.lane.b32.xlu0 %v1219, 64
    %v1222 = vpop.permute.xlu0 %1221
    %v1224 = vmul.f32 %v1206, %v1222
    %1226 = vrot.lane.b32.xlu0 %v1224, 32
    %v1227 = vpop.permute.xlu0 %1226
    %v1228 = vsel %vm726, %v1227, 0
    %1230 = vmatprep.subr.mxu0 0.0
    %1231 = vmatpush1.msra.mxu0 %v123
    %1232 = vmatprep.subr.mxu0 0.0
    %1233 = vmatpush1.msra.mxu0 %v124
    %1234 = vmatprep.subr.mxu0 0.0
    %1235 = vmatpush1.msra.mxu0 %v125
    %1236 = vmatprep.subr.mxu0 0.0
    %1237 = vmatpush1.msra.mxu0 %v126
    %1238 = vmatprep.subr.mxu0 0.0
    %1239 = vmatpush1.msra.mxu0 0.0
    %1240 = vmatprep.subr.mxu0 0.0
    %1241 = vmatpush1.msra.mxu0 0.0
    %1242 = vmatprep.subr.mxu0 0.0
    %1243 = vmatpush1.msra.mxu0 0.0
    %1244 = vmatprep.subr.mxu0 0.0
    %1245 = vmatpush1.msra.mxu0 0.0
    %1246 = vmatprep.subr.mxu0 0.0
    %1247 = vmatpush1.msra.mxu0 0.0
    %1248 = vmatprep.subr.mxu0 0.0
    %1249 = vmatpush1.msra.mxu0 0.0
    %1250 = vmatprep.subr.mxu0 0.0
    %1251 = vmatpush1.msra.mxu0 0.0
    %1252 = vmatprep.subr.mxu0 0.0
    %1253 = vmatpush1.msra.mxu0 0.0
    %1254 = vmatprep.subr.mxu0 0.0
    %1255 = vmatpush1.msra.mxu0 0.0
    %1256 = vmatprep.subr.mxu0 0.0
    %1257 = vmatpush1.msra.mxu0 0.0
    %1258 = vmatprep.subr.mxu0 0.0
    %1259 = vmatpush1.msra.mxu0 0.0
    %1260 = vmatprep.subr.mxu0 0.0
    %1261 = vmatpush1.msra.mxu0 0.0
    %1262 = vmatprep.subr.mxu0 0.0
    %1263 = vmatpush1.msra.mxu0 0.0
    %1264 = vmatprep.subr.mxu0 0.0
    %1265 = vmatpush1.msra.mxu0 0.0
    %1266 = vmatprep.subr.mxu0 0.0
    %1267 = vmatpush1.msra.mxu0 0.0
    %1268 = vmatprep.subr.mxu0 0.0
    %1269 = vmatpush1.msra.mxu0 0.0
    %1270 = vmatprep.subr.mxu0 0.0
    %1271 = vmatpush1.msra.mxu0 0.0
    %1272 = vmatprep.subr.mxu0 0.0
    %1273 = vmatpush1.msra.mxu0 0.0
    %1274 = vmatprep.subr.mxu0 0.0
    %1275 = vmatpush1.msra.mxu0 0.0
    %1276 = vmatprep.subr.mxu0 0.0
    %1277 = vmatpush1.msra.mxu0 0.0
    %1278 = vmatprep.subr.mxu0 0.0
    %1279 = vmatpush1.msra.mxu0 0.0
    %1280 = vmatprep.subr.mxu0 0.0
    %1281 = vmatpush1.msra.mxu0 0.0
    %1282 = vmatprep.subr.mxu0 0.0
    %1283 = vmatpush1.msra.mxu0 0.0
    %1284 = vmatprep.subr.mxu0 0.0
    %1285 = vmatpush1.msra.mxu0 0.0
    %1286 = vmatprep.subr.mxu0 0.0
    %1287 = vmatpush1.msra.mxu0 0.0
    %1288 = vmatprep.subr.mxu0 0.0
    %1289 = vmatpush1.msra.mxu0 0.0
    %1290 = vmatprep.subr.mxu0 0.0
    %1291 = vmatpush1.msra.mxu0 0.0
    %1292 = vmatprep.subr.mxu0 0.0
    %1293 = vmatpush1.msra.mxu0 0.0
    %1294 = vmatprep.mubr.f32.mxu0 0.0
    %1295 = vmatmul.mubr.f32.gmra.mrb[0].mxu0 %v1228
    %v1296 = vpop.f32.mrb[0].mxu0
    %v1297 = vadd.f32 0.0, %v1296
    %v1298 = vpop.f32.mrb[0].mxu0
    %1299 = vdwg.mxu0
    %v1300 = vadd.f32 %v575, %v1297
    %v1301 = vxor.u32 %v1300, 2147483648
    %v1302 = vmul.f32 %v1301, 1.442695
    %v1303 = vpow.pop %v1302
    %v1304 = vadd.f32 %v1303, 1.0
    %v1305 = vrcp.pop %v1304
    %v1306 = vmul.f32 1.0, %v1305
    %v1307 = vtanh.pop %v1300
    %v1308 = vmul.f32 %v1306, %v1218
    %1310 = vrot.lane.b32.xlu0 %v1307, 64
    %v1311 = vpop.permute.xlu0 %1310
    %v1313 = vmul.f32 %v1306, %v1311
    %1315 = vrot.lane.b32.xlu0 %v1313, 32
    %v1316 = vpop.permute.xlu0 %1315
    %v1318 = vadd.f32 %v1308, %v1316
    %v1319 = vtanh.pop %v1318
    %1321 = vrot.lane.b32.xlu0 %v1319, 64
    %v1322 = vpop.permute.xlu0 %1321
    %v1324 = vmul.f32 %v1306, %v1322
    %1326 = vrot.lane.b32.xlu0 %v1324, 32
    %v1327 = vpop.permute.xlu0 %1326
    %v1328 = vsel %vm726, %v1327, 0
    %1330 = vmatprep.subr.mxu0 0.0
    %1331 = vmatpush1.msra.mxu0 %v123
    %1332 = vmatprep.subr.mxu0 0.0
    %1333 = vmatpush1.msra.mxu0 %v124
    %1334 = vmatprep.subr.mxu0 0.0
    %1335 = vmatpush1.msra.mxu0 %v125
    %1336 = vmatprep.subr.mxu0 0.0
    %1337 = vmatpush1.msra.mxu0 %v126
    %1338 = vmatprep.subr.mxu0 0.0
    %1339 = vmatpush1.msra.mxu0 0.0
    %1340 = vmatprep.subr.mxu0 0.0
    %1341 = vmatpush1.msra.mxu0 0.0
    %1342 = vmatprep.subr.mxu0 0.0
    %1343 = vmatpush1.msra.mxu0 0.0
    %1344 = vmatprep.subr.mxu0 0.0
    %1345 = vmatpush1.msra.mxu0 0.0
    %1346 = vmatprep.subr.mxu0 0.0
    %1347 = vmatpush1.msra.mxu0 0.0
    %1348 = vmatprep.subr.mxu0 0.0
    %1349 = vmatpush1.msra.mxu0 0.0
    %1350 = vmatprep.subr.mxu0 0.0
    %1351 = vmatpush1.msra.mxu0 0.0
    %1352 = vmatprep.subr.mxu0 0.0
    %1353 = vmatpush1.msra.mxu0 0.0
    %1354 = vmatprep.subr.mxu0 0.0
    %1355 = vmatpush1.msra.mxu0 0.0
    %1356 = vmatprep.subr.mxu0 0.0
    %1357 = vmatpush1.msra.mxu0 0.0
    %1358 = vmatprep.subr.mxu0 0.0
    %1359 = vmatpush1.msra.mxu0 0.0
    %1360 = vmatprep.subr.mxu0 0.0
    %1361 = vmatpush1.msra.mxu0 0.0
    %1362 = vmatprep.subr.mxu0 0.0
    %1363 = vmatpush1.msra.mxu0 0.0
    %1364 = vmatprep.subr.mxu0 0.0
    %1365 = vmatpush1.msra.mxu0 0.0
    %1366 = vmatprep.subr.mxu0 0.0
    %1367 = vmatpush1.msra.mxu0 0.0
    %1368 = vmatprep.subr.mxu0 0.0
    %1369 = vmatpush1.msra.mxu0 0.0
    %1370 = vmatprep.subr.mxu0 0.0
    %1371 = vmatpush1.msra.mxu0 0.0
    %1372 = vmatprep.subr.mxu0 0.0
    %1373 = vmatpush1.msra.mxu0 0.0
    %1374 = vmatprep.subr.mxu0 0.0
    %1375 = vmatpush1.msra.mxu0 0.0
    %1376 = vmatprep.subr.mxu0 0.0
    %1377 = vmatpush1.msra.mxu0 0.0
    %1378 = vmatprep.subr.mxu0 0.0
    %1379 = vmatpush1.msra.mxu0 0.0
    %1380 = vmatprep.subr.mxu0 0.0
    %1381 = vmatpush1.msra.mxu0 0.0
    %1382 = vmatprep.subr.mxu0 0.0
    %1383 = vmatpush1.msra.mxu0 0.0
    %1384 = vmatprep.subr.mxu0 0.0
    %1385 = vmatpush1.msra.mxu0 0.0
    %1386 = vmatprep.subr.mxu0 0.0
    %1387 = vmatpush1.msra.mxu0 0.0
    %1388 = vmatprep.subr.mxu0 0.0
    %1389 = vmatpush1.msra.mxu0 0.0
    %1390 = vmatprep.subr.mxu0 0.0
    %1391 = vmatpush1.msra.mxu0 0.0
    %1392 = vmatprep.subr.mxu0 0.0
    %1393 = vmatpush1.msra.mxu0 0.0
    %1394 = vmatprep.mubr.f32.mxu0 0.0
    %1395 = vmatmul.mubr.f32.gmra.mrb[0].mxu0 %v1328
    %v1396 = vpop.f32.mrb[0].mxu0
    %v1397 = vadd.f32 0.0, %v1396
    %v1398 = vpop.f32.mrb[0].mxu0
    %1399 = vdwg.mxu0
    %v1400 = vadd.f32 %v649, %v1397
    %v1401 = vxor.u32 %v1400, 2147483648
    %v1402 = vmul.f32 %v1401, 1.442695
    %v1403 = vpow.pop %v1402
    %v1404 = vadd.f32 %v1403, 1.0
    %v1405 = vrcp.pop %v1404
    %v1406 = vmul.f32 1.0, %v1405
    %v1407 = vtanh.pop %v1400
    %v1408 = vmul.f32 %v1406, %v1318
    %1410 = vrot.lane.b32.xlu0 %v1407, 64
    %v1411 = vpop.permute.xlu0 %1410
    %v1413 = vmul.f32 %v1406, %v1411
    %1415 = vrot.lane.b32.xlu0 %v1413, 32
    %v1416 = vpop.permute.xlu0 %1415
    %v1418 = vadd.f32 %v1408, %v1416
    %v1419 = vtanh.pop %v1418
    %1421 = vrot.lane.b32.xlu0 %v1419, 64
    %v1422 = vpop.permute.xlu0 %1421
    %v1424 = vmul.f32 %v1406, %v1422
    %1426 = vrot.lane.b32.xlu0 %v1424, 32
    %v1427 = vpop.permute.xlu0 %1426
    %v1428 = vsel %vm726, %v1427, 0
    %1430 = vmatprep.subr.mxu0 0.0
    %1431 = vmatpush1.msra.mxu0 %v123
    %1432 = vmatprep.subr.mxu0 0.0
    %1433 = vmatpush1.msra.mxu0 %v124
    %1434 = vmatprep.subr.mxu0 0.0
    %1435 = vmatpush1.msra.mxu0 %v125
    %1436 = vmatprep.subr.mxu0 0.0
    %1437 = vmatpush1.msra.mxu0 %v126
    %1438 = vmatprep.subr.mxu0 0.0
    %1439 = vmatpush1.msra.mxu0 0.0
    %1440 = vmatprep.subr.mxu0 0.0
    %1441 = vmatpush1.msra.mxu0 0.0
    %1442 = vmatprep.subr.mxu0 0.0
    %1443 = vmatpush1.msra.mxu0 0.0
    %1444 = vmatprep.subr.mxu0 0.0
    %1445 = vmatpush1.msra.mxu0 0.0
    %1446 = vmatprep.subr.mxu0 0.0
    %1447 = vmatpush1.msra.mxu0 0.0
    %1448 = vmatprep.subr.mxu0 0.0
    %1449 = vmatpush1.msra.mxu0 0.0
    %1450 = vmatprep.subr.mxu0 0.0
    %1451 = vmatpush1.msra.mxu0 0.0
    %1452 = vmatprep.subr.mxu0 0.0
    %1453 = vmatpush1.msra.mxu0 0.0
    %1454 = vmatprep.subr.mxu0 0.0
    %1455 = vmatpush1.msra.mxu0 0.0
    %1456 = vmatprep.subr.mxu0 0.0
    %1457 = vmatpush1.msra.mxu0 0.0
    %1458 = vmatprep.subr.mxu0 0.0
    %1459 = vmatpush1.msra.mxu0 0.0
    %1460 = vmatprep.subr.mxu0 0.0
    %1461 = vmatpush1.msra.mxu0 0.0
    %1462 = vmatprep.subr.mxu0 0.0
    %1463 = vmatpush1.msra.mxu0 0.0
    %1464 = vmatprep.subr.mxu0 0.0
    %1465 = vmatpush1.msra.mxu0 0.0
    %1466 = vmatprep.subr.mxu0 0.0
    %1467 = vmatpush1.msra.mxu0 0.0
    %1468 = vmatprep.subr.mxu0 0.0
    %1469 = vmatpush1.msra.mxu0 0.0
    %1470 = vmatprep.subr.mxu0 0.0
    %1471 = vmatpush1.msra.mxu0 0.0
    %1472 = vmatprep.subr.mxu0 0.0
    %1473 = vmatpush1.msra.mxu0 0.0
    %1474 = vmatprep.subr.mxu0 0.0
    %1475 = vmatpush1.msra.mxu0 0.0
    %1476 = vmatprep.subr.mxu0 0.0
    %1477 = vmatpush1.msra.mxu0 0.0
    %1478 = vmatprep.subr.mxu0 0.0
    %1479 = vmatpush1.msra.mxu0 0.0
    %1480 = vmatprep.subr.mxu0 0.0
    %1481 = vmatpush1.msra.mxu0 0.0
    %1482 = vmatprep.subr.mxu0 0.0
    %1483 = vmatpush1.msra.mxu0 0.0
    %1484 = vmatprep.subr.mxu0 0.0
    %1485 = vmatpush1.msra.mxu0 0.0
    %1486 = vmatprep.subr.mxu0 0.0
    %1487 = vmatpush1.msra.mxu0 0.0
    %1488 = vmatprep.subr.mxu0 0.0
    %1489 = vmatpush1.msra.mxu0 0.0
    %1490 = vmatprep.subr.mxu0 0.0
    %1491 = vmatpush1.msra.mxu0 0.0
    %1492 = vmatprep.subr.mxu0 0.0
    %1493 = vmatpush1.msra.mxu0 0.0
    %1494 = vmatprep.mubr.f32.mxu0 0.0
    %1495 = vmatmul.mubr.f32.gmra.mrb[0].mxu0 %v1428
    %v1496 = vpop.f32.mrb[0].mxu0
    %v1497 = vadd.f32 0.0, %v1496
    %v1498 = vpop.f32.mrb[0].mxu0
    %1499 = vdwg.mxu0
    %v1500 = vadd.f32 %v723, %v1497
    %v1501 = vxor.u32 %v1500, 2147483648
    %v1502 = vmul.f32 %v1501, 1.442695
    %v1503 = vpow.pop %v1502
    %v1504 = vadd.f32 %v1503, 1.0
    %v1505 = vrcp.pop %v1504
    %v1506 = vmul.f32 1.0, %v1505
    %v1507 = vtanh.pop %v1500
    %v1508 = vmul.f32 %v1506, %v1418
    %1510 = vrot.lane.b32.xlu0 %v1507, 64
    %v1511 = vpop.permute.xlu0 %1510
    %v1513 = vmul.f32 %v1506, %v1511
    %1515 = vrot.lane.b32.xlu0 %v1513, 32
    %v1516 = vpop.permute.xlu0 %1515
    %v1518 = vadd.f32 %v1508, %v1516
    %v1519 = vtanh.pop %v1518
    %1521 = vrot.lane.b32.xlu0 %v1519, 64
    %v1522 = vpop.permute.xlu0 %1521
    %v1524 = vmul.f32 %v1506, %v1522
    %v1525 = vld [vmem:[#allocation8] sm:$0xff]
    %v1526 = vld [vmem:[#allocation8 + $0x8] sm:$0xff]
    %v1527 = vld [vmem:[#allocation8 + $0x10] sm:$0xff]
    %v1528 = vld [vmem:[#allocation8 + $0x18] sm:$0xff]
    %v1529 = vld [vmem:[#allocation10] sm:$0xff]
    %v1530 = vld [vmem:[#allocation10 + $0x8] sm:$0xff]
    %v1531 = vld [vmem:[#allocation10 + $0x10] sm:$0xff]
    %v1532 = vld [vmem:[#allocation10 + $0x18] sm:$0xff]
    %v1533 = vld [vmem:[%s6] sm:$0x1]
    %v1535 = vlaneseq
    %v1536 = vshrl.u32 %v1535, 7
    %v1537 = vsub.s32 0, %v1536
    %v1538 = vrot.slane %v1533, %v1537
    %1540 = vmatprep.subr.mxu0 0.0
    %1541 = vmatpush1.msra.mxu0 %v1525
    %1542 = vmatprep.subr.mxu0 0.0
    %1543 = vmatpush1.msra.mxu0 %v1526
    %1544 = vmatprep.subr.mxu0 0.0
    %1545 = vmatpush1.msra.mxu0 %v1527
    %1546 = vmatprep.subr.mxu0 0.0
    %1547 = vmatpush1.msra.mxu0 %v1528
    %1548 = vmatprep.subr.mxu0 0.0
    %1549 = vmatpush1.msra.mxu0 0.0
    %1550 = vmatprep.subr.mxu0 0.0
    %1551 = vmatpush1.msra.mxu0 0.0
    %1552 = vmatprep.subr.mxu0 0.0
    %1553 = vmatpush1.msra.mxu0 0.0
    %1554 = vmatprep.subr.mxu0 0.0
    %1555 = vmatpush1.msra.mxu0 0.0
    %1556 = vmatprep.subr.mxu0 0.0
    %1557 = vmatpush1.msra.mxu0 0.0
    %1558 = vmatprep.subr.mxu0 0.0
    %1559 = vmatpush1.msra.mxu0 0.0
    %1560 = vmatprep.subr.mxu0 0.0
    %1561 = vmatpush1.msra.mxu0 0.0
    %1562 = vmatprep.subr.mxu0 0.0
    %1563 = vmatpush1.msra.mxu0 0.0
    %1564 = vmatprep.subr.mxu0 0.0
    %1565 = vmatpush1.msra.mxu0 0.0
    %1566 = vmatprep.subr.mxu0 0.0
    %1567 = vmatpush1.msra.mxu0 0.0
    %1568 = vmatprep.subr.mxu0 0.0
    %1569 = vmatpush1.msra.mxu0 0.0
    %1570 = vmatprep.subr.mxu0 0.0
    %1571 = vmatpush1.msra.mxu0 0.0
    %1572 = vmatprep.subr.mxu0 0.0
    %1573 = vmatpush1.msra.mxu0 0.0
    %1574 = vmatprep.subr.mxu0 0.0
    %1575 = vmatpush1.msra.mxu0 0.0
    %1576 = vmatprep.subr.mxu0 0.0
    %1577 = vmatpush1.msra.mxu0 0.0
    %1578 = vmatprep.subr.mxu0 0.0
    %1579 = vmatpush1.msra.mxu0 0.0
    %1580 = vmatprep.subr.mxu0 0.0
    %1581 = vmatpush1.msra.mxu0 0.0
    %1582 = vmatprep.subr.mxu0 0.0
    %1583 = vmatpush1.msra.mxu0 0.0
    %1584 = vmatprep.subr.mxu0 0.0
    %1585 = vmatpush1.msra.mxu0 0.0
    %1586 = vmatprep.subr.mxu0 0.0
    %1587 = vmatpush1.msra.mxu0 0.0
    %1588 = vmatprep.subr.mxu0 0.0
    %1589 = vmatpush1.msra.mxu0 0.0
    %1590 = vmatprep.subr.mxu0 0.0
    %1591 = vmatpush1.msra.mxu0 0.0
    %1592 = vmatprep.subr.mxu0 0.0
    %1593 = vmatpush1.msra.mxu0 0.0
    %1594 = vmatprep.subr.mxu0 0.0
    %1595 = vmatpush1.msra.mxu0 0.0
    %1596 = vmatprep.subr.mxu0 0.0
    %1597 = vmatpush1.msra.mxu0 0.0
    %1598 = vmatprep.subr.mxu0 0.0
    %1599 = vmatpush1.msra.mxu0 0.0
    %1600 = vmatprep.subr.mxu0 0.0
    %1601 = vmatpush1.msra.mxu0 0.0
    %1602 = vmatprep.subr.mxu0 0.0
    %1603 = vmatpush1.msra.mxu0 0.0
    %1604 = vmatprep.mubr.f32.mxu0 0.0
    %1605 = vmatmul.mubr.f32.gmra.mrb[0].mxu0 %v828
    %v1606 = vpop.f32.mrb[0].mxu0
    %v1607 = vadd.f32 %v1538, %v1606
    %v1608 = vpop.f32.mrb[0].mxu0
    %1609 = vdwg.mxu0
    %1610 = vmatprep.subr.mxu0 0.0
    %1611 = vmatpush1.msra.mxu0 %v1525
    %1612 = vmatprep.subr.mxu0 0.0
    %1613 = vmatpush1.msra.mxu0 %v1526
    %1614 = vmatprep.subr.mxu0 0.0
    %1615 = vmatpush1.msra.mxu0 %v1527
    %1616 = vmatprep.subr.mxu0 0.0
    %1617 = vmatpush1.msra.mxu0 %v1528
    %1618 = vmatprep.subr.mxu0 0.0
    %1619 = vmatpush1.msra.mxu0 0.0
    %1620 = vmatprep.subr.mxu0 0.0
    %1621 = vmatpush1.msra.mxu0 0.0
    %1622 = vmatprep.subr.mxu0 0.0
    %1623 = vmatpush1.msra.mxu0 0.0
    %1624 = vmatprep.subr.mxu0 0.0
    %1625 = vmatpush1.msra.mxu0 0.0
    %1626 = vmatprep.subr.mxu0 0.0
    %1627 = vmatpush1.msra.mxu0 0.0
    %1628 = vmatprep.subr.mxu0 0.0
    %1629 = vmatpush1.msra.mxu0 0.0
    %1630 = vmatprep.subr.mxu0 0.0
    %1631 = vmatpush1.msra.mxu0 0.0
    %1632 = vmatprep.subr.mxu0 0.0
    %1633 = vmatpush1.msra.mxu0 0.0
    %1634 = vmatprep.subr.mxu0 0.0
    %1635 = vmatpush1.msra.mxu0 0.0
    %1636 = vmatprep.subr.mxu0 0.0
    %1637 = vmatpush1.msra.mxu0 0.0
    %1638 = vmatprep.subr.mxu0 0.0
    %1639 = vmatpush1.msra.mxu0 0.0
    %1640 = vmatprep.subr.mxu0 0.0
    %1641 = vmatpush1.msra.mxu0 0.0
    %1642 = vmatprep.subr.mxu0 0.0
    %1643 = vmatpush1.msra.mxu0 0.0
    %1644 = vmatprep.subr.mxu0 0.0
    %1645 = vmatpush1.msra.mxu0 0.0
    %1646 = vmatprep.subr.mxu0 0.0
    %1647 = vmatpush1.msra.mxu0 0.0
    %1648 = vmatprep.subr.mxu0 0.0
    %1649 = vmatpush1.msra.mxu0 0.0
    %1650 = vmatprep.subr.mxu0 0.0
    %1651 = vmatpush1.msra.mxu0 0.0
    %1652 = vmatprep.subr.mxu0 0.0
    %1653 = vmatpush1.msra.mxu0 0.0
    %1654 = vmatprep.subr.mxu0 0.0
    %1655 = vmatpush1.msra.mxu0 0.0
    %1656 = vmatprep.subr.mxu0 0.0
    %1657 = vmatpush1.msra.mxu0 0.0
    %1658 = vmatprep.subr.mxu0 0.0
    %1659 = vmatpush1.msra.mxu0 0.0
    %1660 = vmatprep.subr.mxu0 0.0
    %1661 = vmatpush1.msra.mxu0 0.0
    %1662 = vmatprep.subr.mxu0 0.0
    %1663 = vmatpush1.msra.mxu0 0.0
    %1664 = vmatprep.subr.mxu0 0.0
    %1665 = vmatpush1.msra.mxu0 0.0
    %1666 = vmatprep.subr.mxu0 0.0
    %1667 = vmatpush1.msra.mxu0 0.0
    %1668 = vmatprep.subr.mxu0 0.0
    %1669 = vmatpush1.msra.mxu0 0.0
    %1670 = vmatprep.subr.mxu0 0.0
    %1671 = vmatpush1.msra.mxu0 0.0
    %1672 = vmatprep.subr.mxu0 0.0
    %1673 = vmatpush1.msra.mxu0 0.0
    %1674 = vmatprep.mubr.f32.mxu0 0.0
    %1675 = vmatmul.mubr.f32.gmra.mrb[0].mxu0 %v928
    %v1676 = vpop.f32.mrb[0].mxu0
    %v1677 = vadd.f32 %v1538, %v1676
    %v1678 = vpop.f32.mrb[0].mxu0
    %1679 = vdwg.mxu0
    %1680 = vmatprep.subr.mxu0 0.0
    %1681 = vmatpush1.msra.mxu0 %v1525
    %1682 = vmatprep.subr.mxu0 0.0
    %1683 = vmatpush1.msra.mxu0 %v1526
    %1684 = vmatprep.subr.mxu0 0.0
    %1685 = vmatpush1.msra.mxu0 %v1527
    %1686 = vmatprep.subr.mxu0 0.0
    %1687 = vmatpush1.msra.mxu0 %v1528
    %1688 = vmatprep.subr.mxu0 0.0
    %1689 = vmatpush1.msra.mxu0 0.0
    %1690 = vmatprep.subr.mxu0 0.0
    %1691 = vmatpush1.msra.mxu0 0.0
    %1692 = vmatprep.subr.mxu0 0.0
    %1693 = vmatpush1.msra.mxu0 0.0
    %1694 = vmatprep.subr.mxu0 0.0
    %1695 = vmatpush1.msra.mxu0 0.0
    %1696 = vmatprep.subr.mxu0 0.0
    %1697 = vmatpush1.msra.mxu0 0.0
    %1698 = vmatprep.subr.mxu0 0.0
    %1699 = vmatpush1.msra.mxu0 0.0
    %1700 = vmatprep.subr.mxu0 0.0
    %1701 = vmatpush1.msra.mxu0 0.0
    %1702 = vmatprep.subr.mxu0 0.0
    %1703 = vmatpush1.msra.mxu0 0.0
    %1704 = vmatprep.subr.mxu0 0.0
    %1705 = vmatpush1.msra.mxu0 0.0
    %1706 = vmatprep.subr.mxu0 0.0
    %1707 = vmatpush1.msra.mxu0 0.0
    %1708 = vmatprep.subr.mxu0 0.0
    %1709 = vmatpush1.msra.mxu0 0.0
    %1710 = vmatprep.subr.mxu0 0.0
    %1711 = vmatpush1.msra.mxu0 0.0
    %1712 = vmatprep.subr.mxu0 0.0
    %1713 = vmatpush1.msra.mxu0 0.0
    %1714 = vmatprep.subr.mxu0 0.0
    %1715 = vmatpush1.msra.mxu0 0.0
    %1716 = vmatprep.subr.mxu0 0.0
    %1717 = vmatpush1.msra.mxu0 0.0
    %1718 = vmatprep.subr.mxu0 0.0
    %1719 = vmatpush1.msra.mxu0 0.0
    %1720 = vmatprep.subr.mxu0 0.0
    %1721 = vmatpush1.msra.mxu0 0.0
    %1722 = vmatprep.subr.mxu0 0.0
    %1723 = vmatpush1.msra.mxu0 0.0
    %1724 = vmatprep.subr.mxu0 0.0
    %1725 = vmatpush1.msra.mxu0 0.0
    %1726 = vmatprep.subr.mxu0 0.0
    %1727 = vmatpush1.msra.mxu0 0.0
    %1728 = vmatprep.subr.mxu0 0.0
    %1729 = vmatpush1.msra.mxu0 0.0
    %1730 = vmatprep.subr.mxu0 0.0
    %1731 = vmatpush1.msra.mxu0 0.0
    %1732 = vmatprep.subr.mxu0 0.0
    %1733 = vmatpush1.msra.mxu0 0.0
    %1734 = vmatprep.subr.mxu0 0.0
    %1735 = vmatpush1.msra.mxu0 0.0
    %1736 = vmatprep.subr.mxu0 0.0
    %1737 = vmatpush1.msra.mxu0 0.0
    %1738 = vmatprep.subr.mxu0 0.0
    %1739 = vmatpush1.msra.mxu0 0.0
    %1740 = vmatprep.subr.mxu0 0.0
    %1741 = vmatpush1.msra.mxu0 0.0
    %1742 = vmatprep.subr.mxu0 0.0
    %1743 = vmatpush1.msra.mxu0 0.0
    %1744 = vmatprep.mubr.f32.mxu0 0.0
    %1745 = vmatmul.mubr.f32.gmra.mrb[0].mxu0 %v1028
    %v1746 = vpop.f32.mrb[0].mxu0
    %v1747 = vadd.f32 %v1538, %v1746
    %v1748 = vpop.f32.mrb[0].mxu0
    %1749 = vdwg.mxu0
    %1750 = vmatprep.subr.mxu0 0.0
    %1751 = vmatpush1.msra.mxu0 %v1525
    %1752 = vmatprep.subr.mxu0 0.0
    %1753 = vmatpush1.msra.mxu0 %v1526
    %1754 = vmatprep.subr.mxu0 0.0
    %1755 = vmatpush1.msra.mxu0 %v1527
    %1756 = vmatprep.subr.mxu0 0.0
    %1757 = vmatpush1.msra.mxu0 %v1528
    %1758 = vmatprep.subr.mxu0 0.0
    %1759 = vmatpush1.msra.mxu0 0.0
    %1760 = vmatprep.subr.mxu0 0.0
    %1761 = vmatpush1.msra.mxu0 0.0
    %1762 = vmatprep.subr.mxu0 0.0
    %1763 = vmatpush1.msra.mxu0 0.0
    %1764 = vmatprep.subr.mxu0 0.0
    %1765 = vmatpush1.msra.mxu0 0.0
    %1766 = vmatprep.subr.mxu0 0.0
    %1767 = vmatpush1.msra.mxu0 0.0
    %1768 = vmatprep.subr.mxu0 0.0
    %1769 = vmatpush1.msra.mxu0 0.0
    %1770 = vmatprep.subr.mxu0 0.0
    %1771 = vmatpush1.msra.mxu0 0.0
    %1772 = vmatprep.subr.mxu0 0.0
    %1773 = vmatpush1.msra.mxu0 0.0
    %1774 = vmatprep.subr.mxu0 0.0
    %1775 = vmatpush1.msra.mxu0 0.0
    %1776 = vmatprep.subr.mxu0 0.0
    %1777 = vmatpush1.msra.mxu0 0.0
    %1778 = vmatprep.subr.mxu0 0.0
    %1779 = vmatpush1.msra.mxu0 0.0
    %1780 = vmatprep.subr.mxu0 0.0
    %1781 = vmatpush1.msra.mxu0 0.0
    %1782 = vmatprep.subr.mxu0 0.0
    %1783 = vmatpush1.msra.mxu0 0.0
    %1784 = vmatprep.subr.mxu0 0.0
    %1785 = vmatpush1.msra.mxu0 0.0
    %1786 = vmatprep.subr.mxu0 0.0
    %1787 = vmatpush1.msra.mxu0 0.0
    %1788 = vmatprep.subr.mxu0 0.0
    %1789 = vmatpush1.msra.mxu0 0.0
    %1790 = vmatprep.subr.mxu0 0.0
    %1791 = vmatpush1.msra.mxu0 0.0
    %1792 = vmatprep.subr.mxu0 0.0
    %1793 = vmatpush1.msra.mxu0 0.0
    %1794 = vmatprep.subr.mxu0 0.0
    %1795 = vmatpush1.msra.mxu0 0.0
    %1796 = vmatprep.subr.mxu0 0.0
    %1797 = vmatpush1.msra.mxu0 0.0
    %1798 = vmatprep.subr.mxu0 0.0
    %1799 = vmatpush1.msra.mxu0 0.0
    %1800 = vmatprep.subr.mxu0 0.0
    %1801 = vmatpush1.msra.mxu0 0.0
    %1802 = vmatprep.subr.mxu0 0.0
    %1803 = vmatpush1.msra.mxu0 0.0
    %1804 = vmatprep.subr.mxu0 0.0
    %1805 = vmatpush1.msra.mxu0 0.0
    %1806 = vmatprep.subr.mxu0 0.0
    %1807 = vmatpush1.msra.mxu0 0.0
    %1808 = vmatprep.subr.mxu0 0.0
    %1809 = vmatpush1.msra.mxu0 0.0
    %1810 = vmatprep.subr.mxu0 0.0
    %1811 = vmatpush1.msra.mxu0 0.0
    %1812 = vmatprep.subr.mxu0 0.0
    %1813 = vmatpush1.msra.mxu0 0.0
    %1814 = vmatprep.mubr.f32.mxu0 0.0
    %1815 = vmatmul.mubr.f32.gmra.mrb[0].mxu0 %v1128
    %v1816 = vpop.f32.mrb[0].mxu0
    %v1817 = vadd.f32 %v1538, %v1816
    %v1818 = vpop.f32.mrb[0].mxu0
    %1819 = vdwg.mxu0
    %1820 = vmatprep.subr.mxu0 0.0
    %1821 = vmatpush1.msra.mxu0 %v1525
    %1822 = vmatprep.subr.mxu0 0.0
    %1823 = vmatpush1.msra.mxu0 %v1526
    %1824 = vmatprep.subr.mxu0 0.0
    %1825 = vmatpush1.msra.mxu0 %v1527
    %1826 = vmatprep.subr.mxu0 0.0
    %1827 = vmatpush1.msra.mxu0 %v1528
    %1828 = vmatprep.subr.mxu0 0.0
    %1829 = vmatpush1.msra.mxu0 0.0
    %1830 = vmatprep.subr.mxu0 0.0
    %1831 = vmatpush1.msra.mxu0 0.0
    %1832 = vmatprep.subr.mxu0 0.0
    %1833 = vmatpush1.msra.mxu0 0.0
    %1834 = vmatprep.subr.mxu0 0.0
    %1835 = vmatpush1.msra.mxu0 0.0
    %1836 = vmatprep.subr.mxu0 0.0
    %1837 = vmatpush1.msra.mxu0 0.0
    %1838 = vmatprep.subr.mxu0 0.0
    %1839 = vmatpush1.msra.mxu0 0.0
    %1840 = vmatprep.subr.mxu0 0.0
    %1841 = vmatpush1.msra.mxu0 0.0
    %1842 = vmatprep.subr.mxu0 0.0
    %1843 = vmatpush1.msra.mxu0 0.0
    %1844 = vmatprep.subr.mxu0 0.0
    %1845 = vmatpush1.msra.mxu0 0.0
    %1846 = vmatprep.subr.mxu0 0.0
    %1847 = vmatpush1.msra.mxu0 0.0
    %1848 = vmatprep.subr.mxu0 0.0
    %1849 = vmatpush1.msra.mxu0 0.0
    %1850 = vmatprep.subr.mxu0 0.0
    %1851 = vmatpush1.msra.mxu0 0.0
    %1852 = vmatprep.subr.mxu0 0.0
    %1853 = vmatpush1.msra.mxu0 0.0
    %1854 = vmatprep.subr.mxu0 0.0
    %1855 = vmatpush1.msra.mxu0 0.0
    %1856 = vmatprep.subr.mxu0 0.0
    %1857 = vmatpush1.msra.mxu0 0.0
    %1858 = vmatprep.subr.mxu0 0.0
    %1859 = vmatpush1.msra.mxu0 0.0
    %1860 = vmatprep.subr.mxu0 0.0
    %1861 = vmatpush1.msra.mxu0 0.0
    %1862 = vmatprep.subr.mxu0 0.0
    %1863 = vmatpush1.msra.mxu0 0.0
    %1864 = vmatprep.subr.mxu0 0.0
    %1865 = vmatpush1.msra.mxu0 0.0
    %1866 = vmatprep.subr.mxu0 0.0
    %1867 = vmatpush1.msra.mxu0 0.0
    %1868 = vmatprep.subr.mxu0 0.0
    %1869 = vmatpush1.msra.mxu0 0.0
    %1870 = vmatprep.subr.mxu0 0.0
    %1871 = vmatpush1.msra.mxu0 0.0
    %1872 = vmatprep.subr.mxu0 0.0
    %1873 = vmatpush1.msra.mxu0 0.0
    %1874 = vmatprep.subr.mxu0 0.0
    %1875 = vmatpush1.msra.mxu0 0.0
    %1876 = vmatprep.subr.mxu0 0.0
    %1877 = vmatpush1.msra.mxu0 0.0
    %1878 = vmatprep.subr.mxu0 0.0
    %1879 = vmatpush1.msra.mxu0 0.0
    %1880 = vmatprep.subr.mxu0 0.0
    %1881 = vmatpush1.msra.mxu0 0.0
    %1882 = vmatprep.subr.mxu0 0.0
    %1883 = vmatpush1.msra.mxu0 0.0
    %1884 = vmatprep.mubr.f32.mxu0 0.0
    %1885 = vmatmul.mubr.f32.gmra.mrb[0].mxu0 %v1228
    %v1886 = vpop.f32.mrb[0].mxu0
    %v1887 = vadd.f32 %v1538, %v1886
    %v1888 = vpop.f32.mrb[0].mxu0
    %1889 = vdwg.mxu0
    %1890 = vmatprep.subr.mxu0 0.0
    %1891 = vmatpush1.msra.mxu0 %v1525
    %1892 = vmatprep.subr.mxu0 0.0
    %1893 = vmatpush1.msra.mxu0 %v1526
    %1894 = vmatprep.subr.mxu0 0.0
    %1895 = vmatpush1.msra.mxu0 %v1527
    %1896 = vmatprep.subr.mxu0 0.0
    %1897 = vmatpush1.msra.mxu0 %v1528
    %1898 = vmatprep.subr.mxu0 0.0
    %1899 = vmatpush1.msra.mxu0 0.0
    %1900 = vmatprep.subr.mxu0 0.0
    %1901 = vmatpush1.msra.mxu0 0.0
    %1902 = vmatprep.subr.mxu0 0.0
    %1903 = vmatpush1.msra.mxu0 0.0
    %1904 = vmatprep.subr.mxu0 0.0
    %1905 = vmatpush1.msra.mxu0 0.0
    %1906 = vmatprep.subr.mxu0 0.0
    %1907 = vmatpush1.msra.mxu0 0.0
    %1908 = vmatprep.subr.mxu0 0.0
    %1909 = vmatpush1.msra.mxu0 0.0
    %1910 = vmatprep.subr.mxu0 0.0
    %1911 = vmatpush1.msra.mxu0 0.0
    %1912 = vmatprep.subr.mxu0 0.0
    %1913 = vmatpush1.msra.mxu0 0.0
    %1914 = vmatprep.subr.mxu0 0.0
    %1915 = vmatpush1.msra.mxu0 0.0
    %1916 = vmatprep.subr.mxu0 0.0
    %1917 = vmatpush1.msra.mxu0 0.0
    %1918 = vmatprep.subr.mxu0 0.0
    %1919 = vmatpush1.msra.mxu0 0.0
    %1920 = vmatprep.subr.mxu0 0.0
    %1921 = vmatpush1.msra.mxu0 0.0
    %1922 = vmatprep.subr.mxu0 0.0
    %1923 = vmatpush1.msra.mxu0 0.0
    %1924 = vmatprep.subr.mxu0 0.0
    %1925 = vmatpush1.msra.mxu0 0.0
    %1926 = vmatprep.subr.mxu0 0.0
    %1927 = vmatpush1.msra.mxu0 0.0
    %1928 = vmatprep.subr.mxu0 0.0
    %1929 = vmatpush1.msra.mxu0 0.0
    %1930 = vmatprep.subr.mxu0 0.0
    %1931 = vmatpush1.msra.mxu0 0.0
    %1932 = vmatprep.subr.mxu0 0.0
    %1933 = vmatpush1.msra.mxu0 0.0
    %1934 = vmatprep.subr.mxu0 0.0
    %1935 = vmatpush1.msra.mxu0 0.0
    %1936 = vmatprep.subr.mxu0 0.0
    %1937 = vmatpush1.msra.mxu0 0.0
    %1938 = vmatprep.subr.mxu0 0.0
    %1939 = vmatpush1.msra.mxu0 0.0
    %1940 = vmatprep.subr.mxu0 0.0
    %1941 = vmatpush1.msra.mxu0 0.0
    %1942 = vmatprep.subr.mxu0 0.0
    %1943 = vmatpush1.msra.mxu0 0.0
    %1944 = vmatprep.subr.mxu0 0.0
    %1945 = vmatpush1.msra.mxu0 0.0
    %1946 = vmatprep.subr.mxu0 0.0
    %1947 = vmatpush1.msra.mxu0 0.0
    %1948 = vmatprep.subr.mxu0 0.0
    %1949 = vmatpush1.msra.mxu0 0.0
    %1950 = vmatprep.subr.mxu0 0.0
    %1951 = vmatpush1.msra.mxu0 0.0
    %1952 = vmatprep.subr.mxu0 0.0
    %1953 = vmatpush1.msra.mxu0 0.0
    %1954 = vmatprep.mubr.f32.mxu0 0.0
    %1955 = vmatmul.mubr.f32.gmra.mrb[0].mxu0 %v1328
    %v1956 = vpop.f32.mrb[0].mxu0
    %v1957 = vadd.f32 %v1538, %v1956
    %v1958 = vpop.f32.mrb[0].mxu0
    %1959 = vdwg.mxu0
    %1960 = vmatprep.subr.mxu0 0.0
    %1961 = vmatpush1.msra.mxu0 %v1525
    %1962 = vmatprep.subr.mxu0 0.0
    %1963 = vmatpush1.msra.mxu0 %v1526
    %1964 = vmatprep.subr.mxu0 0.0
    %1965 = vmatpush1.msra.mxu0 %v1527
    %1966 = vmatprep.subr.mxu0 0.0
    %1967 = vmatpush1.msra.mxu0 %v1528
    %1968 = vmatprep.subr.mxu0 0.0
    %1969 = vmatpush1.msra.mxu0 0.0
    %1970 = vmatprep.subr.mxu0 0.0
    %1971 = vmatpush1.msra.mxu0 0.0
    %1972 = vmatprep.subr.mxu0 0.0
    %1973 = vmatpush1.msra.mxu0 0.0
    %1974 = vmatprep.subr.mxu0 0.0
    %1975 = vmatpush1.msra.mxu0 0.0
    %1976 = vmatprep.subr.mxu0 0.0
    %1977 = vmatpush1.msra.mxu0 0.0
    %1978 = vmatprep.subr.mxu0 0.0
    %1979 = vmatpush1.msra.mxu0 0.0
    %1980 = vmatprep.subr.mxu0 0.0
    %1981 = vmatpush1.msra.mxu0 0.0
    %1982 = vmatprep.subr.mxu0 0.0
    %1983 = vmatpush1.msra.mxu0 0.0
    %1984 = vmatprep.subr.mxu0 0.0
    %1985 = vmatpush1.msra.mxu0 0.0
    %1986 = vmatprep.subr.mxu0 0.0
    %1987 = vmatpush1.msra.mxu0 0.0
    %1988 = vmatprep.subr.mxu0 0.0
    %1989 = vmatpush1.msra.mxu0 0.0
    %1990 = vmatprep.subr.mxu0 0.0
    %1991 = vmatpush1.msra.mxu0 0.0
    %1992 = vmatprep.subr.mxu0 0.0
    %1993 = vmatpush1.msra.mxu0 0.0
    %1994 = vmatprep.subr.mxu0 0.0
    %1995 = vmatpush1.msra.mxu0 0.0
    %1996 = vmatprep.subr.mxu0 0.0
    %1997 = vmatpush1.msra.mxu0 0.0
    %1998 = vmatprep.subr.mxu0 0.0
    %1999 = vmatpush1.msra.mxu0 0.0
    %2000 = vmatprep.subr.mxu0 0.0
    %2001 = vmatpush1.msra.mxu0 0.0
    %2002 = vmatprep.subr.mxu0 0.0
    %2003 = vmatpush1.msra.mxu0 0.0
    %2004 = vmatprep.subr.mxu0 0.0
    %2005 = vmatpush1.msra.mxu0 0.0
    %2006 = vmatprep.subr.mxu0 0.0
    %2007 = vmatpush1.msra.mxu0 0.0
    %2008 = vmatprep.subr.mxu0 0.0
    %2009 = vmatpush1.msra.mxu0 0.0
    %2010 = vmatprep.subr.mxu0 0.0
    %2011 = vmatpush1.msra.mxu0 0.0
    %2012 = vmatprep.subr.mxu0 0.0
    %2013 = vmatpush1.msra.mxu0 0.0
    %2014 = vmatprep.subr.mxu0 0.0
    %2015 = vmatpush1.msra.mxu0 0.0
    %2016 = vmatprep.subr.mxu0 0.0
    %2017 = vmatpush1.msra.mxu0 0.0
    %2018 = vmatprep.subr.mxu0 0.0
    %2019 = vmatpush1.msra.mxu0 0.0
    %2020 = vmatprep.subr.mxu0 0.0
    %2021 = vmatpush1.msra.mxu0 0.0
    %2022 = vmatprep.subr.mxu0 0.0
    %2023 = vmatpush1.msra.mxu0 0.0
    %2024 = vmatprep.mubr.f32.mxu0 0.0
    %2025 = vmatmul.mubr.f32.gmra.mrb[0].mxu0 %v1428
    %v2026 = vpop.f32.mrb[0].mxu0
    %v2027 = vadd.f32 %v1538, %v2026
    %v2028 = vpop.f32.mrb[0].mxu0
    %2029 = vdwg.mxu0
    %2031 = vrot.lane.b32.xlu0 %v1524, 32
    %v2032 = vpop.permute.xlu0 %2031
    %v2033 = vsel %vm726, %v2032, 0
    %2035 = vmatprep.subr.mxu0 0.0
    %2036 = vmatpush1.msra.mxu0 %v1525
    %2037 = vmatprep.subr.mxu0 0.0
    %2038 = vmatpush1.msra.mxu0 %v1526
    %2039 = vmatprep.subr.mxu0 0.0
    %2040 = vmatpush1.msra.mxu0 %v1527
    %2041 = vmatprep.subr.mxu0 0.0
    %2042 = vmatpush1.msra.mxu0 %v1528
    %2043 = vmatprep.subr.mxu0 0.0
    %2044 = vmatpush1.msra.mxu0 0.0
    %2045 = vmatprep.subr.mxu0 0.0
    %2046 = vmatpush1.msra.mxu0 0.0
    %2047 = vmatprep.subr.mxu0 0.0
    %2048 = vmatpush1.msra.mxu0 0.0
    %2049 = vmatprep.subr.mxu0 0.0
    %2050 = vmatpush1.msra.mxu0 0.0
    %2051 = vmatprep.subr.mxu0 0.0
    %2052 = vmatpush1.msra.mxu0 0.0
    %2053 = vmatprep.subr.mxu0 0.0
    %2054 = vmatpush1.msra.mxu0 0.0
    %2055 = vmatprep.subr.mxu0 0.0
    %2056 = vmatpush1.msra.mxu0 0.0
    %2057 = vmatprep.subr.mxu0 0.0
    %2058 = vmatpush1.msra.mxu0 0.0
    %2059 = vmatprep.subr.mxu0 0.0
    %2060 = vmatpush1.msra.mxu0 0.0
    %2061 = vmatprep.subr.mxu0 0.0
    %2062 = vmatpush1.msra.mxu0 0.0
    %2063 = vmatprep.subr.mxu0 0.0
    %2064 = vmatpush1.msra.mxu0 0.0
    %2065 = vmatprep.subr.mxu0 0.0
    %2066 = vmatpush1.msra.mxu0 0.0
    %2067 = vmatprep.subr.mxu0 0.0
    %2068 = vmatpush1.msra.mxu0 0.0
    %2069 = vmatprep.subr.mxu0 0.0
    %2070 = vmatpush1.msra.mxu0 0.0
    %2071 = vmatprep.subr.mxu0 0.0
    %2072 = vmatpush1.msra.mxu0 0.0
    %2073 = vmatprep.subr.mxu0 0.0
    %2074 = vmatpush1.msra.mxu0 0.0
    %2075 = vmatprep.subr.mxu0 0.0
    %2076 = vmatpush1.msra.mxu0 0.0
    %2077 = vmatprep.subr.mxu0 0.0
    %2078 = vmatpush1.msra.mxu0 0.0
    %2079 = vmatprep.subr.mxu0 0.0
    %2080 = vmatpush1.msra.mxu0 0.0
    %2081 = vmatprep.subr.mxu0 0.0
    %2082 = vmatpush1.msra.mxu0 0.0
    %2083 = vmatprep.subr.mxu0 0.0
    %2084 = vmatpush1.msra.mxu0 0.0
    %2085 = vmatprep.subr.mxu0 0.0
    %2086 = vmatpush1.msra.mxu0 0.0
    %2087 = vmatprep.subr.mxu0 0.0
    %2088 = vmatpush1.msra.mxu0 0.0
    %2089 = vmatprep.subr.mxu0 0.0
    %2090 = vmatpush1.msra.mxu0 0.0
    %2091 = vmatprep.subr.mxu0 0.0
    %2092 = vmatpush1.msra.mxu0 0.0
    %2093 = vmatprep.subr.mxu0 0.0
    %2094 = vmatpush1.msra.mxu0 0.0
    %2095 = vmatprep.subr.mxu0 0.0
    %2096 = vmatpush1.msra.mxu0 0.0
    %2097 = vmatprep.subr.mxu0 0.0
    %2098 = vmatpush1.msra.mxu0 0.0
    %2099 = vmatprep.mubr.f32.mxu0 0.0
    %2100 = vmatmul.mubr.f32.gmra.mrb[0].mxu0 %v2033
    %v2101 = vpop.f32.mrb[0].mxu0
    %v2102 = vadd.f32 %v1538, %v2101
    %v2103 = vpop.f32.mrb[0].mxu0
    %2104 = vdwg.mxu0
    %2105 = vmatprep.subr.mxu0 0.0
    %2106 = vmatpush1.msra.mxu0 %v1529
    %2107 = vmatprep.subr.mxu0 0.0
    %2108 = vmatpush1.msra.mxu0 %v1530
    %2109 = vmatprep.subr.mxu0 0.0
    %2110 = vmatpush1.msra.mxu0 %v1531
    %2111 = vmatprep.subr.mxu0 0.0
    %2112 = vmatpush1.msra.mxu0 %v1532
    %2113 = vmatprep.subr.mxu0 0.0
    %2114 = vmatpush1.msra.mxu0 0.0
    %2115 = vmatprep.subr.mxu0 0.0
    %2116 = vmatpush1.msra.mxu0 0.0
    %2117 = vmatprep.subr.mxu0 0.0
    %2118 = vmatpush1.msra.mxu0 0.0
    %2119 = vmatprep.subr.mxu0 0.0
    %2120 = vmatpush1.msra.mxu0 0.0
    %2121 = vmatprep.subr.mxu0 0.0
    %2122 = vmatpush1.msra.mxu0 0.0
    %2123 = vmatprep.subr.mxu0 0.0
    %2124 = vmatpush1.msra.mxu0 0.0
    %2125 = vmatprep.subr.mxu0 0.0
    %2126 = vmatpush1.msra.mxu0 0.0
    %2127 = vmatprep.subr.mxu0 0.0
    %2128 = vmatpush1.msra.mxu0 0.0
    %2129 = vmatprep.subr.mxu0 0.0
    %2130 = vmatpush1.msra.mxu0 0.0
    %2131 = vmatprep.subr.mxu0 0.0
    %2132 = vmatpush1.msra.mxu0 0.0
    %2133 = vmatprep.subr.mxu0 0.0
    %2134 = vmatpush1.msra.mxu0 0.0
    %2135 = vmatprep.subr.mxu0 0.0
    %2136 = vmatpush1.msra.mxu0 0.0
    %2137 = vmatprep.subr.mxu0 0.0
    %2138 = vmatpush1.msra.mxu0 0.0
    %2139 = vmatprep.subr.mxu0 0.0
    %2140 = vmatpush1.msra.mxu0 0.0
    %2141 = vmatprep.subr.mxu0 0.0
    %2142 = vmatpush1.msra.mxu0 0.0
    %2143 = vmatprep.subr.mxu0 0.0
    %2144 = vmatpush1.msra.mxu0 0.0
    %2145 = vmatprep.subr.mxu0 0.0
    %2146 = vmatpush1.msra.mxu0 0.0
    %2147 = vmatprep.subr.mxu0 0.0
    %2148 = vmatpush1.msra.mxu0 0.0
    %2149 = vmatprep.subr.mxu0 0.0
    %2150 = vmatpush1.msra.mxu0 0.0
    %2151 = vmatprep.subr.mxu0 0.0
    %2152 = vmatpush1.msra.mxu0 0.0
    %2153 = vmatprep.subr.mxu0 0.0
    %2154 = vmatpush1.msra.mxu0 0.0
    %2155 = vmatprep.subr.mxu0 0.0
    %2156 = vmatpush1.msra.mxu0 0.0
    %2157 = vmatprep.subr.mxu0 0.0
    %2158 = vmatpush1.msra.mxu0 0.0
    %2159 = vmatprep.subr.mxu0 0.0
    %2160 = vmatpush1.msra.mxu0 0.0
    %2161 = vmatprep.subr.mxu0 0.0
    %2162 = vmatpush1.msra.mxu0 0.0
    %2163 = vmatprep.subr.mxu0 0.0
    %2164 = vmatpush1.msra.mxu0 0.0
    %2165 = vmatprep.subr.mxu0 0.0
    %2166 = vmatpush1.msra.mxu0 0.0
    %2167 = vmatprep.subr.mxu0 0.0
    %2168 = vmatpush1.msra.mxu0 0.0
    %2169 = vmatprep.mubr.f32.mxu0 0.0
    %2170 = vmatmul.mubr.f32.gmra.mrb[0].mxu0 %v728
    %v2171 = vpop.f32.mrb[0].mxu0
    %v2172 = vadd.f32 0.0, %v2171
    %v2173 = vpop.f32.mrb[0].mxu0
    %2174 = vdwg.mxu0
    %v2175 = vadd.f32 %v1607, %v2172
    %v2176 = vxor.u32 %v2175, 2147483648
    %v2177 = vmul.f32 %v2176, 1.442695
    %v2178 = vpow.pop %v2177
    %v2179 = vadd.f32 %v2178, 1.0
    %v2180 = vrcp.pop %v2179
    %v2181 = vmul.f32 1.0, %v2180
    %v2182 = vtanh.pop %v2175
    %v2183 = vmul.f32 %v2181, 0.0
    %2185 = vrot.lane.b32.xlu0 %v2182, 64
    %v2186 = vpop.permute.xlu0 %2185
    %v2188 = vmul.f32 %v2181, %v2186
    %2190 = vrot.lane.b32.xlu0 %v2188, 32
    %v2191 = vpop.permute.xlu0 %2190
    %v2193 = vadd.f32 %v2183, %v2191
    %v2194 = vtanh.pop %v2193
    %2196 = vrot.lane.b32.xlu0 %v2194, 64
    %v2197 = vpop.permute.xlu0 %2196
    %v2199 = vmul.f32 %v2181, %v2197
    %2201 = vrot.lane.b32.xlu0 %v2199, 32
    %v2202 = vpop.permute.xlu0 %2201
    %v2203 = vsel %vm726, %v2202, 0
    %2205 = vmatprep.subr.mxu0 0.0
    %2206 = vmatpush1.msra.mxu0 %v1529
    %2207 = vmatprep.subr.mxu0 0.0
    %2208 = vmatpush1.msra.mxu0 %v1530
    %2209 = vmatprep.subr.mxu0 0.0
    %2210 = vmatpush1.msra.mxu0 %v1531
    %2211 = vmatprep.subr.mxu0 0.0
    %2212 = vmatpush1.msra.mxu0 %v1532
    %2213 = vmatprep.subr.mxu0 0.0
    %2214 = vmatpush1.msra.mxu0 0.0
    %2215 = vmatprep.subr.mxu0 0.0
    %2216 = vmatpush1.msra.mxu0 0.0
    %2217 = vmatprep.subr.mxu0 0.0
    %2218 = vmatpush1.msra.mxu0 0.0
    %2219 = vmatprep.subr.mxu0 0.0
    %2220 = vmatpush1.msra.mxu0 0.0
    %2221 = vmatprep.subr.mxu0 0.0
    %2222 = vmatpush1.msra.mxu0 0.0
    %2223 = vmatprep.subr.mxu0 0.0
    %2224 = vmatpush1.msra.mxu0 0.0
    %2225 = vmatprep.subr.mxu0 0.0
    %2226 = vmatpush1.msra.mxu0 0.0
    %2227 = vmatprep.subr.mxu0 0.0
    %2228 = vmatpush1.msra.mxu0 0.0
    %2229 = vmatprep.subr.mxu0 0.0
    %2230 = vmatpush1.msra.mxu0 0.0
    %2231 = vmatprep.subr.mxu0 0.0
    %2232 = vmatpush1.msra.mxu0 0.0
    %2233 = vmatprep.subr.mxu0 0.0
    %2234 = vmatpush1.msra.mxu0 0.0
    %2235 = vmatprep.subr.mxu0 0.0
    %2236 = vmatpush1.msra.mxu0 0.0
    %2237 = vmatprep.subr.mxu0 0.0
    %2238 = vmatpush1.msra.mxu0 0.0
    %2239 = vmatprep.subr.mxu0 0.0
    %2240 = vmatpush1.msra.mxu0 0.0
    %2241 = vmatprep.subr.mxu0 0.0
    %2242 = vmatpush1.msra.mxu0 0.0
    %2243 = vmatprep.subr.mxu0 0.0
    %2244 = vmatpush1.msra.mxu0 0.0
    %2245 = vmatprep.subr.mxu0 0.0
    %2246 = vmatpush1.msra.mxu0 0.0
    %2247 = vmatprep.subr.mxu0 0.0
    %2248 = vmatpush1.msra.mxu0 0.0
    %2249 = vmatprep.subr.mxu0 0.0
    %2250 = vmatpush1.msra.mxu0 0.0
    %2251 = vmatprep.subr.mxu0 0.0
    %2252 = vmatpush1.msra.mxu0 0.0
    %2253 = vmatprep.subr.mxu0 0.0
    %2254 = vmatpush1.msra.mxu0 0.0
    %2255 = vmatprep.subr.mxu0 0.0
    %2256 = vmatpush1.msra.mxu0 0.0
    %2257 = vmatprep.subr.mxu0 0.0
    %2258 = vmatpush1.msra.mxu0 0.0
    %2259 = vmatprep.subr.mxu0 0.0
    %2260 = vmatpush1.msra.mxu0 0.0
    %2261 = vmatprep.subr.mxu0 0.0
    %2262 = vmatpush1.msra.mxu0 0.0
    %2263 = vmatprep.subr.mxu0 0.0
    %2264 = vmatpush1.msra.mxu0 0.0
    %2265 = vmatprep.subr.mxu0 0.0
    %2266 = vmatpush1.msra.mxu0 0.0
    %2267 = vmatprep.subr.mxu0 0.0
    %2268 = vmatpush1.msra.mxu0 0.0
    %2269 = vmatprep.mubr.f32.mxu0 0.0
    %2270 = vmatmul.mubr.f32.gmra.mrb[0].mxu0 %v2203
    %v2271 = vpop.f32.mrb[0].mxu0
    %v2272 = vadd.f32 0.0, %v2271
    %v2273 = vpop.f32.mrb[0].mxu0
    %2274 = vdwg.mxu0
    %v2275 = vadd.f32 %v1677, %v2272
    %v2276 = vxor.u32 %v2275, 2147483648
    %v2277 = vmul.f32 %v2276, 1.442695
    %v2278 = vpow.pop %v2277
    %v2279 = vadd.f32 %v2278, 1.0
    %v2280 = vrcp.pop %v2279
    %v2281 = vmul.f32 1.0, %v2280
    %v2282 = vtanh.pop %v2275
    %v2283 = vmul.f32 %v2281, %v2193
    %2285 = vrot.lane.b32.xlu0 %v2282, 64
    %v2286 = vpop.permute.xlu0 %2285
    %v2288 = vmul.f32 %v2281, %v2286
    %2290 = vrot.lane.b32.xlu0 %v2288, 32
    %v2291 = vpop.permute.xlu0 %2290
    %v2293 = vadd.f32 %v2283, %v2291
    %v2294 = vtanh.pop %v2293
    %2296 = vrot.lane.b32.xlu0 %v2294, 64
    %v2297 = vpop.permute.xlu0 %2296
    %v2299 = vmul.f32 %v2281, %v2297
    %2301 = vrot.lane.b32.xlu0 %v2299, 32
    %v2302 = vpop.permute.xlu0 %2301
    %v2303 = vsel %vm726, %v2302, 0
    %2305 = vmatprep.subr.mxu0 0.0
    %2306 = vmatpush1.msra.mxu0 %v1529
    %2307 = vmatprep.subr.mxu0 0.0
    %2308 = vmatpush1.msra.mxu0 %v1530
    %2309 = vmatprep.subr.mxu0 0.0
    %2310 = vmatpush1.msra.mxu0 %v1531
    %2311 = vmatprep.subr.mxu0 0.0
    %2312 = vmatpush1.msra.mxu0 %v1532
    %2313 = vmatprep.subr.mxu0 0.0
    %2314 = vmatpush1.msra.mxu0 0.0
    %2315 = vmatprep.subr.mxu0 0.0
    %2316 = vmatpush1.msra.mxu0 0.0
    %2317 = vmatprep.subr.mxu0 0.0
    %2318 = vmatpush1.msra.mxu0 0.0
    %2319 = vmatprep.subr.mxu0 0.0
    %2320 = vmatpush1.msra.mxu0 0.0
    %2321 = vmatprep.subr.mxu0 0.0
    %2322 = vmatpush1.msra.mxu0 0.0
    %2323 = vmatprep.subr.mxu0 0.0
    %2324 = vmatpush1.msra.mxu0 0.0
    %2325 = vmatprep.subr.mxu0 0.0
    %2326 = vmatpush1.msra.mxu0 0.0
    %2327 = vmatprep.subr.mxu0 0.0
    %2328 = vmatpush1.msra.mxu0 0.0
    %2329 = vmatprep.subr.mxu0 0.0
    %2330 = vmatpush1.msra.mxu0 0.0
    %2331 = vmatprep.subr.mxu0 0.0
    %2332 = vmatpush1.msra.mxu0 0.0
    %2333 = vmatprep.subr.mxu0 0.0
    %2334 = vmatpush1.msra.mxu0 0.0
    %2335 = vmatprep.subr.mxu0 0.0
    %2336 = vmatpush1.msra.mxu0 0.0
    %2337 = vmatprep.subr.mxu0 0.0
    %2338 = vmatpush1.msra.mxu0 0.0
    %2339 = vmatprep.subr.mxu0 0.0
    %2340 = vmatpush1.msra.mxu0 0.0
    %2341 = vmatprep.subr.mxu0 0.0
    %2342 = vmatpush1.msra.mxu0 0.0
    %2343 = vmatprep.subr.mxu0 0.0
    %2344 = vmatpush1.msra.mxu0 0.0
    %2345 = vmatprep.subr.mxu0 0.0
    %2346 = vmatpush1.msra.mxu0 0.0
    %2347 = vmatprep.subr.mxu0 0.0
    %2348 = vmatpush1.msra.mxu0 0.0
    %2349 = vmatprep.subr.mxu0 0.0
    %2350 = vmatpush1.msra.mxu0 0.0
    %2351 = vmatprep.subr.mxu0 0.0
    %2352 = vmatpush1.msra.mxu0 0.0
    %2353 = vmatprep.subr.mxu0 0.0
    %2354 = vmatpush1.msra.mxu0 0.0
    %2355 = vmatprep.subr.mxu0 0.0
    %2356 = vmatpush1.msra.mxu0 0.0
    %2357 = vmatprep.subr.mxu0 0.0
    %2358 = vmatpush1.msra.mxu0 0.0
    %2359 = vmatprep.subr.mxu0 0.0
    %2360 = vmatpush1.msra.mxu0 0.0
    %2361 = vmatprep.subr.mxu0 0.0
    %2362 = vmatpush1.msra.mxu0 0.0
    %2363 = vmatprep.subr.mxu0 0.0
    %2364 = vmatpush1.msra.mxu0 0.0
    %2365 = vmatprep.subr.mxu0 0.0
    %2366 = vmatpush1.msra.mxu0 0.0
    %2367 = vmatprep.subr.mxu0 0.0
    %2368 = vmatpush1.msra.mxu0 0.0
    %2369 = vmatprep.mubr.f32.mxu0 0.0
    %2370 = vmatmul.mubr.f32.gmra.mrb[0].mxu0 %v2303
    %v2371 = vpop.f32.mrb[0].mxu0
    %v2372 = vadd.f32 0.0, %v2371
    %v2373 = vpop.f32.mrb[0].mxu0
    %2374 = vdwg.mxu0
    %v2375 = vadd.f32 %v1747, %v2372
    %v2376 = vxor.u32 %v2375, 2147483648
    %v2377 = vmul.f32 %v2376, 1.442695
    %v2378 = vpow.pop %v2377
    %v2379 = vadd.f32 %v2378, 1.0
    %v2380 = vrcp.pop %v2379
    %v2381 = vmul.f32 1.0, %v2380
    %v2382 = vtanh.pop %v2375
    %v2383 = vmul.f32 %v2381, %v2293
    %2385 = vrot.lane.b32.xlu0 %v2382, 64
    %v2386 = vpop.permute.xlu0 %2385
    %v2388 = vmul.f32 %v2381, %v2386
    %2390 = vrot.lane.b32.xlu0 %v2388, 32
    %v2391 = vpop.permute.xlu0 %2390
    %v2393 = vadd.f32 %v2383, %v2391
    %v2394 = vtanh.pop %v2393
    %2396 = vrot.lane.b32.xlu0 %v2394, 64
    %v2397 = vpop.permute.xlu0 %2396
    %v2399 = vmul.f32 %v2381, %v2397
    %2401 = vrot.lane.b32.xlu0 %v2399, 32
    %v2402 = vpop.permute.xlu0 %2401
    %v2403 = vsel %vm726, %v2402, 0
    %2405 = vmatprep.subr.mxu0 0.0
    %2406 = vmatpush1.msra.mxu0 %v1529
    %2407 = vmatprep.subr.mxu0 0.0
    %2408 = vmatpush1.msra.mxu0 %v1530
    %2409 = vmatprep.subr.mxu0 0.0
    %2410 = vmatpush1.msra.mxu0 %v1531
    %2411 = vmatprep.subr.mxu0 0.0
    %2412 = vmatpush1.msra.mxu0 %v1532
    %2413 = vmatprep.subr.mxu0 0.0
    %2414 = vmatpush1.msra.mxu0 0.0
    %2415 = vmatprep.subr.mxu0 0.0
    %2416 = vmatpush1.msra.mxu0 0.0
    %2417 = vmatprep.subr.mxu0 0.0
    %2418 = vmatpush1.msra.mxu0 0.0
    %2419 = vmatprep.subr.mxu0 0.0
    %2420 = vmatpush1.msra.mxu0 0.0
    %2421 = vmatprep.subr.mxu0 0.0
    %2422 = vmatpush1.msra.mxu0 0.0
    %2423 = vmatprep.subr.mxu0 0.0
    %2424 = vmatpush1.msra.mxu0 0.0
    %2425 = vmatprep.subr.mxu0 0.0
    %2426 = vmatpush1.msra.mxu0 0.0
    %2427 = vmatprep.subr.mxu0 0.0
    %2428 = vmatpush1.msra.mxu0 0.0
    %2429 = vmatprep.subr.mxu0 0.0
    %2430 = vmatpush1.msra.mxu0 0.0
    %2431 = vmatprep.subr.mxu0 0.0
    %2432 = vmatpush1.msra.mxu0 0.0
    %2433 = vmatprep.subr.mxu0 0.0
    %2434 = vmatpush1.msra.mxu0 0.0
    %2435 = vmatprep.subr.mxu0 0.0
    %2436 = vmatpush1.msra.mxu0 0.0
    %2437 = vmatprep.subr.mxu0 0.0
    %2438 = vmatpush1.msra.mxu0 0.0
    %2439 = vmatprep.subr.mxu0 0.0
    %2440 = vmatpush1.msra.mxu0 0.0
    %2441 = vmatprep.subr.mxu0 0.0
    %2442 = vmatpush1.msra.mxu0 0.0
    %2443 = vmatprep.subr.mxu0 0.0
    %2444 = vmatpush1.msra.mxu0 0.0
    %2445 = vmatprep.subr.mxu0 0.0
    %2446 = vmatpush1.msra.mxu0 0.0
    %2447 = vmatprep.subr.mxu0 0.0
    %2448 = vmatpush1.msra.mxu0 0.0
    %2449 = vmatprep.subr.mxu0 0.0
    %2450 = vmatpush1.msra.mxu0 0.0
    %2451 = vmatprep.subr.mxu0 0.0
    %2452 = vmatpush1.msra.mxu0 0.0
    %2453 = vmatprep.subr.mxu0 0.0
    %2454 = vmatpush1.msra.mxu0 0.0
    %2455 = vmatprep.subr.mxu0 0.0
    %2456 = vmatpush1.msra.mxu0 0.0
    %2457 = vmatprep.subr.mxu0 0.0
    %2458 = vmatpush1.msra.mxu0 0.0
    %2459 = vmatprep.subr.mxu0 0.0
    %2460 = vmatpush1.msra.mxu0 0.0
    %2461 = vmatprep.subr.mxu0 0.0
    %2462 = vmatpush1.msra.mxu0 0.0
    %2463 = vmatprep.subr.mxu0 0.0
    %2464 = vmatpush1.msra.mxu0 0.0
    %2465 = vmatprep.subr.mxu0 0.0
    %2466 = vmatpush1.msra.mxu0 0.0
    %2467 = vmatprep.subr.mxu0 0.0
    %2468 = vmatpush1.msra.mxu0 0.0
    %2469 = vmatprep.mubr.f32.mxu0 0.0
    %2470 = vmatmul.mubr.f32.gmra.mrb[0].mxu0 %v2403
    %v2471 = vpop.f32.mrb[0].mxu0
    %v2472 = vadd.f32 0.0, %v2471
    %v2473 = vpop.f32.mrb[0].mxu0
    %2474 = vdwg.mxu0
    %v2475 = vadd.f32 %v1817, %v2472
    %v2476 = vxor.u32 %v2475, 2147483648
    %v2477 = vmul.f32 %v2476, 1.442695
    %v2478 = vpow.pop %v2477
    %v2479 = vadd.f32 %v2478, 1.0
    %v2480 = vrcp.pop %v2479
    %v2481 = vmul.f32 1.0, %v2480
    %v2482 = vtanh.pop %v2475
    %v2483 = vmul.f32 %v2481, %v2393
    %2485 = vrot.lane.b32.xlu0 %v2482, 64
    %v2486 = vpop.permute.xlu0 %2485
    %v2488 = vmul.f32 %v2481, %v2486
    %2490 = vrot.lane.b32.xlu0 %v2488, 32
    %v2491 = vpop.permute.xlu0 %2490
    %v2493 = vadd.f32 %v2483, %v2491
    %v2494 = vtanh.pop %v2493
    %2496 = vrot.lane.b32.xlu0 %v2494, 64
    %v2497 = vpop.permute.xlu0 %2496
    %v2499 = vmul.f32 %v2481, %v2497
    %2501 = vrot.lane.b32.xlu0 %v2499, 32
    %v2502 = vpop.permute.xlu0 %2501
    %v2503 = vsel %vm726, %v2502, 0
    %2505 = vmatprep.subr.mxu0 0.0
    %2506 = vmatpush1.msra.mxu0 %v1529
    %2507 = vmatprep.subr.mxu0 0.0
    %2508 = vmatpush1.msra.mxu0 %v1530
    %2509 = vmatprep.subr.mxu0 0.0
    %2510 = vmatpush1.msra.mxu0 %v1531
    %2511 = vmatprep.subr.mxu0 0.0
    %2512 = vmatpush1.msra.mxu0 %v1532
    %2513 = vmatprep.subr.mxu0 0.0
    %2514 = vmatpush1.msra.mxu0 0.0
    %2515 = vmatprep.subr.mxu0 0.0
    %2516 = vmatpush1.msra.mxu0 0.0
    %2517 = vmatprep.subr.mxu0 0.0
    %2518 = vmatpush1.msra.mxu0 0.0
    %2519 = vmatprep.subr.mxu0 0.0
    %2520 = vmatpush1.msra.mxu0 0.0
    %2521 = vmatprep.subr.mxu0 0.0
    %2522 = vmatpush1.msra.mxu0 0.0
    %2523 = vmatprep.subr.mxu0 0.0
    %2524 = vmatpush1.msra.mxu0 0.0
    %2525 = vmatprep.subr.mxu0 0.0
    %2526 = vmatpush1.msra.mxu0 0.0
    %2527 = vmatprep.subr.mxu0 0.0
    %2528 = vmatpush1.msra.mxu0 0.0
    %2529 = vmatprep.subr.mxu0 0.0
    %2530 = vmatpush1.msra.mxu0 0.0
    %2531 = vmatprep.subr.mxu0 0.0
    %2532 = vmatpush1.msra.mxu0 0.0
    %2533 = vmatprep.subr.mxu0 0.0
    %2534 = vmatpush1.msra.mxu0 0.0
    %2535 = vmatprep.subr.mxu0 0.0
    %2536 = vmatpush1.msra.mxu0 0.0
    %2537 = vmatprep.subr.mxu0 0.0
    %2538 = vmatpush1.msra.mxu0 0.0
    %2539 = vmatprep.subr.mxu0 0.0
    %2540 = vmatpush1.msra.mxu0 0.0
    %2541 = vmatprep.subr.mxu0 0.0
    %2542 = vmatpush1.msra.mxu0 0.0
    %2543 = vmatprep.subr.mxu0 0.0
    %2544 = vmatpush1.msra.mxu0 0.0
    %2545 = vmatprep.subr.mxu0 0.0
    %2546 = vmatpush1.msra.mxu0 0.0
    %2547 = vmatprep.subr.mxu0 0.0
    %2548 = vmatpush1.msra.mxu0 0.0
    %2549 = vmatprep.subr.mxu0 0.0
    %2550 = vmatpush1.msra.mxu0 0.0
    %2551 = vmatprep.subr.mxu0 0.0
    %2552 = vmatpush1.msra.mxu0 0.0
    %2553 = vmatprep.subr.mxu0 0.0
    %2554 = vmatpush1.msra.mxu0 0.0
    %2555 = vmatprep.subr.mxu0 0.0
    %2556 = vmatpush1.msra.mxu0 0.0
    %2557 = vmatprep.subr.mxu0 0.0
    %2558 = vmatpush1.msra.mxu0 0.0
    %2559 = vmatprep.subr.mxu0 0.0
    %2560 = vmatpush1.msra.mxu0 0.0
    %2561 = vmatprep.subr.mxu0 0.0
    %2562 = vmatpush1.msra.mxu0 0.0
    %2563 = vmatprep.subr.mxu0 0.0
    %2564 = vmatpush1.msra.mxu0 0.0
    %2565 = vmatprep.subr.mxu0 0.0
    %2566 = vmatpush1.msra.mxu0 0.0
    %2567 = vmatprep.subr.mxu0 0.0
    %2568 = vmatpush1.msra.mxu0 0.0
    %2569 = vmatprep.mubr.f32.mxu0 0.0
    %2570 = vmatmul.mubr.f32.gmra.mrb[0].mxu0 %v2503
    %v2571 = vpop.f32.mrb[0].mxu0
    %v2572 = vadd.f32 0.0, %v2571
    %v2573 = vpop.f32.mrb[0].mxu0
    %2574 = vdwg.mxu0
    %v2575 = vadd.f32 %v1887, %v2572
    %v2576 = vxor.u32 %v2575, 2147483648
    %v2577 = vmul.f32 %v2576, 1.442695
    %v2578 = vpow.pop %v2577
    %v2579 = vadd.f32 %v2578, 1.0
    %v2580 = vrcp.pop %v2579
    %v2581 = vmul.f32 1.0, %v2580
    %v2582 = vtanh.pop %v2575
    %v2583 = vmul.f32 %v2581, %v2493
    %2585 = vrot.lane.b32.xlu0 %v2582, 64
    %v2586 = vpop.permute.xlu0 %2585
    %v2588 = vmul.f32 %v2581, %v2586
    %2590 = vrot.lane.b32.xlu0 %v2588, 32
    %v2591 = vpop.permute.xlu0 %2590
    %v2593 = vadd.f32 %v2583, %v2591
    %v2594 = vtanh.pop %v2593
    %2596 = vrot.lane.b32.xlu0 %v2594, 64
    %v2597 = vpop.permute.xlu0 %2596
    %v2599 = vmul.f32 %v2581, %v2597
    %2601 = vrot.lane.b32.xlu0 %v2599, 32
    %v2602 = vpop.permute.xlu0 %2601
    %v2603 = vsel %vm726, %v2602, 0
    %2605 = vmatprep.subr.mxu0 0.0
    %2606 = vmatpush1.msra.mxu0 %v1529
    %2607 = vmatprep.subr.mxu0 0.0
    %2608 = vmatpush1.msra.mxu0 %v1530
    %2609 = vmatprep.subr.mxu0 0.0
    %2610 = vmatpush1.msra.mxu0 %v1531
    %2611 = vmatprep.subr.mxu0 0.0
    %2612 = vmatpush1.msra.mxu0 %v1532
    %2613 = vmatprep.subr.mxu0 0.0
    %2614 = vmatpush1.msra.mxu0 0.0
    %2615 = vmatprep.subr.mxu0 0.0
    %2616 = vmatpush1.msra.mxu0 0.0
    %2617 = vmatprep.subr.mxu0 0.0
    %2618 = vmatpush1.msra.mxu0 0.0
    %2619 = vmatprep.subr.mxu0 0.0
    %2620 = vmatpush1.msra.mxu0 0.0
    %2621 = vmatprep.subr.mxu0 0.0
    %2622 = vmatpush1.msra.mxu0 0.0
    %2623 = vmatprep.subr.mxu0 0.0
    %2624 = vmatpush1.msra.mxu0 0.0
    %2625 = vmatprep.subr.mxu0 0.0
    %2626 = vmatpush1.msra.mxu0 0.0
    %2627 = vmatprep.subr.mxu0 0.0
    %2628 = vmatpush1.msra.mxu0 0.0
    %2629 = vmatprep.subr.mxu0 0.0
    %2630 = vmatpush1.msra.mxu0 0.0
    %2631 = vmatprep.subr.mxu0 0.0
    %2632 = vmatpush1.msra.mxu0 0.0
    %2633 = vmatprep.subr.mxu0 0.0
    %2634 = vmatpush1.msra.mxu0 0.0
    %2635 = vmatprep.subr.mxu0 0.0
    %2636 = vmatpush1.msra.mxu0 0.0
    %2637 = vmatprep.subr.mxu0 0.0
    %2638 = vmatpush1.msra.mxu0 0.0
    %2639 = vmatprep.subr.mxu0 0.0
    %2640 = vmatpush1.msra.mxu0 0.0
    %2641 = vmatprep.subr.mxu0 0.0
    %2642 = vmatpush1.msra.mxu0 0.0
    %2643 = vmatprep.subr.mxu0 0.0
    %2644 = vmatpush1.msra.mxu0 0.0
    %2645 = vmatprep.subr.mxu0 0.0
    %2646 = vmatpush1.msra.mxu0 0.0
    %2647 = vmatprep.subr.mxu0 0.0
    %2648 = vmatpush1.msra.mxu0 0.0
    %2649 = vmatprep.subr.mxu0 0.0
    %2650 = vmatpush1.msra.mxu0 0.0
    %2651 = vmatprep.subr.mxu0 0.0
    %2652 = vmatpush1.msra.mxu0 0.0
    %2653 = vmatprep.subr.mxu0 0.0
    %2654 = vmatpush1.msra.mxu0 0.0
    %2655 = vmatprep.subr.mxu0 0.0
    %2656 = vmatpush1.msra.mxu0 0.0
    %2657 = vmatprep.subr.mxu0 0.0
    %2658 = vmatpush1.msra.mxu0 0.0
    %2659 = vmatprep.subr.mxu0 0.0
    %2660 = vmatpush1.msra.mxu0 0.0
    %2661 = vmatprep.subr.mxu0 0.0
    %2662 = vmatpush1.msra.mxu0 0.0
    %2663 = vmatprep.subr.mxu0 0.0
    %2664 = vmatpush1.msra.mxu0 0.0
    %2665 = vmatprep.subr.mxu0 0.0
    %2666 = vmatpush1.msra.mxu0 0.0
    %2667 = vmatprep.subr.mxu0 0.0
    %2668 = vmatpush1.msra.mxu0 0.0
    %2669 = vmatprep.mubr.f32.mxu0 0.0
    %2670 = vmatmul.mubr.f32.gmra.mrb[0].mxu0 %v2603
    %v2671 = vpop.f32.mrb[0].mxu0
    %v2672 = vadd.f32 0.0, %v2671
    %v2673 = vpop.f32.mrb[0].mxu0
    %2674 = vdwg.mxu0
    %v2675 = vadd.f32 %v1957, %v2672
    %v2676 = vxor.u32 %v2675, 2147483648
    %v2677 = vmul.f32 %v2676, 1.442695
    %v2678 = vpow.pop %v2677
    %v2679 = vadd.f32 %v2678, 1.0
    %v2680 = vrcp.pop %v2679
    %v2681 = vmul.f32 1.0, %v2680
    %v2682 = vtanh.pop %v2675
    %v2683 = vmul.f32 %v2681, %v2593
    %2685 = vrot.lane.b32.xlu0 %v2682, 64
    %v2686 = vpop.permute.xlu0 %2685
    %v2688 = vmul.f32 %v2681, %v2686
    %2690 = vrot.lane.b32.xlu0 %v2688, 32
    %v2691 = vpop.permute.xlu0 %2690
    %v2693 = vadd.f32 %v2683, %v2691
    %v2694 = vtanh.pop %v2693
    %2696 = vrot.lane.b32.xlu0 %v2694, 64
    %v2697 = vpop.permute.xlu0 %2696
    %v2699 = vmul.f32 %v2681, %v2697
    %2701 = vrot.lane.b32.xlu0 %v2699, 32
    %v2702 = vpop.permute.xlu0 %2701
    %v2703 = vsel %vm726, %v2702, 0
    %2705 = vmatprep.subr.mxu0 0.0
    %2706 = vmatpush1.msra.mxu0 %v1529
    %2707 = vmatprep.subr.mxu0 0.0
    %2708 = vmatpush1.msra.mxu0 %v1530
    %2709 = vmatprep.subr.mxu0 0.0
    %2710 = vmatpush1.msra.mxu0 %v1531
    %2711 = vmatprep.subr.mxu0 0.0
    %2712 = vmatpush1.msra.mxu0 %v1532
    %2713 = vmatprep.subr.mxu0 0.0
    %2714 = vmatpush1.msra.mxu0 0.0
    %2715 = vmatprep.subr.mxu0 0.0
    %2716 = vmatpush1.msra.mxu0 0.0
    %2717 = vmatprep.subr.mxu0 0.0
    %2718 = vmatpush1.msra.mxu0 0.0
    %2719 = vmatprep.subr.mxu0 0.0
    %2720 = vmatpush1.msra.mxu0 0.0
    %2721 = vmatprep.subr.mxu0 0.0
    %2722 = vmatpush1.msra.mxu0 0.0
    %2723 = vmatprep.subr.mxu0 0.0
    %2724 = vmatpush1.msra.mxu0 0.0
    %2725 = vmatprep.subr.mxu0 0.0
    %2726 = vmatpush1.msra.mxu0 0.0
    %2727 = vmatprep.subr.mxu0 0.0
    %2728 = vmatpush1.msra.mxu0 0.0
    %2729 = vmatprep.subr.mxu0 0.0
    %2730 = vmatpush1.msra.mxu0 0.0
    %2731 = vmatprep.subr.mxu0 0.0
    %2732 = vmatpush1.msra.mxu0 0.0
    %2733 = vmatprep.subr.mxu0 0.0
    %2734 = vmatpush1.msra.mxu0 0.0
    %2735 = vmatprep.subr.mxu0 0.0
    %2736 = vmatpush1.msra.mxu0 0.0
    %2737 = vmatprep.subr.mxu0 0.0
    %2738 = vmatpush1.msra.mxu0 0.0
    %2739 = vmatprep.subr.mxu0 0.0
    %2740 = vmatpush1.msra.mxu0 0.0
    %2741 = vmatprep.subr.mxu0 0.0
    %2742 = vmatpush1.msra.mxu0 0.0
    %2743 = vmatprep.subr.mxu0 0.0
    %2744 = vmatpush1.msra.mxu0 0.0
    %2745 = vmatprep.subr.mxu0 0.0
    %2746 = vmatpush1.msra.mxu0 0.0
    %2747 = vmatprep.subr.mxu0 0.0
    %2748 = vmatpush1.msra.mxu0 0.0
    %2749 = vmatprep.subr.mxu0 0.0
    %2750 = vmatpush1.msra.mxu0 0.0
    %2751 = vmatprep.subr.mxu0 0.0
    %2752 = vmatpush1.msra.mxu0 0.0
    %2753 = vmatprep.subr.mxu0 0.0
    %2754 = vmatpush1.msra.mxu0 0.0
    %2755 = vmatprep.subr.mxu0 0.0
    %2756 = vmatpush1.msra.mxu0 0.0
    %2757 = vmatprep.subr.mxu0 0.0
    %2758 = vmatpush1.msra.mxu0 0.0
    %2759 = vmatprep.subr.mxu0 0.0
    %2760 = vmatpush1.msra.mxu0 0.0
    %2761 = vmatprep.subr.mxu0 0.0
    %2762 = vmatpush1.msra.mxu0 0.0
    %2763 = vmatprep.subr.mxu0 0.0
    %2764 = vmatpush1.msra.mxu0 0.0
    %2765 = vmatprep.subr.mxu0 0.0
    %2766 = vmatpush1.msra.mxu0 0.0
    %2767 = vmatprep.subr.mxu0 0.0
    %2768 = vmatpush1.msra.mxu0 0.0
    %2769 = vmatprep.mubr.f32.mxu0 0.0
    %2770 = vmatmul.mubr.f32.gmra.mrb[0].mxu0 %v2703
    %v2771 = vpop.f32.mrb[0].mxu0
    %v2772 = vadd.f32 0.0, %v2771
    %v2773 = vpop.f32.mrb[0].mxu0
    %2774 = vdwg.mxu0
    %v2775 = vadd.f32 %v2027, %v2772
    %v2776 = vxor.u32 %v2775, 2147483648
    %v2777 = vmul.f32 %v2776, 1.442695
    %v2778 = vpow.pop %v2777
    %v2779 = vadd.f32 %v2778, 1.0
    %v2780 = vrcp.pop %v2779
    %v2781 = vmul.f32 1.0, %v2780
    %v2782 = vtanh.pop %v2775
    %v2783 = vmul.f32 %v2781, %v2693
    %2785 = vrot.lane.b32.xlu0 %v2782, 64
    %v2786 = vpop.permute.xlu0 %2785
    %v2788 = vmul.f32 %v2781, %v2786
    %2790 = vrot.lane.b32.xlu0 %v2788, 32
    %v2791 = vpop.permute.xlu0 %2790
    %v2793 = vadd.f32 %v2783, %v2791
    %v2794 = vtanh.pop %v2793
    %2796 = vrot.lane.b32.xlu0 %v2794, 64
    %v2797 = vpop.permute.xlu0 %2796
    %v2799 = vmul.f32 %v2781, %v2797
    %2801 = vrot.lane.b32.xlu0 %v2799, 32
    %v2802 = vpop.permute.xlu0 %2801
    %v2803 = vsel %vm726, %v2802, 0
    %2805 = vmatprep.subr.mxu0 0.0
    %2806 = vmatpush1.msra.mxu0 %v1529
    %2807 = vmatprep.subr.mxu0 0.0
    %2808 = vmatpush1.msra.mxu0 %v1530
    %2809 = vmatprep.subr.mxu0 0.0
    %2810 = vmatpush1.msra.mxu0 %v1531
    %2811 = vmatprep.subr.mxu0 0.0
    %2812 = vmatpush1.msra.mxu0 %v1532
    %2813 = vmatprep.subr.mxu0 0.0
    %2814 = vmatpush1.msra.mxu0 0.0
    %2815 = vmatprep.subr.mxu0 0.0
    %2816 = vmatpush1.msra.mxu0 0.0
    %2817 = vmatprep.subr.mxu0 0.0
    %2818 = vmatpush1.msra.mxu0 0.0
    %2819 = vmatprep.subr.mxu0 0.0
    %2820 = vmatpush1.msra.mxu0 0.0
    %2821 = vmatprep.subr.mxu0 0.0
    %2822 = vmatpush1.msra.mxu0 0.0
    %2823 = vmatprep.subr.mxu0 0.0
    %2824 = vmatpush1.msra.mxu0 0.0
    %2825 = vmatprep.subr.mxu0 0.0
    %2826 = vmatpush1.msra.mxu0 0.0
    %2827 = vmatprep.subr.mxu0 0.0
    %2828 = vmatpush1.msra.mxu0 0.0
    %2829 = vmatprep.subr.mxu0 0.0
    %2830 = vmatpush1.msra.mxu0 0.0
    %2831 = vmatprep.subr.mxu0 0.0
    %2832 = vmatpush1.msra.mxu0 0.0
    %2833 = vmatprep.subr.mxu0 0.0
    %2834 = vmatpush1.msra.mxu0 0.0
    %2835 = vmatprep.subr.mxu0 0.0
    %2836 = vmatpush1.msra.mxu0 0.0
    %2837 = vmatprep.subr.mxu0 0.0
    %2838 = vmatpush1.msra.mxu0 0.0
    %2839 = vmatprep.subr.mxu0 0.0
    %2840 = vmatpush1.msra.mxu0 0.0
    %2841 = vmatprep.subr.mxu0 0.0
    %2842 = vmatpush1.msra.mxu0 0.0
    %2843 = vmatprep.subr.mxu0 0.0
    %2844 = vmatpush1.msra.mxu0 0.0
    %2845 = vmatprep.subr.mxu0 0.0
    %2846 = vmatpush1.msra.mxu0 0.0
    %2847 = vmatprep.subr.mxu0 0.0
    %2848 = vmatpush1.msra.mxu0 0.0
    %2849 = vmatprep.subr.mxu0 0.0
    %2850 = vmatpush1.msra.mxu0 0.0
    %2851 = vmatprep.subr.mxu0 0.0
    %2852 = vmatpush1.msra.mxu0 0.0
    %2853 = vmatprep.subr.mxu0 0.0
    %2854 = vmatpush1.msra.mxu0 0.0
    %2855 = vmatprep.subr.mxu0 0.0
    %2856 = vmatpush1.msra.mxu0 0.0
    %2857 = vmatprep.subr.mxu0 0.0
    %2858 = vmatpush1.msra.mxu0 0.0
    %2859 = vmatprep.subr.mxu0 0.0
    %2860 = vmatpush1.msra.mxu0 0.0
    %2861 = vmatprep.subr.mxu0 0.0
    %2862 = vmatpush1.msra.mxu0 0.0
    %2863 = vmatprep.subr.mxu0 0.0
    %2864 = vmatpush1.msra.mxu0 0.0
    %2865 = vmatprep.subr.mxu0 0.0
    %2866 = vmatpush1.msra.mxu0 0.0
    %2867 = vmatprep.subr.mxu0 0.0
    %2868 = vmatpush1.msra.mxu0 0.0
    %2869 = vmatprep.mubr.f32.mxu0 0.0
    %2870 = vmatmul.mubr.f32.gmra.mrb[0].mxu0 %v2803
    %v2871 = vpop.f32.mrb[0].mxu0
    %v2872 = vadd.f32 0.0, %v2871
    %v2873 = vpop.f32.mrb[0].mxu0
    %2874 = vdwg.mxu0
    %v2875 = vadd.f32 %v2102, %v2872
    %v2876 = vxor.u32 %v2875, 2147483648
    %v2877 = vmul.f32 %v2876, 1.442695
    %v2878 = vpow.pop %v2877
    %v2879 = vadd.f32 %v2878, 1.0
    %v2880 = vrcp.pop %v2879
    %v2881 = vmul.f32 1.0, %v2880
    %v2882 = vtanh.pop %v2875
    %v2883 = vmul.f32 %v2881, %v2793
    %2885 = vrot.lane.b32.xlu0 %v2882, 64
    %v2886 = vpop.permute.xlu0 %2885
    %v2888 = vmul.f32 %v2881, %v2886
    %2890 = vrot.lane.b32.xlu0 %v2888, 32
    %v2891 = vpop.permute.xlu0 %2890
    %v2893 = vadd.f32 %v2883, %v2891
    %v2894 = vtanh.pop %v2893
    %2896 = vrot.lane.b32.xlu0 %v2894, 64
    %v2897 = vpop.permute.xlu0 %2896
    %v2899 = vmul.f32 %v2881, %v2897
    %v2900 = vmax.f32 %v2899, 0.0
    %v2901 = vld [vmem:[#allocation11] sm:$0xff]
    %v2902 = vld [vmem:[#allocation11 + $0x8] sm:$0xff]
    %v2903 = vld [vmem:[#allocation11 + $0x10] sm:$0xff]
    %v2904 = vld [vmem:[#allocation11 + $0x18] sm:$0xff]
    %v2905 = vld [vmem:[%s8] sm:$0x1]
    %v2907 = vlaneseq
    %v2908 = vshrl.u32 %v2907, 7
    %v2909 = vsub.s32 0, %v2908
    %v2910 = vrot.slane %v2905, %v2909
    %2913 = vrot.lane.b32.xlu0 %v2900, 32
    %v2914 = vpop.permute.xlu0 %2913
    %v2915 = vsel %vm726, %v2914, 0
    %2917 = vmatprep.subr.mxu0 0.0
    %2918 = vmatpush1.msra.mxu0 %v2901
    %2919 = vmatprep.subr.mxu0 0.0
    %2920 = vmatpush1.msra.mxu0 %v2902
    %2921 = vmatprep.subr.mxu0 0.0
    %2922 = vmatpush1.msra.mxu0 %v2903
    %2923 = vmatprep.subr.mxu0 0.0
    %2924 = vmatpush1.msra.mxu0 %v2904
    %2925 = vmatprep.subr.mxu0 0.0
    %2926 = vmatpush1.msra.mxu0 0.0
    %2927 = vmatprep.subr.mxu0 0.0
    %2928 = vmatpush1.msra.mxu0 0.0
    %2929 = vmatprep.subr.mxu0 0.0
    %2930 = vmatpush1.msra.mxu0 0.0
    %2931 = vmatprep.subr.mxu0 0.0
    %2932 = vmatpush1.msra.mxu0 0.0
    %2933 = vmatprep.subr.mxu0 0.0
    %2934 = vmatpush1.msra.mxu0 0.0
    %2935 = vmatprep.subr.mxu0 0.0
    %2936 = vmatpush1.msra.mxu0 0.0
    %2937 = vmatprep.subr.mxu0 0.0
    %2938 = vmatpush1.msra.mxu0 0.0
    %2939 = vmatprep.subr.mxu0 0.0
    %2940 = vmatpush1.msra.mxu0 0.0
    %2941 = vmatprep.subr.mxu0 0.0
    %2942 = vmatpush1.msra.mxu0 0.0
    %2943 = vmatprep.subr.mxu0 0.0
    %2944 = vmatpush1.msra.mxu0 0.0
    %2945 = vmatprep.subr.mxu0 0.0
    %2946 = vmatpush1.msra.mxu0 0.0
    %2947 = vmatprep.subr.mxu0 0.0
    %2948 = vmatpush1.msra.mxu0 0.0
    %2949 = vmatprep.subr.mxu0 0.0
    %2950 = vmatpush1.msra.mxu0 0.0
    %2951 = vmatprep.subr.mxu0 0.0
    %2952 = vmatpush1.msra.mxu0 0.0
    %2953 = vmatprep.subr.mxu0 0.0
    %2954 = vmatpush1.msra.mxu0 0.0
    %2955 = vmatprep.subr.mxu0 0.0
    %2956 = vmatpush1.msra.mxu0 0.0
    %2957 = vmatprep.subr.mxu0 0.0
    %2958 = vmatpush1.msra.mxu0 0.0
    %2959 = vmatprep.subr.mxu0 0.0
    %2960 = vmatpush1.msra.mxu0 0.0
    %2961 = vmatprep.subr.mxu0 0.0
    %2962 = vmatpush1.msra.mxu0 0.0
    %2963 = vmatprep.subr.mxu0 0.0
    %2964 = vmatpush1.msra.mxu0 0.0
    %2965 = vmatprep.subr.mxu0 0.0
    %2966 = vmatpush1.msra.mxu0 0.0
    %2967 = vmatprep.subr.mxu0 0.0
    %2968 = vmatpush1.msra.mxu0 0.0
    %2969 = vmatprep.subr.mxu0 0.0
    %2970 = vmatpush1.msra.mxu0 0.0
    %2971 = vmatprep.subr.mxu0 0.0
    %2972 = vmatpush1.msra.mxu0 0.0
    %2973 = vmatprep.subr.mxu0 0.0
    %2974 = vmatpush1.msra.mxu0 0.0
    %2975 = vmatprep.subr.mxu0 0.0
    %2976 = vmatpush1.msra.mxu0 0.0
    %2977 = vmatprep.subr.mxu0 0.0
    %2978 = vmatpush1.msra.mxu0 0.0
    %2979 = vmatprep.subr.mxu0 0.0
    %2980 = vmatpush1.msra.mxu0 0.0
    %2981 = vmatprep.mubr.f32.mxu0 0.0
    %2982 = vmatmul.mubr.f32.gmra.mrb[0].mxu0 %v2915
    %v2983 = vpop.f32.mrb[0].mxu0
    %v2984 = vadd.f32 %v2910, %v2983
    %v2985 = vpop.f32.mrb[0].mxu0
    %2986 = vdwg.mxu0
    %v2987 = vmax.f32 %v2984, 0.0
    %v2988 = vld [vmem:[%s9] sm:$0x1]
    %v2990 = vlaneseq
    %v2991 = vshrl.u32 %v2990, 7
    %v2992 = vsub.s32 0, %v2991
    %v2993 = vrot.slane %v2988, %v2992
    %v2995 = vmul.f32 %v2987, %v2993
    %vm2996 = vcmask 523264
    %v2997 = vsel %vm2996, %v2995, 0.0
    %2998 = vadd.xlane.f32.xlu0 %v2997
    %v2999 = vpop.xlane.xlu0 %2998
    %v3000 = vld [vmem:[#allocation2] sm:$0x1]
    %v3002 = vlaneseq
    %v3003 = vshrl.u32 %v3002, 7
    %v3004 = vsub.s32 0, %v3003
    %v3005 = vrot.slane %v3000, %v3004
    %v3007 = vadd.f32 %v2999, %v3005
    %v3008 = vxor.u32 %v3007, 2147483648
    %v3009 = vmul.f32 %v3008, 1.442695
    %v3010 = vpow.pop %v3009
    %v3011 = vadd.f32 %v3010, 1.0
    %v3012 = vrcp.pop %v3011
    %v3013 = vmul.f32 1.0, %v3012
    %vm3014 = vcmask 7168
    %3015 = vst.msk [vmem:[%s11] sm:$0xff] %vm3014, %v3013
    // Predicated region
    $region70: #{tpu_custom_call.1} parent=1 // pred_check
      _
    $region71: #{tpu_custom_call.1} parent=1 // pred_check_branch
      %3017 = sbr.rel (0) target = $region73
    $region72: #{tpu_custom_call.1} parent=1 // pred_region
      _
    $region73: #{tpu_custom_call.1} parent=1 // pred_fallthru
      _
    // Predicated region
    $region74: #{tpu_custom_call.1} parent=1 // pred_check
      _
    $region75: #{tpu_custom_call.1} parent=1 // pred_check_branch
      %3019 = sbr.rel (0) target = $region77
    $region76: #{tpu_custom_call.1} parent=1 // pred_region
      _
    $region77: #{tpu_custom_call.1} parent=1 // pred_fallthru
      _
    %3020 = vsyncpa [#allocation4], 1
    %3021 = vsyncpa [#allocation6], 1
    %3022 = vsyncpa [#allocation9], 1
    %3023 = vsyncpa [#allocation12], 1

</llo_original>
